<compile_context>
chip_gen: v5e
topology: v5e:2x2
jax: 0.10.0
libtpu: 0.0.40
codegen_flags: <defaults>
</compile_context>

<pallas_src>
import functools

import jax
import jax.numpy as jnp
from jax.experimental import pallas as pl
from jax.experimental.pallas import tpu as pltpu


def _round_up(x, m):
    return ((x + m - 1) // m) * m


# ------------------------------ Pallas kernels ------------------------------

def _conv_relu_pool_kernel(xpar_ref, w_ref, b_ref, o_ref, cols_ref, *, pv, lt, cpad):
    """Fused conv(5x5, valid) + 2x2/2 max-pool + bias + ReLU for one output M-tile.

    xpar_ref: (4*cpad, Mp+128)  parity planes of the input, lane-flattened (b,u,v)
              with per-image stride PU*PV; rows [(p*2+q)*cpad, +cpad) hold the
              (zero-padded) channels of parity plane (p, q).  VMEM-resident.
    w_ref:    (4, Cout, 36*cpad) one GEMM weight matrix per 2x2 pool tap.
    b_ref:    (Cout, 1)          bias.
    o_ref:    (Cout, lt)         pooled output tile (lane m0 = b*PI + hh*PV + wh).
    cols_ref: (36*cpad, lt)      VMEM scratch: in-kernel im2col operand.
    """
    start = pl.multiple_of(pl.program_id(0) * lt, 128)
    idx = 0
    for p in range(2):
        for q in range(2):
            r0 = (p * 2 + q) * cpad
            # (cpad, lt+128) window of this parity plane; aligned dynamic lane slice.
            src = xpar_ref[r0:r0 + cpad, pl.ds(start, lt + 128)]
            for a in range(3):
                for c in range(3):
                    s = a * pv + c                      # static shift, <= 2*pv+2 < 128
                    cols_ref[idx * cpad:(idx + 1) * cpad, :] = src[:, s:s + lt]
                    idx += 1
    cols = cols_ref[...]
    # Running max over the 4 pool taps: at most two (Cout, lt) result slabs live.
    y = jnp.dot(w_ref[0], cols, preferred_element_type=jnp.float32)
    for t in range(1, 4):
        y = jnp.maximum(y, jnp.dot(w_ref[t], cols, preferred_element_type=jnp.float32))
    # max(relu(a+b), relu(c+b)) == relu(max(a, c) + b): pool before bias/ReLU is exact.
    o_ref[...] = jnp.maximum(y + b_ref[...], 0.0)


def _fc_stack_kernel(x_ref, w1_ref, b1_ref, w2_ref, b2_ref, w3_ref, b3_ref, o_ref):
    """Fused fc1(ReLU) -> fc2(ReLU) -> fc3 for one batch tile; weights VMEM-resident."""
    h = jnp.dot(x_ref[...], w1_ref[...], preferred_element_type=jnp.float32) + b1_ref[...]
    h = jnp.maximum(h, 0.0)
    h = jnp.dot(h, w2_ref[...], preferred_element_type=jnp.float32) + b2_ref[...]
    h = jnp.maximum(h, 0.0)
    o_ref[...] = jnp.dot(h, w3_ref[...], preferred_element_type=jnp.float32) + b3_ref[...]


# ------------------------------ wrappers ------------------------------------

def _pick_tile(m, lt_max=1024, lt_min=256):
    """Lane tile for the conv output.  >=2 tiles when M is big (v7x megacore);
    single tile for tiny M (v5e/v6e: grid steps are serial, ~0.35us each)."""
    mp128 = _round_up(m, 128)
    if mp128 <= lt_min:
        return mp128
    return min(lt_max, max(lt_min, _round_up((mp128 + 1) // 2, 128)))


def _pool_tap_weights(w, cp):
    """Per-pool-tap GEMM weights.

    w: (Cout, Cin, 5, 5) PyTorch conv weight.  Returns (4, Cout, 36*cp) where the
    column index flattens (p, q, a, c, ci): the contribution of input parity plane
    (p, q) at spatial shift (a, c).  Entry = w[co, ci, 2a+p-dh, 2c+q-dw] (0 if the
    kernel-tap index falls outside [0, 5)).
    """
    cout, cin, kh, kw = w.shape
    taps = []
    for dh in range(2):
        for dw in range(2):
            wp = jnp.pad(w, ((0, 0), (0, 0), (dh, 1 - dh), (dw, 1 - dw)))   # (Cout,Cin,6,6)
            wp = wp.reshape(cout, cin, 3, 2, 3, 2)                          # (co,ci,a,p,c,q)
            wp = jnp.transpose(wp, (0, 3, 5, 2, 4, 1))                      # (co,p,q,a,c,ci)
            wp = jnp.pad(wp, ((0, 0),) * 5 + ((0, cp - cin),))
            taps.append(wp.reshape(cout, 2 * 2 * 3 * 3 * cp))
    return jnp.stack(taps, axis=0).astype(jnp.float32)                      # (4, Cout, 36*cp)


def conv_relu_pool(x_cbhw, w, b, *, lt_max=1024):
    """conv(valid, 5x5) + bias + ReLU + maxpool(2, 2) as one Pallas call.

    x_cbhw: (Cin, B, H, W); w: (Cout, Cin, 5, 5) (PyTorch layout); b: (Cout,).
    Returns (Cout, B, Hh, Wh) in the internal CBHW layout, Hh = (H-4)//2.
    """
    cout, cin, kh, kw = w.shape
    assert (kh, kw) == (5, 5) and cin <= 8
    _, B, H, W = x_cbhw.shape
    Hh, Wh = (H - kh + 1) // 2, (W - kw + 1) // 2
    PU, PV = Hh + 2, Wh + 2                 # == ceil(H/2), ceil(W/2) for even H, W
    PI = PU * PV                            # per-image lane stride
    M = B * PI
    CP = 8                                  # channels padded to one f32 sublane tile

    lt = _pick_tile(M, lt_max)
    Mp = _round_up(M, lt)
    n_m = Mp // lt
    Mp_in = Mp + 128                        # halo for the largest in-kernel tap shift

    # Parity-decomposed, lane-flattened input (one O(|x|) XLA pass; no 25x cols).
    planes = []
    for p in range(2):
        for q in range(2):
            xpq = x_cbhw[:, :, p::2, q::2]                                  # (Cin,B,PU,PV)
            xpq = jnp.pad(xpq, ((0, CP - cin), (0, 0),
                                (0, PU - xpq.shape[2]), (0, PV - xpq.shape[3])))
            planes.append(xpq.reshape(CP, M))
    xpar = jnp.concatenate(planes, axis=0)                                  # (32, M)
    xpar = jnp.pad(xpar, ((0, 0), (0, Mp_in - M))).astype(jnp.float32)

    w_taps = _pool_tap_weights(w, CP)                                       # (4, Cout, 288)
    KC = w_taps.shape[-1]
    b2d = b.reshape(cout, 1).astype(jnp.float32)

    kernel = functools.partial(_conv_relu_pool_kernel, pv=PV, lt=lt, cpad=CP)

    # Explicit VMEM budget: resident planes (x2 safety), weights, cols scratch,
    # per-(p,q) window, output double buffer + two live result slabs.
    est_vmem = 4 * (2 * 4 * CP * Mp_in + 4 * cout * KC + KC * lt
                    + CP * (lt + 128) + 4 * cout * lt)
    vmem_limit = int(min(48 << 20, max(24 << 20, 2 * est_vmem)))

    out = pl.pallas_call(
        kernel,
        out_shape=jax.ShapeDtypeStruct((cout, Mp), jnp.float32),
        grid=(n_m,),
        in_specs=[
            pl.BlockSpec((4 * CP, Mp_in), lambda m: (0, 0)),     # parity planes: resident
            pl.BlockSpec((4, cout, KC), lambda m: (0, 0, 0)),    # 4 tap weights: resident
            pl.BlockSpec((cout, 1), lambda m: (0, 0)),           # bias:           resident
        ],
        out_specs=pl.BlockSpec((cout, lt), lambda m: (0, m)),
        scratch_shapes=[pltpu.VMEM((KC, lt), jnp.float32)],
        compiler_params=pltpu.CompilerParams(
            dimension_semantics=("parallel",),
            vmem_limit_bytes=vmem_limit),
        cost_estimate=pl.CostEstimate(
            flops=2 * 4 * cout * KC * Mp,
            transcendentals=0,
            bytes_accessed=4 * (4 * CP * Mp_in + 4 * cout * KC + cout * Mp)),
    )(xpar, w_taps, b2d)

    # Valid lanes are m0 = b*PI + hh*PV + wh with hh < Hh, wh < Wh; rest is garbage.
    return out[:, :M].reshape(cout, B, PU, PV)[:, :, :Hh, :Wh]


def fc_stack(x, params):
    """Fused fc1->fc2->fc3 (ReLU between 1/2 and 2/3), batch-tiled. x: (B, 400) -> (B, 10)."""
    B, K = x.shape
    w1, w2, w3 = params["fc1_w"], params["fc2_w"], params["fc3_w"]
    H1, H2, N = w1.shape[1], w2.shape[1], w3.shape[1]
    H1p, H2p = _round_up(H1, 128), _round_up(H2, 128)     # 120->128, 84->128 (exact)

    w1p = jnp.pad(w1, ((0, 0), (0, H1p - H1)))
    b1p = jnp.pad(params["fc1_b"], (0, H1p - H1)).reshape(1, H1p)
    w2p = jnp.pad(w2, ((0, H1p - H1), (0, H2p - H2)))
    b2p = jnp.pad(params["fc2_b"], (0, H2p - H2)).reshape(1, H2p)
    w3p = jnp.pad(w3, ((0, H2p - H2), (0, 0)))
    b3p = params["fc3_b"].reshape(1, N)

    if B <= 256:
        tb, Bp = B, B                      # single step; block == full array dims
    else:
        tb = 128
        Bp = _round_up(B, tb)
    xp = x if Bp == B else jnp.pad(x, ((0, Bp - B), (0, 0)))
    n_b = Bp // tb

    out = pl.pallas_call(
        _fc_stack_kernel,
        out_shape=jax.ShapeDtypeStruct((Bp, N), jnp.float32),
        grid=(n_b,),
        in_specs=[
            pl.BlockSpec((tb, K), lambda i: (i, 0)),        # activations: tiled over batch
            pl.BlockSpec((K, H1p), lambda i: (0, 0)),       # weights/biases: VMEM-resident
            pl.BlockSpec((1, H1p), lambda i: (0, 0)),
            pl.BlockSpec((H1p, H2p), lambda i: (0, 0)),
            pl.BlockSpec((1, H2p), lambda i: (0, 0)),
            pl.BlockSpec((H2p, N), lambda i: (0, 0)),
            pl.BlockSpec((1, N), lambda i: (0, 0)),
        ],
        out_specs=pl.BlockSpec((tb, N), lambda i: (i, 0)),
        compiler_params=pltpu.CompilerParams(
            dimension_semantics=("parallel",)),
    )(xp, w1p, b1p, w2p, b2p, w3p, b3p)
    return out[:B]


# ------------------------------ parameters ----------------------------------

def init_params(key):
    ks = jax.random.split(key, 10)

    def u(k, shape, fan_in):
        bound = 1.0 / jnp.sqrt(fan_in)
        return jax.random.uniform(k, shape, jnp.float32, -bound, bound)

    return {
        "conv1_w": u(ks[0], (6, 3, 5, 5), 3 * 5 * 5),
        "conv1_b": u(ks[1], (6,), 3 * 5 * 5),
        "conv2_w": u(ks[2], (16, 6, 5, 5), 6 * 5 * 5),
        "conv2_b": u(ks[3], (16,), 6 * 5 * 5),
        "fc1_w": u(ks[4], (16 * 5 * 5, 120), 16 * 5 * 5),   # stored as (in, out)
        "fc1_b": u(ks[5], (120,), 16 * 5 * 5),
        "fc2_w": u(ks[6], (120, 84), 120),
        "fc2_b": u(ks[7], (84,), 120),
        "fc3_w": u(ks[8], (84, 10), 84),
        "fc3_b": u(ks[9], (10,), 84),
    }


# ------------------------------ forward --------------------------------------

def convnet_forward(params, x):
    # x: (B, 3, 32, 32) float32, NCHW (same as the PyTorch module).
    x = jnp.transpose(x, (1, 0, 2, 3))                                # CBHW internal layout
    x = conv_relu_pool(x, params["conv1_w"], params["conv1_b"])       # (6, B, 14, 14)
    x = conv_relu_pool(x, params["conv2_w"], params["conv2_b"])       # (16, B, 5, 5)
    B = x.shape[1]
    x = jnp.transpose(x, (1, 0, 2, 3)).reshape(B, 16 * 5 * 5)         # == torch .view(-1, 400)
    return fc_stack(x, params)                                        # (B, 10)


# ------------------------------ reference (pure XLA) -------------------------

def _reference_forward(params, x):
    def conv(x, w, b):
        y = jax.lax.conv_general_dilated(
            x, w, (1, 1), "VALID", dimension_numbers=("NCHW", "OIHW", "NCHW"))
        return jax.nn.relu(y + b.reshape(1, -1, 1, 1))

    def pool(x):
        return jax.lax.reduce_window(x, -jnp.inf, jax.lax.max,
                                     (1, 1, 2, 2), (1, 1, 2, 2), "VALID")

    x = pool(conv(x, params["conv1_w"], params["conv1_b"]))
    x = pool(conv(x, params["conv2_w"], params["conv2_b"]))
    x = x.reshape(x.shape[0], -1)
    x = jax.nn.relu(x @ params["fc1_w"] + params["fc1_b"])
    x = jax.nn.relu(x @ params["fc2_w"] + params["fc2_b"])
    return x @ params["fc3_w"] + params["fc3_b"]


if __name__ == "__main__":
    key = jax.random.PRNGKey(0)
    k_param, k_x = jax.random.split(key)
    params = init_params(k_param)
    # LeNet/CIFAR-style input: the 16*5*5 flatten implies 32x32 spatial, 3 channels.
    x = jax.random.normal(k_x, (2, 3, 32, 32), dtype=jnp.float32)

    out = jax.jit(convnet_forward)(params, x)
    out = jax.block_until_ready(out)
    assert out.shape == (2, 10), out.shape

    ref = jax.block_until_ready(jax.jit(_reference_forward)(params, x))
    assert jnp.allclose(out, ref, rtol=2e-2, atol=2e-2), (out, ref)

    print("KERNEL_OK")
</pallas_src>

<mosaic_0001>
module attributes {stable_mosaic.version = 11 : i64} {
  func.func @_conv_relu_pool_kernel(%arg0: i32, %arg1: memref<32x640xf32, #tpu.memory_space<vmem>>, %arg2: memref<4x6x288xf32, #tpu.memory_space<vmem>>, %arg3: memref<6x1xf32, #tpu.memory_space<vmem>>, %arg4: memref<6x256xf32, #tpu.memory_space<vmem>>, %arg5: memref<288x256xf32, #tpu.memory_space<vmem>>) attributes {dimension_semantics = [#tpu.dimension_semantics<parallel>], iteration_bounds = array<i64: 2>, scalar_prefetch = 0 : i64, scratch_operands = 1 : i64, tpu.core_type = #tpu.core_type<tc>, window_params = [{pipeline_mode = #tpu.pipeline_mode<synchronous>, transform_indices = @transform_0, window_bounds = array<i64: 32, 640>}, {pipeline_mode = #tpu.pipeline_mode<synchronous>, transform_indices = @transform_1, window_bounds = array<i64: 4, 6, 288>}, {pipeline_mode = #tpu.pipeline_mode<synchronous>, transform_indices = @transform_2, window_bounds = array<i64: 6, 1>}, {transform_indices = @transform_3, window_bounds = array<i64: 6, 256>}]} {
    %c256_i32 = arith.constant 256 : i32
    %0 = arith.muli %arg0, %c256_i32 : i32
    %1 = tpu.assume_multiple %0, 128 : i32
    %c0 = arith.constant 0 : index
    %2 = arith.index_cast %1 : i32 to index
    %3 = vector.load %arg1[%c0, %2] : memref<32x640xf32, #tpu.memory_space<vmem>>, vector<8x384xf32>
    %4 = vector.extract_strided_slice %3 {offsets = [0, 0], sizes = [8, 256], strides = [1, 1]} : vector<8x384xf32> to vector<8x256xf32>
    %c0_0 = arith.constant 0 : index
    %c0_1 = arith.constant 0 : index
    %5 = vector.load %arg5[%c0_0, %c0_1] : memref<288x256xf32, #tpu.memory_space<vmem>>, vector<8x256xf32>
    tpu.vector_store %arg5[%c0_0, %c0_1], %4 {strides = array<i32>} : memref<288x256xf32, #tpu.memory_space<vmem>>, vector<8x256xf32>,
    %6 = vector.extract_strided_slice %3 {offsets = [0, 1], sizes = [8, 256], strides = [1, 1]} : vector<8x384xf32> to vector<8x256xf32>
    %c8 = arith.constant 8 : index
    %c0_2 = arith.constant 0 : index
    %7 = vector.load %arg5[%c8, %c0_2] : memref<288x256xf32, #tpu.memory_space<vmem>>, vector<8x256xf32>
    tpu.vector_store %arg5[%c8, %c0_2], %6 {strides = array<i32>} : memref<288x256xf32, #tpu.memory_space<vmem>>, vector<8x256xf32>,
    %8 = vector.extract_strided_slice %3 {offsets = [0, 2], sizes = [8, 256], strides = [1, 1]} : vector<8x384xf32> to vector<8x256xf32>
    %c16 = arith.constant 16 : index
    %c0_3 = arith.constant 0 : index
    %9 = vector.load %arg5[%c16, %c0_3] : memref<288x256xf32, #tpu.memory_space<vmem>>, vector<8x256xf32>
    tpu.vector_store %arg5[%c16, %c0_3], %8 {strides = array<i32>} : memref<288x256xf32, #tpu.memory_space<vmem>>, vector<8x256xf32>,
    %10 = vector.extract_strided_slice %3 {offsets = [0, 16], sizes = [8, 256], strides = [1, 1]} : vector<8x384xf32> to vector<8x256xf32>
    %c24 = arith.constant 24 : index
    %c0_4 = arith.constant 0 : index
    %11 = vector.load %arg5[%c24, %c0_4] : memref<288x256xf32, #tpu.memory_space<vmem>>, vector<8x256xf32>
    tpu.vector_store %arg5[%c24, %c0_4], %10 {strides = array<i32>} : memref<288x256xf32, #tpu.memory_space<vmem>>, vector<8x256xf32>,
    %12 = vector.extract_strided_slice %3 {offsets = [0, 17], sizes = [8, 256], strides = [1, 1]} : vector<8x384xf32> to vector<8x256xf32>
    %c32 = arith.constant 32 : index
    %c0_5 = arith.constant 0 : index
    %13 = vector.load %arg5[%c32, %c0_5] : memref<288x256xf32, #tpu.memory_space<vmem>>, vector<8x256xf32>
    tpu.vector_store %arg5[%c32, %c0_5], %12 {strides = array<i32>} : memref<288x256xf32, #tpu.memory_space<vmem>>, vector<8x256xf32>,
    %14 = vector.extract_strided_slice %3 {offsets = [0, 18], sizes = [8, 256], strides = [1, 1]} : vector<8x384xf32> to vector<8x256xf32>
    %c40 = arith.constant 40 : index
    %c0_6 = arith.constant 0 : index
    %15 = vector.load %arg5[%c40, %c0_6] : memref<288x256xf32, #tpu.memory_space<vmem>>, vector<8x256xf32>
    tpu.vector_store %arg5[%c40, %c0_6], %14 {strides = array<i32>} : memref<288x256xf32, #tpu.memory_space<vmem>>, vector<8x256xf32>,
    %16 = vector.extract_strided_slice %3 {offsets = [0, 32], sizes = [8, 256], strides = [1, 1]} : vector<8x384xf32> to vector<8x256xf32>
    %c48 = arith.constant 48 : index
    %c0_7 = arith.constant 0 : index
    %17 = vector.load %arg5[%c48, %c0_7] : memref<288x256xf32, #tpu.memory_space<vmem>>, vector<8x256xf32>
    tpu.vector_store %arg5[%c48, %c0_7], %16 {strides = array<i32>} : memref<288x256xf32, #tpu.memory_space<vmem>>, vector<8x256xf32>,
    %18 = vector.extract_strided_slice %3 {offsets = [0, 33], sizes = [8, 256], strides = [1, 1]} : vector<8x384xf32> to vector<8x256xf32>
    %c56 = arith.constant 56 : index
    %c0_8 = arith.constant 0 : index
    %19 = vector.load %arg5[%c56, %c0_8] : memref<288x256xf32, #tpu.memory_space<vmem>>, vector<8x256xf32>
    tpu.vector_store %arg5[%c56, %c0_8], %18 {strides = array<i32>} : memref<288x256xf32, #tpu.memory_space<vmem>>, vector<8x256xf32>,
    %20 = vector.extract_strided_slice %3 {offsets = [0, 34], sizes = [8, 256], strides = [1, 1]} : vector<8x384xf32> to vector<8x256xf32>
    %c64 = arith.constant 64 : index
    %c0_9 = arith.constant 0 : index
    %21 = vector.load %arg5[%c64, %c0_9] : memref<288x256xf32, #tpu.memory_space<vmem>>, vector<8x256xf32>
    tpu.vector_store %arg5[%c64, %c0_9], %20 {strides = array<i32>} : memref<288x256xf32, #tpu.memory_space<vmem>>, vector<8x256xf32>,
    %c8_10 = arith.constant 8 : index
    %22 = arith.index_cast %1 : i32 to index
    %23 = vector.load %arg1[%c8_10, %22] : memref<32x640xf32, #tpu.memory_space<vmem>>, vector<8x384xf32>
    %24 = vector.extract_strided_slice %23 {offsets = [0, 0], sizes = [8, 256], strides = [1, 1]} : vector<8x384xf32> to vector<8x256xf32>
    %c72 = arith.constant 72 : index
    %c0_11 = arith.constant 0 : index
    %25 = vector.load %arg5[%c72, %c0_11] : memref<288x256xf32, #tpu.memory_space<vmem>>, vector<8x256xf32>
    tpu.vector_store %arg5[%c72, %c0_11], %24 {strides = array<i32>} : memref<288x256xf32, #tpu.memory_space<vmem>>, vector<8x256xf32>,
    %26 = vector.extract_strided_slice %23 {offsets = [0, 1], sizes = [8, 256], strides = [1, 1]} : vector<8x384xf32> to vector<8x256xf32>
    %c80 = arith.constant 80 : index
    %c0_12 = arith.constant 0 : index
    %27 = vector.load %arg5[%c80, %c0_12] : memref<288x256xf32, #tpu.memory_space<vmem>>, vector<8x256xf32>
    tpu.vector_store %arg5[%c80, %c0_12], %26 {strides = array<i32>} : memref<288x256xf32, #tpu.memory_space<vmem>>, vector<8x256xf32>,
    %28 = vector.extract_strided_slice %23 {offsets = [0, 2], sizes = [8, 256], strides = [1, 1]} : vector<8x384xf32> to vector<8x256xf32>
    %c88 = arith.constant 88 : index
    %c0_13 = arith.constant 0 : index
    %29 = vector.load %arg5[%c88, %c0_13] : memref<288x256xf32, #tpu.memory_space<vmem>>, vector<8x256xf32>
    tpu.vector_store %arg5[%c88, %c0_13], %28 {strides = array<i32>} : memref<288x256xf32, #tpu.memory_space<vmem>>, vector<8x256xf32>,
    %30 = vector.extract_strided_slice %23 {offsets = [0, 16], sizes = [8, 256], strides = [1, 1]} : vector<8x384xf32> to vector<8x256xf32>
    %c96 = arith.constant 96 : index
    %c0_14 = arith.constant 0 : index
    %31 = vector.load %arg5[%c96, %c0_14] : memref<288x256xf32, #tpu.memory_space<vmem>>, vector<8x256xf32>
    tpu.vector_store %arg5[%c96, %c0_14], %30 {strides = array<i32>} : memref<288x256xf32, #tpu.memory_space<vmem>>, vector<8x256xf32>,
    %32 = vector.extract_strided_slice %23 {offsets = [0, 17], sizes = [8, 256], strides = [1, 1]} : vector<8x384xf32> to vector<8x256xf32>
    %c104 = arith.constant 104 : index
    %c0_15 = arith.constant 0 : index
    %33 = vector.load %arg5[%c104, %c0_15] : memref<288x256xf32, #tpu.memory_space<vmem>>, vector<8x256xf32>
    tpu.vector_store %arg5[%c104, %c0_15], %32 {strides = array<i32>} : memref<288x256xf32, #tpu.memory_space<vmem>>, vector<8x256xf32>,
    %34 = vector.extract_strided_slice %23 {offsets = [0, 18], sizes = [8, 256], strides = [1, 1]} : vector<8x384xf32> to vector<8x256xf32>
    %c112 = arith.constant 112 : index
    %c0_16 = arith.constant 0 : index
    %35 = vector.load %arg5[%c112, %c0_16] : memref<288x256xf32, #tpu.memory_space<vmem>>, vector<8x256xf32>
    tpu.vector_store %arg5[%c112, %c0_16], %34 {strides = array<i32>} : memref<288x256xf32, #tpu.memory_space<vmem>>, vector<8x256xf32>,
    %36 = vector.extract_strided_slice %23 {offsets = [0, 32], sizes = [8, 256], strides = [1, 1]} : vector<8x384xf32> to vector<8x256xf32>
    %c120 = arith.constant 120 : index
    %c0_17 = arith.constant 0 : index
    %37 = vector.load %arg5[%c120, %c0_17] : memref<288x256xf32, #tpu.memory_space<vmem>>, vector<8x256xf32>
    tpu.vector_store %arg5[%c120, %c0_17], %36 {strides = array<i32>} : memref<288x256xf32, #tpu.memory_space<vmem>>, vector<8x256xf32>,
    %38 = vector.extract_strided_slice %23 {offsets = [0, 33], sizes = [8, 256], strides = [1, 1]} : vector<8x384xf32> to vector<8x256xf32>
    %c128 = arith.constant 128 : index
    %c0_18 = arith.constant 0 : index
    %39 = vector.load %arg5[%c128, %c0_18] : memref<288x256xf32, #tpu.memory_space<vmem>>, vector<8x256xf32>
    tpu.vector_store %arg5[%c128, %c0_18], %38 {strides = array<i32>} : memref<288x256xf32, #tpu.memory_space<vmem>>, vector<8x256xf32>,
    %40 = vector.extract_strided_slice %23 {offsets = [0, 34], sizes = [8, 256], strides = [1, 1]} : vector<8x384xf32> to vector<8x256xf32>
    %c136 = arith.constant 136 : index
    %c0_19 = arith.constant 0 : index
    %41 = vector.load %arg5[%c136, %c0_19] : memref<288x256xf32, #tpu.memory_space<vmem>>, vector<8x256xf32>
    tpu.vector_store %arg5[%c136, %c0_19], %40 {strides = array<i32>} : memref<288x256xf32, #tpu.memory_space<vmem>>, vector<8x256xf32>,
    %c16_20 = arith.constant 16 : index
    %42 = arith.index_cast %1 : i32 to index
    %43 = vector.load %arg1[%c16_20, %42] : memref<32x640xf32, #tpu.memory_space<vmem>>, vector<8x384xf32>
    %44 = vector.extract_strided_slice %43 {offsets = [0, 0], sizes = [8, 256], strides = [1, 1]} : vector<8x384xf32> to vector<8x256xf32>
    %c144 = arith.constant 144 : index
    %c0_21 = arith.constant 0 : index
    %45 = vector.load %arg5[%c144, %c0_21] : memref<288x256xf32, #tpu.memory_space<vmem>>, vector<8x256xf32>
    tpu.vector_store %arg5[%c144, %c0_21], %44 {strides = array<i32>} : memref<288x256xf32, #tpu.memory_space<vmem>>, vector<8x256xf32>,
    %46 = vector.extract_strided_slice %43 {offsets = [0, 1], sizes = [8, 256], strides = [1, 1]} : vector<8x384xf32> to vector<8x256xf32>
    %c152 = arith.constant 152 : index
    %c0_22 = arith.constant 0 : index
    %47 = vector.load %arg5[%c152, %c0_22] : memref<288x256xf32, #tpu.memory_space<vmem>>, vector<8x256xf32>
    tpu.vector_store %arg5[%c152, %c0_22], %46 {strides = array<i32>} : memref<288x256xf32, #tpu.memory_space<vmem>>, vector<8x256xf32>,
    %48 = vector.extract_strided_slice %43 {offsets = [0, 2], sizes = [8, 256], strides = [1, 1]} : vector<8x384xf32> to vector<8x256xf32>
    %c160 = arith.constant 160 : index
    %c0_23 = arith.constant 0 : index
    %49 = vector.load %arg5[%c160, %c0_23] : memref<288x256xf32, #tpu.memory_space<vmem>>, vector<8x256xf32>
    tpu.vector_store %arg5[%c160, %c0_23], %48 {strides = array<i32>} : memref<288x256xf32, #tpu.memory_space<vmem>>, vector<8x256xf32>,
    %50 = vector.extract_strided_slice %43 {offsets = [0, 16], sizes = [8, 256], strides = [1, 1]} : vector<8x384xf32> to vector<8x256xf32>
    %c168 = arith.constant 168 : index
    %c0_24 = arith.constant 0 : index
    %51 = vector.load %arg5[%c168, %c0_24] : memref<288x256xf32, #tpu.memory_space<vmem>>, vector<8x256xf32>
    tpu.vector_store %arg5[%c168, %c0_24], %50 {strides = array<i32>} : memref<288x256xf32, #tpu.memory_space<vmem>>, vector<8x256xf32>,
    %52 = vector.extract_strided_slice %43 {offsets = [0, 17], sizes = [8, 256], strides = [1, 1]} : vector<8x384xf32> to vector<8x256xf32>
    %c176 = arith.constant 176 : index
    %c0_25 = arith.constant 0 : index
    %53 = vector.load %arg5[%c176, %c0_25] : memref<288x256xf32, #tpu.memory_space<vmem>>, vector<8x256xf32>
    tpu.vector_store %arg5[%c176, %c0_25], %52 {strides = array<i32>} : memref<288x256xf32, #tpu.memory_space<vmem>>, vector<8x256xf32>,
    %54 = vector.extract_strided_slice %43 {offsets = [0, 18], sizes = [8, 256], strides = [1, 1]} : vector<8x384xf32> to vector<8x256xf32>
    %c184 = arith.constant 184 : index
    %c0_26 = arith.constant 0 : index
    %55 = vector.load %arg5[%c184, %c0_26] : memref<288x256xf32, #tpu.memory_space<vmem>>, vector<8x256xf32>
    tpu.vector_store %arg5[%c184, %c0_26], %54 {strides = array<i32>} : memref<288x256xf32, #tpu.memory_space<vmem>>, vector<8x256xf32>,
    %56 = vector.extract_strided_slice %43 {offsets = [0, 32], sizes = [8, 256], strides = [1, 1]} : vector<8x384xf32> to vector<8x256xf32>
    %c192 = arith.constant 192 : index
    %c0_27 = arith.constant 0 : index
    %57 = vector.load %arg5[%c192, %c0_27] : memref<288x256xf32, #tpu.memory_space<vmem>>, vector<8x256xf32>
    tpu.vector_store %arg5[%c192, %c0_27], %56 {strides = array<i32>} : memref<288x256xf32, #tpu.memory_space<vmem>>, vector<8x256xf32>,
    %58 = vector.extract_strided_slice %43 {offsets = [0, 33], sizes = [8, 256], strides = [1, 1]} : vector<8x384xf32> to vector<8x256xf32>
    %c200 = arith.constant 200 : index
    %c0_28 = arith.constant 0 : index
    %59 = vector.load %arg5[%c200, %c0_28] : memref<288x256xf32, #tpu.memory_space<vmem>>, vector<8x256xf32>
    tpu.vector_store %arg5[%c200, %c0_28], %58 {strides = array<i32>} : memref<288x256xf32, #tpu.memory_space<vmem>>, vector<8x256xf32>,
    %60 = vector.extract_strided_slice %43 {offsets = [0, 34], sizes = [8, 256], strides = [1, 1]} : vector<8x384xf32> to vector<8x256xf32>
    %c208 = arith.constant 208 : index
    %c0_29 = arith.constant 0 : index
    %61 = vector.load %arg5[%c208, %c0_29] : memref<288x256xf32, #tpu.memory_space<vmem>>, vector<8x256xf32>
    tpu.vector_store %arg5[%c208, %c0_29], %60 {strides = array<i32>} : memref<288x256xf32, #tpu.memory_space<vmem>>, vector<8x256xf32>,
    %c24_30 = arith.constant 24 : index
    %62 = arith.index_cast %1 : i32 to index
    %63 = vector.load %arg1[%c24_30, %62] : memref<32x640xf32, #tpu.memory_space<vmem>>, vector<8x384xf32>
    %64 = vector.extract_strided_slice %63 {offsets = [0, 0], sizes = [8, 256], strides = [1, 1]} : vector<8x384xf32> to vector<8x256xf32>
    %c216 = arith.constant 216 : index
    %c0_31 = arith.constant 0 : index
    %65 = vector.load %arg5[%c216, %c0_31] : memref<288x256xf32, #tpu.memory_space<vmem>>, vector<8x256xf32>
    tpu.vector_store %arg5[%c216, %c0_31], %64 {strides = array<i32>} : memref<288x256xf32, #tpu.memory_space<vmem>>, vector<8x256xf32>,
    %66 = vector.extract_strided_slice %63 {offsets = [0, 1], sizes = [8, 256], strides = [1, 1]} : vector<8x384xf32> to vector<8x256xf32>
    %c224 = arith.constant 224 : index
    %c0_32 = arith.constant 0 : index
    %67 = vector.load %arg5[%c224, %c0_32] : memref<288x256xf32, #tpu.memory_space<vmem>>, vector<8x256xf32>
    tpu.vector_store %arg5[%c224, %c0_32], %66 {strides = array<i32>} : memref<288x256xf32, #tpu.memory_space<vmem>>, vector<8x256xf32>,
    %68 = vector.extract_strided_slice %63 {offsets = [0, 2], sizes = [8, 256], strides = [1, 1]} : vector<8x384xf32> to vector<8x256xf32>
    %c232 = arith.constant 232 : index
    %c0_33 = arith.constant 0 : index
    %69 = vector.load %arg5[%c232, %c0_33] : memref<288x256xf32, #tpu.memory_space<vmem>>, vector<8x256xf32>
    tpu.vector_store %arg5[%c232, %c0_33], %68 {strides = array<i32>} : memref<288x256xf32, #tpu.memory_space<vmem>>, vector<8x256xf32>,
    %70 = vector.extract_strided_slice %63 {offsets = [0, 16], sizes = [8, 256], strides = [1, 1]} : vector<8x384xf32> to vector<8x256xf32>
    %c240 = arith.constant 240 : index
    %c0_34 = arith.constant 0 : index
    %71 = vector.load %arg5[%c240, %c0_34] : memref<288x256xf32, #tpu.memory_space<vmem>>, vector<8x256xf32>
    tpu.vector_store %arg5[%c240, %c0_34], %70 {strides = array<i32>} : memref<288x256xf32, #tpu.memory_space<vmem>>, vector<8x256xf32>,
    %72 = vector.extract_strided_slice %63 {offsets = [0, 17], sizes = [8, 256], strides = [1, 1]} : vector<8x384xf32> to vector<8x256xf32>
    %c248 = arith.constant 248 : index
    %c0_35 = arith.constant 0 : index
    %73 = vector.load %arg5[%c248, %c0_35] : memref<288x256xf32, #tpu.memory_space<vmem>>, vector<8x256xf32>
    tpu.vector_store %arg5[%c248, %c0_35], %72 {strides = array<i32>} : memref<288x256xf32, #tpu.memory_space<vmem>>, vector<8x256xf32>,
    %74 = vector.extract_strided_slice %63 {offsets = [0, 18], sizes = [8, 256], strides = [1, 1]} : vector<8x384xf32> to vector<8x256xf32>
    %c256 = arith.constant 256 : index
    %c0_36 = arith.constant 0 : index
    %75 = vector.load %arg5[%c256, %c0_36] : memref<288x256xf32, #tpu.memory_space<vmem>>, vector<8x256xf32>
    tpu.vector_store %arg5[%c256, %c0_36], %74 {strides = array<i32>} : memref<288x256xf32, #tpu.memory_space<vmem>>, vector<8x256xf32>,
    %76 = vector.extract_strided_slice %63 {offsets = [0, 32], sizes = [8, 256], strides = [1, 1]} : vector<8x384xf32> to vector<8x256xf32>
    %c264 = arith.constant 264 : index
    %c0_37 = arith.constant 0 : index
    %77 = vector.load %arg5[%c264, %c0_37] : memref<288x256xf32, #tpu.memory_space<vmem>>, vector<8x256xf32>
    tpu.vector_store %arg5[%c264, %c0_37], %76 {strides = array<i32>} : memref<288x256xf32, #tpu.memory_space<vmem>>, vector<8x256xf32>,
    %78 = vector.extract_strided_slice %63 {offsets = [0, 33], sizes = [8, 256], strides = [1, 1]} : vector<8x384xf32> to vector<8x256xf32>
    %c272 = arith.constant 272 : index
    %c0_38 = arith.constant 0 : index
    %79 = vector.load %arg5[%c272, %c0_38] : memref<288x256xf32, #tpu.memory_space<vmem>>, vector<8x256xf32>
    tpu.vector_store %arg5[%c272, %c0_38], %78 {strides = array<i32>} : memref<288x256xf32, #tpu.memory_space<vmem>>, vector<8x256xf32>,
    %80 = vector.extract_strided_slice %63 {offsets = [0, 34], sizes = [8, 256], strides = [1, 1]} : vector<8x384xf32> to vector<8x256xf32>
    %c280 = arith.constant 280 : index
    %c0_39 = arith.constant 0 : index
    %81 = vector.load %arg5[%c280, %c0_39] : memref<288x256xf32, #tpu.memory_space<vmem>>, vector<8x256xf32>
    tpu.vector_store %arg5[%c280, %c0_39], %80 {strides = array<i32>} : memref<288x256xf32, #tpu.memory_space<vmem>>, vector<8x256xf32>,
    %c0_40 = arith.constant 0 : index
    %c0_41 = arith.constant 0 : index
    %82 = vector.load %arg5[%c0_40, %c0_41] : memref<288x256xf32, #tpu.memory_space<vmem>>, vector<288x256xf32>
    %c0_42 = arith.constant 0 : index
    %c0_43 = arith.constant 0 : index
    %c0_44 = arith.constant 0 : index
    %83 = vector.load %arg2[%c0_42, %c0_43, %c0_44] : memref<4x6x288xf32, #tpu.memory_space<vmem>>, vector<1x6x288xf32>
    %84 = vector.shape_cast %83 : vector<1x6x288xf32> to vector<6x288xf32>
    %cst = arith.constant dense<0.000000e+00> : vector<6x256xf32>
    %85 = tpu.matmul %84, %82, %cst {dimension_numbers = #tpu.dot_dimension_numbers<[1], [0], [0], [1], [0, 0, 1, 1], [], []>} : vector<6x288xf32>, vector<288x256xf32>, vector<6x256xf32> -> vector<6x256xf32>
    %c1 = arith.constant 1 : index
    %c0_45 = arith.constant 0 : index
    %c0_46 = arith.constant 0 : index
    %86 = vector.load %arg2[%c1, %c0_45, %c0_46] : memref<4x6x288xf32, #tpu.memory_space<vmem>>, vector<1x6x288xf32>
    %87 = vector.shape_cast %86 : vector<1x6x288xf32> to vector<6x288xf32>
    %cst_47 = arith.constant dense<0.000000e+00> : vector<6x256xf32>
    %88 = tpu.matmul %87, %82, %cst_47 {dimension_numbers = #tpu.dot_dimension_numbers<[1], [0], [0], [1], [0, 0, 1, 1], [], []>} : vector<6x288xf32>, vector<288x256xf32>, vector<6x256xf32> -> vector<6x256xf32>
    %89 = arith.maximumf %85, %88 : vector<6x256xf32>
    %c2 = arith.constant 2 : index
    %c0_48 = arith.constant 0 : index
    %c0_49 = arith.constant 0 : index
    %90 = vector.load %arg2[%c2, %c0_48, %c0_49] : memref<4x6x288xf32, #tpu.memory_space<vmem>>, vector<1x6x288xf32>
    %91 = vector.shape_cast %90 : vector<1x6x288xf32> to vector<6x288xf32>
    %cst_50 = arith.constant dense<0.000000e+00> : vector<6x256xf32>
    %92 = tpu.matmul %91, %82, %cst_50 {dimension_numbers = #tpu.dot_dimension_numbers<[1], [0], [0], [1], [0, 0, 1, 1], [], []>} : vector<6x288xf32>, vector<288x256xf32>, vector<6x256xf32> -> vector<6x256xf32>
    %93 = arith.maximumf %89, %92 : vector<6x256xf32>
    %c3 = arith.constant 3 : index
    %c0_51 = arith.constant 0 : index
    %c0_52 = arith.constant 0 : index
    %94 = vector.load %arg2[%c3, %c0_51, %c0_52] : memref<4x6x288xf32, #tpu.memory_space<vmem>>, vector<1x6x288xf32>
    %95 = vector.shape_cast %94 : vector<1x6x288xf32> to vector<6x288xf32>
    %cst_53 = arith.constant dense<0.000000e+00> : vector<6x256xf32>
    %96 = tpu.matmul %95, %82, %cst_53 {dimension_numbers = #tpu.dot_dimension_numbers<[1], [0], [0], [1], [0, 0, 1, 1], [], []>} : vector<6x288xf32>, vector<288x256xf32>, vector<6x256xf32> -> vector<6x256xf32>
    %97 = arith.maximumf %93, %96 : vector<6x256xf32>
    %c0_54 = arith.constant 0 : index
    %c0_55 = arith.constant 0 : index
    %98 = vector.load %arg3[%c0_54, %c0_55] : memref<6x1xf32, #tpu.memory_space<vmem>>, vector<6x1xf32>
    %99 = vector.broadcast %98 : vector<6x1xf32> to vector<6x256xf32>
    %100 = arith.addf %97, %99 : vector<6x256xf32>
    %cst_56 = arith.constant 0.000000e+00 : f32
    %101 = vector.broadcast %cst_56 : f32 to vector<6x256xf32>
    %102 = arith.maximumf %100, %101 : vector<6x256xf32>
    %c0_57 = arith.constant 0 : index
    %c0_58 = arith.constant 0 : index
    %103 = vector.load %arg4[%c0_57, %c0_58] : memref<6x256xf32, #tpu.memory_space<vmem>>, vector<6x256xf32>
    tpu.vector_store %arg4[%c0_57, %c0_58], %102 {strides = array<i32>} : memref<6x256xf32, #tpu.memory_space<vmem>>, vector<6x256xf32>,
    return
  }
  func.func @transform_0(%arg0: i32) -> (i32, i32) {
    %c0_i32 = arith.constant 0 : i32
    %c0_i32_0 = arith.constant 0 : i32
    %c0_i32_1 = arith.constant 0 : i32
    return %c0_i32, %c0_i32_0 : i32, i32
  }
  func.func @transform_1(%arg0: i32) -> (i32, i32, i32) {
    %c0_i32 = arith.constant 0 : i32
    %c0_i32_0 = arith.constant 0 : i32
    %c0_i32_1 = arith.constant 0 : i32
    %c0_i32_2 = arith.constant 0 : i32
    return %c0_i32, %c0_i32_0, %c0_i32_1 : i32, i32, i32
  }
  func.func @transform_2(%arg0: i32) -> (i32, i32) {
    %c0_i32 = arith.constant 0 : i32
    %c0_i32_0 = arith.constant 0 : i32
    %c0_i32_1 = arith.constant 0 : i32
    return %c0_i32, %c0_i32_0 : i32, i32
  }
  func.func @transform_3(%arg0: i32) -> (i32, i32) {
    %c0_i32 = arith.constant 0 : i32
    %c0_i32_0 = arith.constant 0 : i32
    return %c0_i32, %arg0 : i32, i32
  }
}

module attributes {stable_mosaic.version = 11 : i64} {
  func.func @_conv_relu_pool_kernel(%arg0: i32, %arg1: memref<32x256xf32, #tpu.memory_space<vmem>>, %arg2: memref<4x16x288xf32, #tpu.memory_space<vmem>>, %arg3: memref<16x1xf32, #tpu.memory_space<vmem>>, %arg4: memref<16x128xf32, #tpu.memory_space<vmem>>, %arg5: memref<288x128xf32, #tpu.memory_space<vmem>>) attributes {dimension_semantics = [#tpu.dimension_semantics<parallel>], iteration_bounds = array<i64: 1>, scalar_prefetch = 0 : i64, scratch_operands = 1 : i64, tpu.core_type = #tpu.core_type<tc>, window_params = [{pipeline_mode = #tpu.pipeline_mode<synchronous>, transform_indices = @transform_0, window_bounds = array<i64: 32, 256>}, {pipeline_mode = #tpu.pipeline_mode<synchronous>, transform_indices = @transform_1, window_bounds = array<i64: 4, 16, 288>}, {pipeline_mode = #tpu.pipeline_mode<synchronous>, transform_indices = @transform_2, window_bounds = array<i64: 16, 1>}, {transform_indices = @transform_3, window_bounds = array<i64: 16, 128>}]} {
    %c128_i32 = arith.constant 128 : i32
    %0 = arith.muli %arg0, %c128_i32 : i32
    %1 = tpu.assume_multiple %0, 128 : i32
    %c0 = arith.constant 0 : index
    %2 = arith.index_cast %1 : i32 to index
    %3 = vector.load %arg1[%c0, %2] : memref<32x256xf32, #tpu.memory_space<vmem>>, vector<8x256xf32>
    %4 = vector.extract_strided_slice %3 {offsets = [0, 0], sizes = [8, 128], strides = [1, 1]} : vector<8x256xf32> to vector<8x128xf32>
    %c0_0 = arith.constant 0 : index
    %c0_1 = arith.constant 0 : index
    %5 = vector.load %arg5[%c0_0, %c0_1] : memref<288x128xf32, #tpu.memory_space<vmem>>, vector<8x128xf32>
    tpu.vector_store %arg5[%c0_0, %c0_1], %4 {strides = array<i32>} : memref<288x128xf32, #tpu.memory_space<vmem>>, vector<8x128xf32>,
    %6 = vector.extract_strided_slice %3 {offsets = [0, 1], sizes = [8, 128], strides = [1, 1]} : vector<8x256xf32> to vector<8x128xf32>
    %c8 = arith.constant 8 : index
    %c0_2 = arith.constant 0 : index
    %7 = vector.load %arg5[%c8, %c0_2] : memref<288x128xf32, #tpu.memory_space<vmem>>, vector<8x128xf32>
    tpu.vector_store %arg5[%c8, %c0_2], %6 {strides = array<i32>} : memref<288x128xf32, #tpu.memory_space<vmem>>, vector<8x128xf32>,
    %8 = vector.extract_strided_slice %3 {offsets = [0, 2], sizes = [8, 128], strides = [1, 1]} : vector<8x256xf32> to vector<8x128xf32>
    %c16 = arith.constant 16 : index
    %c0_3 = arith.constant 0 : index
    %9 = vector.load %arg5[%c16, %c0_3] : memref<288x128xf32, #tpu.memory_space<vmem>>, vector<8x128xf32>
    tpu.vector_store %arg5[%c16, %c0_3], %8 {strides = array<i32>} : memref<288x128xf32, #tpu.memory_space<vmem>>, vector<8x128xf32>,
    %10 = vector.extract_strided_slice %3 {offsets = [0, 7], sizes = [8, 128], strides = [1, 1]} : vector<8x256xf32> to vector<8x128xf32>
    %c24 = arith.constant 24 : index
    %c0_4 = arith.constant 0 : index
    %11 = vector.load %arg5[%c24, %c0_4] : memref<288x128xf32, #tpu.memory_space<vmem>>, vector<8x128xf32>
    tpu.vector_store %arg5[%c24, %c0_4], %10 {strides = array<i32>} : memref<288x128xf32, #tpu.memory_space<vmem>>, vector<8x128xf32>,
    %12 = vector.extract_strided_slice %3 {offsets = [0, 8], sizes = [8, 128], strides = [1, 1]} : vector<8x256xf32> to vector<8x128xf32>
    %c32 = arith.constant 32 : index
    %c0_5 = arith.constant 0 : index
    %13 = vector.load %arg5[%c32, %c0_5] : memref<288x128xf32, #tpu.memory_space<vmem>>, vector<8x128xf32>
    tpu.vector_store %arg5[%c32, %c0_5], %12 {strides = array<i32>} : memref<288x128xf32, #tpu.memory_space<vmem>>, vector<8x128xf32>,
    %14 = vector.extract_strided_slice %3 {offsets = [0, 9], sizes = [8, 128], strides = [1, 1]} : vector<8x256xf32> to vector<8x128xf32>
    %c40 = arith.constant 40 : index
    %c0_6 = arith.constant 0 : index
    %15 = vector.load %arg5[%c40, %c0_6] : memref<288x128xf32, #tpu.memory_space<vmem>>, vector<8x128xf32>
    tpu.vector_store %arg5[%c40, %c0_6], %14 {strides = array<i32>} : memref<288x128xf32, #tpu.memory_space<vmem>>, vector<8x128xf32>,
    %16 = vector.extract_strided_slice %3 {offsets = [0, 14], sizes = [8, 128], strides = [1, 1]} : vector<8x256xf32> to vector<8x128xf32>
    %c48 = arith.constant 48 : index
    %c0_7 = arith.constant 0 : index
    %17 = vector.load %arg5[%c48, %c0_7] : memref<288x128xf32, #tpu.memory_space<vmem>>, vector<8x128xf32>
    tpu.vector_store %arg5[%c48, %c0_7], %16 {strides = array<i32>} : memref<288x128xf32, #tpu.memory_space<vmem>>, vector<8x128xf32>,
    %18 = vector.extract_strided_slice %3 {offsets = [0, 15], sizes = [8, 128], strides = [1, 1]} : vector<8x256xf32> to vector<8x128xf32>
    %c56 = arith.constant 56 : index
    %c0_8 = arith.constant 0 : index
    %19 = vector.load %arg5[%c56, %c0_8] : memref<288x128xf32, #tpu.memory_space<vmem>>, vector<8x128xf32>
    tpu.vector_store %arg5[%c56, %c0_8], %18 {strides = array<i32>} : memref<288x128xf32, #tpu.memory_space<vmem>>, vector<8x128xf32>,
    %20 = vector.extract_strided_slice %3 {offsets = [0, 16], sizes = [8, 128], strides = [1, 1]} : vector<8x256xf32> to vector<8x128xf32>
    %c64 = arith.constant 64 : index
    %c0_9 = arith.constant 0 : index
    %21 = vector.load %arg5[%c64, %c0_9] : memref<288x128xf32, #tpu.memory_space<vmem>>, vector<8x128xf32>
    tpu.vector_store %arg5[%c64, %c0_9], %20 {strides = array<i32>} : memref<288x128xf32, #tpu.memory_space<vmem>>, vector<8x128xf32>,
    %c8_10 = arith.constant 8 : index
    %22 = arith.index_cast %1 : i32 to index
    %23 = vector.load %arg1[%c8_10, %22] : memref<32x256xf32, #tpu.memory_space<vmem>>, vector<8x256xf32>
    %24 = vector.extract_strided_slice %23 {offsets = [0, 0], sizes = [8, 128], strides = [1, 1]} : vector<8x256xf32> to vector<8x128xf32>
    %c72 = arith.constant 72 : index
    %c0_11 = arith.constant 0 : index
    %25 = vector.load %arg5[%c72, %c0_11] : memref<288x128xf32, #tpu.memory_space<vmem>>, vector<8x128xf32>
    tpu.vector_store %arg5[%c72, %c0_11], %24 {strides = array<i32>} : memref<288x128xf32, #tpu.memory_space<vmem>>, vector<8x128xf32>,
    %26 = vector.extract_strided_slice %23 {offsets = [0, 1], sizes = [8, 128], strides = [1, 1]} : vector<8x256xf32> to vector<8x128xf32>
    %c80 = arith.constant 80 : index
    %c0_12 = arith.constant 0 : index
    %27 = vector.load %arg5[%c80, %c0_12] : memref<288x128xf32, #tpu.memory_space<vmem>>, vector<8x128xf32>
    tpu.vector_store %arg5[%c80, %c0_12], %26 {strides = array<i32>} : memref<288x128xf32, #tpu.memory_space<vmem>>, vector<8x128xf32>,
    %28 = vector.extract_strided_slice %23 {offsets = [0, 2], sizes = [8, 128], strides = [1, 1]} : vector<8x256xf32> to vector<8x128xf32>
    %c88 = arith.constant 88 : index
    %c0_13 = arith.constant 0 : index
    %29 = vector.load %arg5[%c88, %c0_13] : memref<288x128xf32, #tpu.memory_space<vmem>>, vector<8x128xf32>
    tpu.vector_store %arg5[%c88, %c0_13], %28 {strides = array<i32>} : memref<288x128xf32, #tpu.memory_space<vmem>>, vector<8x128xf32>,
    %30 = vector.extract_strided_slice %23 {offsets = [0, 7], sizes = [8, 128], strides = [1, 1]} : vector<8x256xf32> to vector<8x128xf32>
    %c96 = arith.constant 96 : index
    %c0_14 = arith.constant 0 : index
    %31 = vector.load %arg5[%c96, %c0_14] : memref<288x128xf32, #tpu.memory_space<vmem>>, vector<8x128xf32>
    tpu.vector_store %arg5[%c96, %c0_14], %30 {strides = array<i32>} : memref<288x128xf32, #tpu.memory_space<vmem>>, vector<8x128xf32>,
    %32 = vector.extract_strided_slice %23 {offsets = [0, 8], sizes = [8, 128], strides = [1, 1]} : vector<8x256xf32> to vector<8x128xf32>
    %c104 = arith.constant 104 : index
    %c0_15 = arith.constant 0 : index
    %33 = vector.load %arg5[%c104, %c0_15] : memref<288x128xf32, #tpu.memory_space<vmem>>, vector<8x128xf32>
    tpu.vector_store %arg5[%c104, %c0_15], %32 {strides = array<i32>} : memref<288x128xf32, #tpu.memory_space<vmem>>, vector<8x128xf32>,
    %34 = vector.extract_strided_slice %23 {offsets = [0, 9], sizes = [8, 128], strides = [1, 1]} : vector<8x256xf32> to vector<8x128xf32>
    %c112 = arith.constant 112 : index
    %c0_16 = arith.constant 0 : index
    %35 = vector.load %arg5[%c112, %c0_16] : memref<288x128xf32, #tpu.memory_space<vmem>>, vector<8x128xf32>
    tpu.vector_store %arg5[%c112, %c0_16], %34 {strides = array<i32>} : memref<288x128xf32, #tpu.memory_space<vmem>>, vector<8x128xf32>,
    %36 = vector.extract_strided_slice %23 {offsets = [0, 14], sizes = [8, 128], strides = [1, 1]} : vector<8x256xf32> to vector<8x128xf32>
    %c120 = arith.constant 120 : index
    %c0_17 = arith.constant 0 : index
    %37 = vector.load %arg5[%c120, %c0_17] : memref<288x128xf32, #tpu.memory_space<vmem>>, vector<8x128xf32>
    tpu.vector_store %arg5[%c120, %c0_17], %36 {strides = array<i32>} : memref<288x128xf32, #tpu.memory_space<vmem>>, vector<8x128xf32>,
    %38 = vector.extract_strided_slice %23 {offsets = [0, 15], sizes = [8, 128], strides = [1, 1]} : vector<8x256xf32> to vector<8x128xf32>
    %c128 = arith.constant 128 : index
    %c0_18 = arith.constant 0 : index
    %39 = vector.load %arg5[%c128, %c0_18] : memref<288x128xf32, #tpu.memory_space<vmem>>, vector<8x128xf32>
    tpu.vector_store %arg5[%c128, %c0_18], %38 {strides = array<i32>} : memref<288x128xf32, #tpu.memory_space<vmem>>, vector<8x128xf32>,
    %40 = vector.extract_strided_slice %23 {offsets = [0, 16], sizes = [8, 128], strides = [1, 1]} : vector<8x256xf32> to vector<8x128xf32>
    %c136 = arith.constant 136 : index
    %c0_19 = arith.constant 0 : index
    %41 = vector.load %arg5[%c136, %c0_19] : memref<288x128xf32, #tpu.memory_space<vmem>>, vector<8x128xf32>
    tpu.vector_store %arg5[%c136, %c0_19], %40 {strides = array<i32>} : memref<288x128xf32, #tpu.memory_space<vmem>>, vector<8x128xf32>,
    %c16_20 = arith.constant 16 : index
    %42 = arith.index_cast %1 : i32 to index
    %43 = vector.load %arg1[%c16_20, %42] : memref<32x256xf32, #tpu.memory_space<vmem>>, vector<8x256xf32>
    %44 = vector.extract_strided_slice %43 {offsets = [0, 0], sizes = [8, 128], strides = [1, 1]} : vector<8x256xf32> to vector<8x128xf32>
    %c144 = arith.constant 144 : index
    %c0_21 = arith.constant 0 : index
    %45 = vector.load %arg5[%c144, %c0_21] : memref<288x128xf32, #tpu.memory_space<vmem>>, vector<8x128xf32>
    tpu.vector_store %arg5[%c144, %c0_21], %44 {strides = array<i32>} : memref<288x128xf32, #tpu.memory_space<vmem>>, vector<8x128xf32>,
    %46 = vector.extract_strided_slice %43 {offsets = [0, 1], sizes = [8, 128], strides = [1, 1]} : vector<8x256xf32> to vector<8x128xf32>
    %c152 = arith.constant 152 : index
    %c0_22 = arith.constant 0 : index
    %47 = vector.load %arg5[%c152, %c0_22] : memref<288x128xf32, #tpu.memory_space<vmem>>, vector<8x128xf32>
    tpu.vector_store %arg5[%c152, %c0_22], %46 {strides = array<i32>} : memref<288x128xf32, #tpu.memory_space<vmem>>, vector<8x128xf32>,
    %48 = vector.extract_strided_slice %43 {offsets = [0, 2], sizes = [8, 128], strides = [1, 1]} : vector<8x256xf32> to vector<8x128xf32>
    %c160 = arith.constant 160 : index
    %c0_23 = arith.constant 0 : index
    %49 = vector.load %arg5[%c160, %c0_23] : memref<288x128xf32, #tpu.memory_space<vmem>>, vector<8x128xf32>
    tpu.vector_store %arg5[%c160, %c0_23], %48 {strides = array<i32>} : memref<288x128xf32, #tpu.memory_space<vmem>>, vector<8x128xf32>,
    %50 = vector.extract_strided_slice %43 {offsets = [0, 7], sizes = [8, 128], strides = [1, 1]} : vector<8x256xf32> to vector<8x128xf32>
    %c168 = arith.constant 168 : index
    %c0_24 = arith.constant 0 : index
    %51 = vector.load %arg5[%c168, %c0_24] : memref<288x128xf32, #tpu.memory_space<vmem>>, vector<8x128xf32>
    tpu.vector_store %arg5[%c168, %c0_24], %50 {strides = array<i32>} : memref<288x128xf32, #tpu.memory_space<vmem>>, vector<8x128xf32>,
    %52 = vector.extract_strided_slice %43 {offsets = [0, 8], sizes = [8, 128], strides = [1, 1]} : vector<8x256xf32> to vector<8x128xf32>
    %c176 = arith.constant 176 : index
    %c0_25 = arith.constant 0 : index
    %53 = vector.load %arg5[%c176, %c0_25] : memref<288x128xf32, #tpu.memory_space<vmem>>, vector<8x128xf32>
    tpu.vector_store %arg5[%c176, %c0_25], %52 {strides = array<i32>} : memref<288x128xf32, #tpu.memory_space<vmem>>, vector<8x128xf32>,
    %54 = vector.extract_strided_slice %43 {offsets = [0, 9], sizes = [8, 128], strides = [1, 1]} : vector<8x256xf32> to vector<8x128xf32>
    %c184 = arith.constant 184 : index
    %c0_26 = arith.constant 0 : index
    %55 = vector.load %arg5[%c184, %c0_26] : memref<288x128xf32, #tpu.memory_space<vmem>>, vector<8x128xf32>
    tpu.vector_store %arg5[%c184, %c0_26], %54 {strides = array<i32>} : memref<288x128xf32, #tpu.memory_space<vmem>>, vector<8x128xf32>,
    %56 = vector.extract_strided_slice %43 {offsets = [0, 14], sizes = [8, 128], strides = [1, 1]} : vector<8x256xf32> to vector<8x128xf32>
    %c192 = arith.constant 192 : index
    %c0_27 = arith.constant 0 : index
    %57 = vector.load %arg5[%c192, %c0_27] : memref<288x128xf32, #tpu.memory_space<vmem>>, vector<8x128xf32>
    tpu.vector_store %arg5[%c192, %c0_27], %56 {strides = array<i32>} : memref<288x128xf32, #tpu.memory_space<vmem>>, vector<8x128xf32>,
    %58 = vector.extract_strided_slice %43 {offsets = [0, 15], sizes = [8, 128], strides = [1, 1]} : vector<8x256xf32> to vector<8x128xf32>
    %c200 = arith.constant 200 : index
    %c0_28 = arith.constant 0 : index
    %59 = vector.load %arg5[%c200, %c0_28] : memref<288x128xf32, #tpu.memory_space<vmem>>, vector<8x128xf32>
    tpu.vector_store %arg5[%c200, %c0_28], %58 {strides = array<i32>} : memref<288x128xf32, #tpu.memory_space<vmem>>, vector<8x128xf32>,
    %60 = vector.extract_strided_slice %43 {offsets = [0, 16], sizes = [8, 128], strides = [1, 1]} : vector<8x256xf32> to vector<8x128xf32>
    %c208 = arith.constant 208 : index
    %c0_29 = arith.constant 0 : index
    %61 = vector.load %arg5[%c208, %c0_29] : memref<288x128xf32, #tpu.memory_space<vmem>>, vector<8x128xf32>
    tpu.vector_store %arg5[%c208, %c0_29], %60 {strides = array<i32>} : memref<288x128xf32, #tpu.memory_space<vmem>>, vector<8x128xf32>,
    %c24_30 = arith.constant 24 : index
    %62 = arith.index_cast %1 : i32 to index
    %63 = vector.load %arg1[%c24_30, %62] : memref<32x256xf32, #tpu.memory_space<vmem>>, vector<8x256xf32>
    %64 = vector.extract_strided_slice %63 {offsets = [0, 0], sizes = [8, 128], strides = [1, 1]} : vector<8x256xf32> to vector<8x128xf32>
    %c216 = arith.constant 216 : index
    %c0_31 = arith.constant 0 : index
    %65 = vector.load %arg5[%c216, %c0_31] : memref<288x128xf32, #tpu.memory_space<vmem>>, vector<8x128xf32>
    tpu.vector_store %arg5[%c216, %c0_31], %64 {strides = array<i32>} : memref<288x128xf32, #tpu.memory_space<vmem>>, vector<8x128xf32>,
    %66 = vector.extract_strided_slice %63 {offsets = [0, 1], sizes = [8, 128], strides = [1, 1]} : vector<8x256xf32> to vector<8x128xf32>
    %c224 = arith.constant 224 : index
    %c0_32 = arith.constant 0 : index
    %67 = vector.load %arg5[%c224, %c0_32] : memref<288x128xf32, #tpu.memory_space<vmem>>, vector<8x128xf32>
    tpu.vector_store %arg5[%c224, %c0_32], %66 {strides = array<i32>} : memref<288x128xf32, #tpu.memory_space<vmem>>, vector<8x128xf32>,
    %68 = vector.extract_strided_slice %63 {offsets = [0, 2], sizes = [8, 128], strides = [1, 1]} : vector<8x256xf32> to vector<8x128xf32>
    %c232 = arith.constant 232 : index
    %c0_33 = arith.constant 0 : index
    %69 = vector.load %arg5[%c232, %c0_33] : memref<288x128xf32, #tpu.memory_space<vmem>>, vector<8x128xf32>
    tpu.vector_store %arg5[%c232, %c0_33], %68 {strides = array<i32>} : memref<288x128xf32, #tpu.memory_space<vmem>>, vector<8x128xf32>,
    %70 = vector.extract_strided_slice %63 {offsets = [0, 7], sizes = [8, 128], strides = [1, 1]} : vector<8x256xf32> to vector<8x128xf32>
    %c240 = arith.constant 240 : index
    %c0_34 = arith.constant 0 : index
    %71 = vector.load %arg5[%c240, %c0_34] : memref<288x128xf32, #tpu.memory_space<vmem>>, vector<8x128xf32>
    tpu.vector_store %arg5[%c240, %c0_34], %70 {strides = array<i32>} : memref<288x128xf32, #tpu.memory_space<vmem>>, vector<8x128xf32>,
    %72 = vector.extract_strided_slice %63 {offsets = [0, 8], sizes = [8, 128], strides = [1, 1]} : vector<8x256xf32> to vector<8x128xf32>
    %c248 = arith.constant 248 : index
    %c0_35 = arith.constant 0 : index
    %73 = vector.load %arg5[%c248, %c0_35] : memref<288x128xf32, #tpu.memory_space<vmem>>, vector<8x128xf32>
    tpu.vector_store %arg5[%c248, %c0_35], %72 {strides = array<i32>} : memref<288x128xf32, #tpu.memory_space<vmem>>, vector<8x128xf32>,
    %74 = vector.extract_strided_slice %63 {offsets = [0, 9], sizes = [8, 128], strides = [1, 1]} : vector<8x256xf32> to vector<8x128xf32>
    %c256 = arith.constant 256 : index
    %c0_36 = arith.constant 0 : index
    %75 = vector.load %arg5[%c256, %c0_36] : memref<288x128xf32, #tpu.memory_space<vmem>>, vector<8x128xf32>
    tpu.vector_store %arg5[%c256, %c0_36], %74 {strides = array<i32>} : memref<288x128xf32, #tpu.memory_space<vmem>>, vector<8x128xf32>,
    %76 = vector.extract_strided_slice %63 {offsets = [0, 14], sizes = [8, 128], strides = [1, 1]} : vector<8x256xf32> to vector<8x128xf32>
    %c264 = arith.constant 264 : index
    %c0_37 = arith.constant 0 : index
    %77 = vector.load %arg5[%c264, %c0_37] : memref<288x128xf32, #tpu.memory_space<vmem>>, vector<8x128xf32>
    tpu.vector_store %arg5[%c264, %c0_37], %76 {strides = array<i32>} : memref<288x128xf32, #tpu.memory_space<vmem>>, vector<8x128xf32>,
    %78 = vector.extract_strided_slice %63 {offsets = [0, 15], sizes = [8, 128], strides = [1, 1]} : vector<8x256xf32> to vector<8x128xf32>
    %c272 = arith.constant 272 : index
    %c0_38 = arith.constant 0 : index
    %79 = vector.load %arg5[%c272, %c0_38] : memref<288x128xf32, #tpu.memory_space<vmem>>, vector<8x128xf32>
    tpu.vector_store %arg5[%c272, %c0_38], %78 {strides = array<i32>} : memref<288x128xf32, #tpu.memory_space<vmem>>, vector<8x128xf32>,
    %80 = vector.extract_strided_slice %63 {offsets = [0, 16], sizes = [8, 128], strides = [1, 1]} : vector<8x256xf32> to vector<8x128xf32>
    %c280 = arith.constant 280 : index
    %c0_39 = arith.constant 0 : index
    %81 = vector.load %arg5[%c280, %c0_39] : memref<288x128xf32, #tpu.memory_space<vmem>>, vector<8x128xf32>
    tpu.vector_store %arg5[%c280, %c0_39], %80 {strides = array<i32>} : memref<288x128xf32, #tpu.memory_space<vmem>>, vector<8x128xf32>,
    %c0_40 = arith.constant 0 : index
    %c0_41 = arith.constant 0 : index
    %82 = vector.load %arg5[%c0_40, %c0_41] : memref<288x128xf32, #tpu.memory_space<vmem>>, vector<288x128xf32>
    %c0_42 = arith.constant 0 : index
    %c0_43 = arith.constant 0 : index
    %c0_44 = arith.constant 0 : index
    %83 = vector.load %arg2[%c0_42, %c0_43, %c0_44] : memref<4x16x288xf32, #tpu.memory_space<vmem>>, vector<1x16x288xf32>
    %84 = vector.shape_cast %83 : vector<1x16x288xf32> to vector<16x288xf32>
    %cst = arith.constant dense<0.000000e+00> : vector<16x128xf32>
    %85 = tpu.matmul %84, %82, %cst {dimension_numbers = #tpu.dot_dimension_numbers<[1], [0], [0], [1], [0, 0, 1, 1], [], []>} : vector<16x288xf32>, vector<288x128xf32>, vector<16x128xf32> -> vector<16x128xf32>
    %c1 = arith.constant 1 : index
    %c0_45 = arith.constant 0 : index
    %c0_46 = arith.constant 0 : index
    %86 = vector.load %arg2[%c1, %c0_45, %c0_46] : memref<4x16x288xf32, #tpu.memory_space<vmem>>, vector<1x16x288xf32>
    %87 = vector.shape_cast %86 : vector<1x16x288xf32> to vector<16x288xf32>
    %cst_47 = arith.constant dense<0.000000e+00> : vector<16x128xf32>
    %88 = tpu.matmul %87, %82, %cst_47 {dimension_numbers = #tpu.dot_dimension_numbers<[1], [0], [0], [1], [0, 0, 1, 1], [], []>} : vector<16x288xf32>, vector<288x128xf32>, vector<16x128xf32> -> vector<16x128xf32>
    %89 = arith.maximumf %85, %88 : vector<16x128xf32>
    %c2 = arith.constant 2 : index
    %c0_48 = arith.constant 0 : index
    %c0_49 = arith.constant 0 : index
    %90 = vector.load %arg2[%c2, %c0_48, %c0_49] : memref<4x16x288xf32, #tpu.memory_space<vmem>>, vector<1x16x288xf32>
    %91 = vector.shape_cast %90 : vector<1x16x288xf32> to vector<16x288xf32>
    %cst_50 = arith.constant dense<0.000000e+00> : vector<16x128xf32>
    %92 = tpu.matmul %91, %82, %cst_50 {dimension_numbers = #tpu.dot_dimension_numbers<[1], [0], [0], [1], [0, 0, 1, 1], [], []>} : vector<16x288xf32>, vector<288x128xf32>, vector<16x128xf32> -> vector<16x128xf32>
    %93 = arith.maximumf %89, %92 : vector<16x128xf32>
    %c3 = arith.constant 3 : index
    %c0_51 = arith.constant 0 : index
    %c0_52 = arith.constant 0 : index
    %94 = vector.load %arg2[%c3, %c0_51, %c0_52] : memref<4x16x288xf32, #tpu.memory_space<vmem>>, vector<1x16x288xf32>
    %95 = vector.shape_cast %94 : vector<1x16x288xf32> to vector<16x288xf32>
    %cst_53 = arith.constant dense<0.000000e+00> : vector<16x128xf32>
    %96 = tpu.matmul %95, %82, %cst_53 {dimension_numbers = #tpu.dot_dimension_numbers<[1], [0], [0], [1], [0, 0, 1, 1], [], []>} : vector<16x288xf32>, vector<288x128xf32>, vector<16x128xf32> -> vector<16x128xf32>
    %97 = arith.maximumf %93, %96 : vector<16x128xf32>
    %c0_54 = arith.constant 0 : index
    %c0_55 = arith.constant 0 : index
    %98 = vector.load %arg3[%c0_54, %c0_55] : memref<16x1xf32, #tpu.memory_space<vmem>>, vector<16x1xf32>
    %99 = vector.broadcast %98 : vector<16x1xf32> to vector<16x128xf32>
    %100 = arith.addf %97, %99 : vector<16x128xf32>
    %cst_56 = arith.constant 0.000000e+00 : f32
    %101 = vector.broadcast %cst_56 : f32 to vector<16x128xf32>
    %102 = arith.maximumf %100, %101 : vector<16x128xf32>
    %c0_57 = arith.constant 0 : index
    %c0_58 = arith.constant 0 : index
    %103 = vector.load %arg4[%c0_57, %c0_58] : memref<16x128xf32, #tpu.memory_space<vmem>>, vector<16x128xf32>
    tpu.vector_store %arg4[%c0_57, %c0_58], %102 {strides = array<i32>} : memref<16x128xf32, #tpu.memory_space<vmem>>, vector<16x128xf32>,
    return
  }
  func.func @transform_0(%arg0: i32) -> (i32, i32) {
    %c0_i32 = arith.constant 0 : i32
    %c0_i32_0 = arith.constant 0 : i32
    %c0_i32_1 = arith.constant 0 : i32
    return %c0_i32, %c0_i32_0 : i32, i32
  }
  func.func @transform_1(%arg0: i32) -> (i32, i32, i32) {
    %c0_i32 = arith.constant 0 : i32
    %c0_i32_0 = arith.constant 0 : i32
    %c0_i32_1 = arith.constant 0 : i32
    %c0_i32_2 = arith.constant 0 : i32
    return %c0_i32, %c0_i32_0, %c0_i32_1 : i32, i32, i32
  }
  func.func @transform_2(%arg0: i32) -> (i32, i32) {
    %c0_i32 = arith.constant 0 : i32
    %c0_i32_0 = arith.constant 0 : i32
    %c0_i32_1 = arith.constant 0 : i32
    return %c0_i32, %c0_i32_0 : i32, i32
  }
  func.func @transform_3(%arg0: i32) -> (i32, i32) {
    %c0_i32 = arith.constant 0 : i32
    %c0_i32_0 = arith.constant 0 : i32
    return %c0_i32, %arg0 : i32, i32
  }
}

module attributes {stable_mosaic.version = 11 : i64} {
  func.func @_fc_stack_kernel(%arg0: i32, %arg1: memref<2x400xf32, #tpu.memory_space<vmem>>, %arg2: memref<400x128xf32, #tpu.memory_space<vmem>>, %arg3: memref<1x128xf32, #tpu.memory_space<vmem>>, %arg4: memref<128x128xf32, #tpu.memory_space<vmem>>, %arg5: memref<1x128xf32, #tpu.memory_space<vmem>>, %arg6: memref<128x10xf32, #tpu.memory_space<vmem>>, %arg7: memref<1x10xf32, #tpu.memory_space<vmem>>, %arg8: memref<2x10xf32, #tpu.memory_space<vmem>>) attributes {dimension_semantics = [#tpu.dimension_semantics<parallel>], iteration_bounds = array<i64: 1>, scalar_prefetch = 0 : i64, scratch_operands = 0 : i64, tpu.core_type = #tpu.core_type<tc>, window_params = [{transform_indices = @transform_0, window_bounds = array<i64: 2, 400>}, {pipeline_mode = #tpu.pipeline_mode<synchronous>, transform_indices = @transform_1, window_bounds = array<i64: 400, 128>}, {pipeline_mode = #tpu.pipeline_mode<synchronous>, transform_indices = @transform_2, window_bounds = array<i64: 1, 128>}, {pipeline_mode = #tpu.pipeline_mode<synchronous>, transform_indices = @transform_3, window_bounds = array<i64: 128, 128>}, {pipeline_mode = #tpu.pipeline_mode<synchronous>, transform_indices = @transform_4, window_bounds = array<i64: 1, 128>}, {pipeline_mode = #tpu.pipeline_mode<synchronous>, transform_indices = @transform_5, window_bounds = array<i64: 128, 10>}, {pipeline_mode = #tpu.pipeline_mode<synchronous>, transform_indices = @transform_6, window_bounds = array<i64: 1, 10>}, {transform_indices = @transform_7, window_bounds = array<i64: 2, 10>}]} {
    %c0 = arith.constant 0 : index
    %c0_0 = arith.constant 0 : index
    %0 = vector.load %arg1[%c0, %c0_0] : memref<2x400xf32, #tpu.memory_space<vmem>>, vector<2x400xf32>
    %c0_1 = arith.constant 0 : index
    %c0_2 = arith.constant 0 : index
    %1 = vector.load %arg2[%c0_1, %c0_2] : memref<400x128xf32, #tpu.memory_space<vmem>>, vector<400x128xf32>
    %cst = arith.constant dense<0.000000e+00> : vector<2x128xf32>
    %2 = tpu.matmul %0, %1, %cst {dimension_numbers = #tpu.dot_dimension_numbers<[1], [0], [0], [1], [0, 0, 1, 1], [], []>} : vector<2x400xf32>, vector<400x128xf32>, vector<2x128xf32> -> vector<2x128xf32>
    %c0_3 = arith.constant 0 : index
    %c0_4 = arith.constant 0 : index
    %3 = vector.load %arg3[%c0_3, %c0_4] : memref<1x128xf32, #tpu.memory_space<vmem>>, vector<1x128xf32>
    %4 = vector.broadcast %3 : vector<1x128xf32> to vector<2x128xf32>
    %5 = arith.addf %2, %4 : vector<2x128xf32>
    %cst_5 = arith.constant 0.000000e+00 : f32
    %6 = vector.broadcast %cst_5 : f32 to vector<2x128xf32>
    %7 = arith.maximumf %5, %6 : vector<2x128xf32>
    %c0_6 = arith.constant 0 : index
    %c0_7 = arith.constant 0 : index
    %8 = vector.load %arg4[%c0_6, %c0_7] : memref<128x128xf32, #tpu.memory_space<vmem>>, vector<128x128xf32>
    %cst_8 = arith.constant dense<0.000000e+00> : vector<2x128xf32>
    %9 = tpu.matmul %7, %8, %cst_8 {dimension_numbers = #tpu.dot_dimension_numbers<[1], [0], [0], [1], [0, 0, 1, 1], [], []>} : vector<2x128xf32>, vector<128x128xf32>, vector<2x128xf32> -> vector<2x128xf32>
    %c0_9 = arith.constant 0 : index
    %c0_10 = arith.constant 0 : index
    %10 = vector.load %arg5[%c0_9, %c0_10] : memref<1x128xf32, #tpu.memory_space<vmem>>, vector<1x128xf32>
    %11 = vector.broadcast %10 : vector<1x128xf32> to vector<2x128xf32>
    %12 = arith.addf %9, %11 : vector<2x128xf32>
    %cst_11 = arith.constant 0.000000e+00 : f32
    %13 = vector.broadcast %cst_11 : f32 to vector<2x128xf32>
    %14 = arith.maximumf %12, %13 : vector<2x128xf32>
    %c0_12 = arith.constant 0 : index
    %c0_13 = arith.constant 0 : index
    %15 = vector.load %arg6[%c0_12, %c0_13] : memref<128x10xf32, #tpu.memory_space<vmem>>, vector<128x10xf32>
    %cst_14 = arith.constant dense<0.000000e+00> : vector<2x10xf32>
    %16 = tpu.matmul %14, %15, %cst_14 {dimension_numbers = #tpu.dot_dimension_numbers<[1], [0], [0], [1], [0, 0, 1, 1], [], []>} : vector<2x128xf32>, vector<128x10xf32>, vector<2x10xf32> -> vector<2x10xf32>
    %c0_15 = arith.constant 0 : index
    %c0_16 = arith.constant 0 : index
    %17 = vector.load %arg7[%c0_15, %c0_16] : memref<1x10xf32, #tpu.memory_space<vmem>>, vector<1x10xf32>
    %18 = vector.broadcast %17 : vector<1x10xf32> to vector<2x10xf32>
    %19 = arith.addf %16, %18 : vector<2x10xf32>
    %c0_17 = arith.constant 0 : index
    %c0_18 = arith.constant 0 : index
    %20 = vector.load %arg8[%c0_17, %c0_18] : memref<2x10xf32, #tpu.memory_space<vmem>>, vector<2x10xf32>
    tpu.vector_store %arg8[%c0_17, %c0_18], %19 {strides = array<i32>} : memref<2x10xf32, #tpu.memory_space<vmem>>, vector<2x10xf32>,
    return
  }
  func.func @transform_0(%arg0: i32) -> (i32, i32) {
    %c0_i32 = arith.constant 0 : i32
    %c0_i32_0 = arith.constant 0 : i32
    return %arg0, %c0_i32 : i32, i32
  }
  func.func @transform_1(%arg0: i32) -> (i32, i32) {
    %c0_i32 = arith.constant 0 : i32
    %c0_i32_0 = arith.constant 0 : i32
    %c0_i32_1 = arith.constant 0 : i32
    return %c0_i32, %c0_i32_0 : i32, i32
  }
  func.func @transform_2(%arg0: i32) -> (i32, i32) {
    %c0_i32 = arith.constant 0 : i32
    %c0_i32_0 = arith.constant 0 : i32
    %c0_i32_1 = arith.constant 0 : i32
    return %c0_i32, %c0_i32_0 : i32, i32
  }
  func.func @transform_3(%arg0: i32) -> (i32, i32) {
    %c0_i32 = arith.constant 0 : i32
    %c0_i32_0 = arith.constant 0 : i32
    %c0_i32_1 = arith.constant 0 : i32
    return %c0_i32, %c0_i32_0 : i32, i32
  }
  func.func @transform_4(%arg0: i32) -> (i32, i32) {
    %c0_i32 = arith.constant 0 : i32
    %c0_i32_0 = arith.constant 0 : i32
    %c0_i32_1 = arith.constant 0 : i32
    return %c0_i32, %c0_i32_0 : i32, i32
  }
  func.func @transform_5(%arg0: i32) -> (i32, i32) {
    %c0_i32 = arith.constant 0 : i32
    %c0_i32_0 = arith.constant 0 : i32
    %c0_i32_1 = arith.constant 0 : i32
    return %c0_i32, %c0_i32_0 : i32, i32
  }
  func.func @transform_6(%arg0: i32) -> (i32, i32) {
    %c0_i32 = arith.constant 0 : i32
    %c0_i32_0 = arith.constant 0 : i32
    %c0_i32_1 = arith.constant 0 : i32
    return %c0_i32, %c0_i32_0 : i32, i32
  }
  func.func @transform_7(%arg0: i32) -> (i32, i32) {
    %c0_i32 = arith.constant 0 : i32
    %c0_i32_0 = arith.constant 0 : i32
    return %arg0, %c0_i32 : i32, i32
  }
}

</mosaic_0001>

<llo_original>
// kernel: convnet_forward.5
$region0: #{convnet_forward.5}
  #allocation0 [shape = 'u32[]', space=smem, size = 0x4, offset = 0x4, fixed_abs, tag = 'smem constant byte address 0x4 - core index']
  #allocation1 [shape = 'u32[72,128]{1,0:T(1,128)}', space=vmem, size = 0x9000, scoped, tag = 'internal scratch']
  %s0 = inlined_call_operand.vmem [shape: f32[2,400], index: 0, kind: input, shape index: {}]
  %s1 = inlined_call_operand.vmem [shape: f32[400,128], index: 1, kind: input, shape index: {}]
  %s2 = inlined_call_operand.vmem [shape: f32[1,128], index: 2, kind: input, shape index: {}]
  %s3 = inlined_call_operand.vmem [shape: f32[128,128], index: 3, kind: input, shape index: {}]
  %s4 = inlined_call_operand.vmem [shape: f32[1,128], index: 4, kind: input, shape index: {}]
  %s5 = inlined_call_operand.vmem [shape: f32[128,10], index: 5, kind: input, shape index: {}]
  %s6 = inlined_call_operand.vmem [shape: f32[1,10], index: 6, kind: input, shape index: {}]
  %s7 = inlined_call_operand.hbm [shape: f32[2,10], index: 7, kind: output, shape index: {}]
  %s8 = sld [smem:[#allocation0]]
  $region38: #{convnet_forward.5} parent=0
    _
  %s10 = ssub.s32 1, %s8
  %s11 = scalar_select 0, %s10, %s8
  $region1: #{convnet_forward.5} parent=0
    #allocation2 [shape = 'u8[1024]{0}', space=vmem, size = 0x400, scoped, tag = 'output window, operand 0, single buffered']
    #allocation3 [shape = 's32[1]{0}', space=sflag, size = 0x4, scoped, tag = 'scoped memory for convnet_forward.5']
    %12 = vsyncpa [#allocation3], 0
    // Predicated region
    $region2: #{convnet_forward.5} parent=1 // pred_check
      _
    $region3: #{convnet_forward.5} parent=1 // pred_check_branch
      %14 = sbr.rel (0) target = $region5
    $region4: #{convnet_forward.5} parent=1 // pred_region
      _
    $region5: #{convnet_forward.5} parent=1 // pred_fallthru
      _
    // Predicated region
    $region6: #{convnet_forward.5} parent=1 // pred_check
      _
    $region7: #{convnet_forward.5} parent=1 // pred_check_branch
      %16 = sbr.rel (0) target = $region9
    $region8: #{convnet_forward.5} parent=1 // pred_region
      _
    $region9: #{convnet_forward.5} parent=1 // pred_fallthru
      _
    // Predicated region
    $region10: #{convnet_forward.5} parent=1 // pred_check
      _
    $region11: #{convnet_forward.5} parent=1 // pred_check_branch
      %18 = sbr.rel (0) target = $region13
    $region12: #{convnet_forward.5} parent=1 // pred_region
      _
    $region13: #{convnet_forward.5} parent=1 // pred_fallthru
      _
    // Predicated region
    $region14: #{convnet_forward.5} parent=1 // pred_check
      _
    $region15: #{convnet_forward.5} parent=1 // pred_check_branch
      %20 = sbr.rel (0) target = $region17
    $region16: #{convnet_forward.5} parent=1 // pred_region
      _
    $region17: #{convnet_forward.5} parent=1 // pred_fallthru
      _
    // Predicated region
    $region18: #{convnet_forward.5} parent=1 // pred_check
      _
    $region19: #{convnet_forward.5} parent=1 // pred_check_branch
      %22 = sbr.rel (0) target = $region21
    $region20: #{convnet_forward.5} parent=1 // pred_region
      _
    $region21: #{convnet_forward.5} parent=1 // pred_fallthru
      _
    // Predicated region
    $region22: #{convnet_forward.5} parent=1 // pred_check
      _
    $region23: #{convnet_forward.5} parent=1 // pred_check_branch
      %24 = sbr.rel (0) target = $region25
    $region24: #{convnet_forward.5} parent=1 // pred_region
      _
    $region25: #{convnet_forward.5} parent=1 // pred_fallthru
      _
    // Predicated region
    $region26: #{convnet_forward.5} parent=1 // pred_check
      _
    $region27: #{convnet_forward.5} parent=1 // pred_check_branch
      %26 = sbr.rel (0) target = $region29
    $region28: #{convnet_forward.5} parent=1 // pred_region
      _
    $region29: #{convnet_forward.5} parent=1 // pred_fallthru
      _
    %v27 = vld [vmem:[%s0] sm:$0xff]
    %v28 = vld [vmem:[%s1] sm:$0xff]
    %v29 = vld [vmem:[%s1 + $0x8] sm:$0xff]
    %v30 = vld [vmem:[%s1 + $0x10] sm:$0xff]
    %v31 = vld [vmem:[%s1 + $0x18] sm:$0xff]
    %v32 = vld [vmem:[%s1 + $0x20] sm:$0xff]
    %v33 = vld [vmem:[%s1 + $0x28] sm:$0xff]
    %v34 = vld [vmem:[%s1 + $0x30] sm:$0xff]
    %v35 = vld [vmem:[%s1 + $0x38] sm:$0xff]
    %v36 = vld [vmem:[%s1 + $0x40] sm:$0xff]
    %v37 = vld [vmem:[%s1 + $0x48] sm:$0xff]
    %v38 = vld [vmem:[%s1 + $0x50] sm:$0xff]
    %v39 = vld [vmem:[%s1 + $0x58] sm:$0xff]
    %v40 = vld [vmem:[%s1 + $0x60] sm:$0xff]
    %v41 = vld [vmem:[%s1 + $0x68] sm:$0xff]
    %v42 = vld [vmem:[%s1 + $0x70] sm:$0xff]
    %v43 = vld [vmem:[%s1 + $0x78] sm:$0xff]
    %v44 = vld [vmem:[%s1 + $0x80] sm:$0xff]
    %v45 = vld [vmem:[%s1 + $0x88] sm:$0xff]
    %v46 = vld [vmem:[%s1 + $0x90] sm:$0xff]
    %v47 = vld [vmem:[%s1 + $0x98] sm:$0xff]
    %v48 = vld [vmem:[%s1 + $0xa0] sm:$0xff]
    %v49 = vld [vmem:[%s1 + $0xa8] sm:$0xff]
    %v50 = vld [vmem:[%s1 + $0xb0] sm:$0xff]
    %v51 = vld [vmem:[%s1 + $0xb8] sm:$0xff]
    %v52 = vld [vmem:[%s1 + $0xc0] sm:$0xff]
    %v53 = vld [vmem:[%s1 + $0xc8] sm:$0xff]
    %v54 = vld [vmem:[%s1 + $0xd0] sm:$0xff]
    %v55 = vld [vmem:[%s1 + $0xd8] sm:$0xff]
    %v56 = vld [vmem:[%s1 + $0xe0] sm:$0xff]
    %v57 = vld [vmem:[%s1 + $0xe8] sm:$0xff]
    %v58 = vld [vmem:[%s1 + $0xf0] sm:$0xff]
    %v59 = vld [vmem:[%s1 + $0xf8] sm:$0xff]
    %v60 = vld [vmem:[%s1 + $0x100] sm:$0xff]
    %v61 = vld [vmem:[%s1 + $0x108] sm:$0xff]
    %v62 = vld [vmem:[%s1 + $0x110] sm:$0xff]
    %v63 = vld [vmem:[%s1 + $0x118] sm:$0xff]
    %v64 = vld [vmem:[%s1 + $0x120] sm:$0xff]
    %v65 = vld [vmem:[%s1 + $0x128] sm:$0xff]
    %v66 = vld [vmem:[%s1 + $0x130] sm:$0xff]
    %v67 = vld [vmem:[%s1 + $0x138] sm:$0xff]
    %v68 = vld [vmem:[%s1 + $0x140] sm:$0xff]
    %v69 = vld [vmem:[%s1 + $0x148] sm:$0xff]
    %v70 = vld [vmem:[%s1 + $0x150] sm:$0xff]
    %v71 = vld [vmem:[%s1 + $0x158] sm:$0xff]
    %v72 = vld [vmem:[%s1 + $0x160] sm:$0xff]
    %v73 = vld [vmem:[%s1 + $0x168] sm:$0xff]
    %v74 = vld [vmem:[%s1 + $0x170] sm:$0xff]
    %v75 = vld [vmem:[%s1 + $0x178] sm:$0xff]
    %v76 = vld [vmem:[%s1 + $0x180] sm:$0xff]
    %v77 = vld [vmem:[%s1 + $0x188] sm:$0xff]
    %v78 = vld [vmem:[%s2] sm:$0x1]
    %v80 = vperm.slane %v78, 0
    %83 = vst [vmem:[#allocation1] ss:$4 sm:$0xff] %v27
    %v84 = vld.sshfl [vmem:[#allocation1] sm:$0xff pattern:$0x73625140]
    %v85 = vld.sshfl [vmem:[#allocation1 + $0x8] sm:$0xff pattern:$0x73625140]
    %v86 = vld.sshfl [vmem:[#allocation1 + $0x10] sm:$0xff pattern:$0x73625140]
    %v87 = vld.sshfl [vmem:[#allocation1 + $0x18] sm:$0xff pattern:$0x73625140]
    %vm91 = vcmask 130048
    %v92 = vsel %vm91, %v87, 0
    %94 = vmatpush.msra.mxu0 %v43
    %95 = vmatpush.msra.mxu0 %v42
    %96 = vmatpush.msra.mxu0 %v41
    %97 = vmatpush.msra.mxu0 %v40
    %98 = vmatpush.msra.mxu0 %v39
    %99 = vmatpush.msra.mxu0 %v38
    %100 = vmatpush.msra.mxu0 %v37
    %101 = vmatpush.msra.mxu0 %v36
    %102 = vmatpush.msra.mxu0 %v35
    %103 = vmatpush.msra.mxu0 %v34
    %104 = vmatpush.msra.mxu0 %v33
    %105 = vmatpush.msra.mxu0 %v32
    %106 = vmatpush.msra.mxu0 %v31
    %107 = vmatpush.msra.mxu0 %v30
    %108 = vmatpush.msra.mxu0 %v29
    %109 = vmatpush.msra.mxu0 %v28
    %110 = vmatmul.f32.gmra.mxu0 %v84
    %v111 = vpop.f32.mrf.mxu0
    %v112 = vadd.f32 %v80, %v111
    %113 = vdwg.mxu0
    %114 = vmatpush.msra.mxu0 %v59
    %115 = vmatpush.msra.mxu0 %v58
    %116 = vmatpush.msra.mxu0 %v57
    %117 = vmatpush.msra.mxu0 %v56
    %118 = vmatpush.msra.mxu0 %v55
    %119 = vmatpush.msra.mxu0 %v54
    %120 = vmatpush.msra.mxu0 %v53
    %121 = vmatpush.msra.mxu0 %v52
    %122 = vmatpush.msra.mxu0 %v51
    %123 = vmatpush.msra.mxu0 %v50
    %124 = vmatpush.msra.mxu0 %v49
    %125 = vmatpush.msra.mxu0 %v48
    %126 = vmatpush.msra.mxu0 %v47
    %127 = vmatpush.msra.mxu0 %v46
    %128 = vmatpush.msra.mxu0 %v45
    %129 = vmatpush.msra.mxu0 %v44
    %130 = vmatmul.f32.gmra.mxu0 %v85
    %v131 = vpop.f32.mrf.mxu0
    %v132 = vadd.f32 %v112, %v131
    %133 = vdwg.mxu0
    %134 = vmatpush.msra.mxu0 %v75
    %135 = vmatpush.msra.mxu0 %v74
    %136 = vmatpush.msra.mxu0 %v73
    %137 = vmatpush.msra.mxu0 %v72
    %138 = vmatpush.msra.mxu0 %v71
    %139 = vmatpush.msra.mxu0 %v70
    %140 = vmatpush.msra.mxu0 %v69
    %141 = vmatpush.msra.mxu0 %v68
    %142 = vmatpush.msra.mxu0 %v67
    %143 = vmatpush.msra.mxu0 %v66
    %144 = vmatpush.msra.mxu0 %v65
    %145 = vmatpush.msra.mxu0 %v64
    %146 = vmatpush.msra.mxu0 %v63
    %147 = vmatpush.msra.mxu0 %v62
    %148 = vmatpush.msra.mxu0 %v61
    %149 = vmatpush.msra.mxu0 %v60
    %150 = vmatmul.f32.gmra.mxu0 %v86
    %v151 = vpop.f32.mrf.mxu0
    %v152 = vadd.f32 %v132, %v151
    %153 = vdwg.mxu0
    %154 = vmatpush.msra.mxu0 0.0
    %155 = vmatpush.msra.mxu0 0.0
    %156 = vmatpush.msra.mxu0 0.0
    %157 = vmatpush.msra.mxu0 0.0
    %158 = vmatpush.msra.mxu0 0.0
    %159 = vmatpush.msra.mxu0 0.0
    %160 = vmatpush.msra.mxu0 0.0
    %161 = vmatpush.msra.mxu0 0.0
    %162 = vmatpush.msra.mxu0 0.0
    %163 = vmatpush.msra.mxu0 0.0
    %164 = vmatpush.msra.mxu0 0.0
    %165 = vmatpush.msra.mxu0 0.0
    %166 = vmatpush.msra.mxu0 0.0
    %167 = vmatpush.msra.mxu0 0.0
    %168 = vmatpush.msra.mxu0 %v77
    %169 = vmatpush.msra.mxu0 %v76
    %170 = vmatmul.f32.gmra.mxu0 %v92
    %v171 = vpop.f32.mrf.mxu0
    %v172 = vadd.f32 %v152, %v171
    %173 = vdwg.mxu0
    %v174 = vmax.f32 %v172, 0.0
    %v175 = vld [vmem:[%s3] sm:$0xff]
    %v176 = vld [vmem:[%s3 + $0x8] sm:$0xff]
    %v177 = vld [vmem:[%s3 + $0x10] sm:$0xff]
    %v178 = vld [vmem:[%s3 + $0x18] sm:$0xff]
    %v179 = vld [vmem:[%s3 + $0x20] sm:$0xff]
    %v180 = vld [vmem:[%s3 + $0x28] sm:$0xff]
    %v181 = vld [vmem:[%s3 + $0x30] sm:$0xff]
    %v182 = vld [vmem:[%s3 + $0x38] sm:$0xff]
    %v183 = vld [vmem:[%s3 + $0x40] sm:$0xff]
    %v184 = vld [vmem:[%s3 + $0x48] sm:$0xff]
    %v185 = vld [vmem:[%s3 + $0x50] sm:$0xff]
    %v186 = vld [vmem:[%s3 + $0x58] sm:$0xff]
    %v187 = vld [vmem:[%s3 + $0x60] sm:$0xff]
    %v188 = vld [vmem:[%s3 + $0x68] sm:$0xff]
    %v189 = vld [vmem:[%s3 + $0x70] sm:$0xff]
    %v190 = vld [vmem:[%s3 + $0x78] sm:$0xff]
    %v191 = vld [vmem:[%s4] sm:$0x1]
    %v193 = vperm.slane %v191, 0
    %195 = vmatpush.msra.mxu0 %v190
    %196 = vmatpush.msra.mxu0 %v189
    %197 = vmatpush.msra.mxu0 %v188
    %198 = vmatpush.msra.mxu0 %v187
    %199 = vmatpush.msra.mxu0 %v186
    %200 = vmatpush.msra.mxu0 %v185
    %201 = vmatpush.msra.mxu0 %v184
    %202 = vmatpush.msra.mxu0 %v183
    %203 = vmatpush.msra.mxu0 %v182
    %204 = vmatpush.msra.mxu0 %v181
    %205 = vmatpush.msra.mxu0 %v180
    %206 = vmatpush.msra.mxu0 %v179
    %207 = vmatpush.msra.mxu0 %v178
    %208 = vmatpush.msra.mxu0 %v177
    %209 = vmatpush.msra.mxu0 %v176
    %210 = vmatpush.msra.mxu0 %v175
    %211 = vmatmul.f32.gmra.mxu0 %v174
    %v212 = vpop.f32.mrf.mxu0
    %v213 = vadd.f32 %v193, %v212
    %214 = vdwg.mxu0
    %v215 = vmax.f32 %v213, 0.0
    %v216 = vld [vmem:[%s5] sm:$0xff]
    %v217 = vld [vmem:[%s5 + $0x8] sm:$0xff]
    %v218 = vld [vmem:[%s5 + $0x10] sm:$0xff]
    %v219 = vld [vmem:[%s5 + $0x18] sm:$0xff]
    %v220 = vld [vmem:[%s5 + $0x20] sm:$0xff]
    %v221 = vld [vmem:[%s5 + $0x28] sm:$0xff]
    %v222 = vld [vmem:[%s5 + $0x30] sm:$0xff]
    %v223 = vld [vmem:[%s5 + $0x38] sm:$0xff]
    %v224 = vld [vmem:[%s5 + $0x40] sm:$0xff]
    %v225 = vld [vmem:[%s5 + $0x48] sm:$0xff]
    %v226 = vld [vmem:[%s5 + $0x50] sm:$0xff]
    %v227 = vld [vmem:[%s5 + $0x58] sm:$0xff]
    %v228 = vld [vmem:[%s5 + $0x60] sm:$0xff]
    %v229 = vld [vmem:[%s5 + $0x68] sm:$0xff]
    %v230 = vld [vmem:[%s5 + $0x70] sm:$0xff]
    %v231 = vld [vmem:[%s5 + $0x78] sm:$0xff]
    %v232 = vld [vmem:[%s6] sm:$0x1]
    %v234 = vperm.slane %v232, 0
    %236 = vmatpush.msra.mxu0 %v231
    %237 = vmatpush.msra.mxu0 %v230
    %238 = vmatpush.msra.mxu0 %v229
    %239 = vmatpush.msra.mxu0 %v228
    %240 = vmatpush.msra.mxu0 %v227
    %241 = vmatpush.msra.mxu0 %v226
    %242 = vmatpush.msra.mxu0 %v225
    %243 = vmatpush.msra.mxu0 %v224
    %244 = vmatpush.msra.mxu0 %v223
    %245 = vmatpush.msra.mxu0 %v222
    %246 = vmatpush.msra.mxu0 %v221
    %247 = vmatpush.msra.mxu0 %v220
    %248 = vmatpush.msra.mxu0 %v219
    %249 = vmatpush.msra.mxu0 %v218
    %250 = vmatpush.msra.mxu0 %v217
    %251 = vmatpush.msra.mxu0 %v216
    %252 = vmatmul.f32.gmra.mxu0 %v215
    %v253 = vpop.f32.mrf.mxu0
    %v254 = vadd.f32 %v234, %v253
    %255 = vdwg.mxu0
    %vm256 = vcmask 74752
    %257 = vst.msk [vmem:[#allocation2] sm:$0x3] %vm256, %v254
    // Predicated region
    $region30: #{convnet_forward.5} parent=1 // pred_check
      _
    $region31: #{convnet_forward.5} parent=1 // pred_check_branch
      %259 = sbr.rel (0) target = $region33
    $region32: #{convnet_forward.5} parent=1 // pred_region
      %261 = vsyncadd [#allocation3], 0
      %s263 = sshll.u32 [#allocation2], 4
      %s264 = int_to_ptr.vmem [resolvable:$true] %s263
      %s265 = sshll.u32 %s7, 4
      %s266 = int_to_ptr.hbm [resolvable:$true] %s265
      %268 = dma.vmem_to_hbm [thread:$0]  %s264, 32, %s266, [#allocation3]
    $region33: #{convnet_forward.5} parent=1 // pred_fallthru
      _
    // Predicated region
    $region34: #{convnet_forward.5} parent=1 // pred_check
      _
    $region35: #{convnet_forward.5} parent=1 // pred_check_branch
      %270 = sbr.rel (0) target = $region37
    $region36: #{convnet_forward.5} parent=1 // pred_region
      %272 = dma.done [#allocation3], 32
    $region37: #{convnet_forward.5} parent=1 // pred_fallthru
      _
    %273 = vsyncpa [#allocation3], 1

// kernel: convnet_forward.3
$region0: #{convnet_forward.3}
  #allocation0 [shape = 'u32[]', space=smem, size = 0x4, offset = 0x4, fixed_abs, tag = 'smem constant byte address 0x4 - core index']
  #allocation1 [shape = 'u32[72,128]{1,0:T(1,128)}', space=vmem, size = 0x9000, scoped, tag = 'internal scratch']
  #allocation2 [shape = 'f32[288,256]{1,0:T(8,128)}', space=vmem, size = 0x48000, scoped, tag = 'scratch operand']
  %s0 = inlined_call_operand.vmem [shape: f32[32,640], index: 0, kind: input, shape index: {}]
  %s1 = inlined_call_operand.vmem [shape: f32[4,6,288], index: 1, kind: input, shape index: {}]
  %s2 = inlined_call_operand.vmem [shape: f32[6,1], index: 2, kind: input, shape index: {}]
  %s3 = inlined_call_operand.vmem [shape: f32[6,512], index: 3, kind: output, shape index: {}]
  %s4 = sld [smem:[#allocation0]]
  $region45: #{convnet_forward.3} parent=0
    _
  %s6 = ssub.s32 1, %s4
  %s7 = scalar_select 0, %s6, %s4
  loop: start=0, step=1, limit=4
  $region2: #{convnet_forward.3} parent=0 // loop_pre_header
    _
  $region3: #{convnet_forward.3} parent=0 // loop_header
    %s9 = sphi 0, %s13
    %p10 = scmp.ge.s32.totalorder %s9, 4
    %s17 = sphi 0, %s17
    %s19 = sphi 0, %s17
    %s20 = sphi 0, %s19
    %s34 = sphi 0, %s20
    %s38 = sphi 0, %s38
    %s40 = sphi 0, %s38
    %s41 = sphi 0, %s40
    %s55 = sphi 0, %s41
    %s59 = sphi 0, %s59
    %s61 = sphi 0, %s59
    %s62 = sphi 0, %s61
    %s76 = sphi 0, %s62
    %s82 = sphi 0, %s84
    %s85 = sphi 0, %s82
    %s86 = sphi 0, %s85
    %s102 = sphi 0, %s86
  $region4: #{convnet_forward.3} parent=0 // loop_header_branch
    %12 = sbr.rel (%p10) target = $region8
  $region5: #{convnet_forward.3} parent=0 // loop_body
    %s14 = ssub.s32 %s9, 1
    %s15 = ssub.s32 %s9, 2
    %s16 = sadd.s32 %s9, 1
    %s18 = sadd.s32 %s17, 1
    %p21 = scmp.eq.s32.totalorder %s9, 1
    %p22 = scmp.ne.s32.totalorder %s17, %s19
    %p23 = scmp.eq.s32.totalorder %s9, 0
    %p24 = por %p22, %p23
    %p25 = scmp.ne.s32.totalorder %s17, %s19
    %p26 = scmp.eq.s32.totalorder %s14, 1
    %p27 = por %p25, %p26
    %p28 = scmp.ne.s32.totalorder %s19, %s20
    %p29 = scmp.eq.s32.totalorder %s14, 0
    %p30 = por %p28, %p29
    %p31 = scmp.ne.s32.totalorder %s19, %s20
    %p32 = scmp.eq.s32.totalorder %s15, 1
    %p33 = por %p31, %p32
    %p35 = scmp.ne.s32.totalorder %s20, %s34
    %p36 = scmp.eq.s32.totalorder %s15, 0
    %p37 = por %p35, %p36
    %s39 = sadd.s32 %s38, 1
    %p42 = scmp.eq.s32.totalorder %s9, 1
    %p43 = scmp.ne.s32.totalorder %s38, %s40
    %p44 = scmp.eq.s32.totalorder %s9, 0
    %p45 = por %p43, %p44
    %p46 = scmp.ne.s32.totalorder %s38, %s40
    %p47 = scmp.eq.s32.totalorder %s14, 1
    %p48 = por %p46, %p47
    %p49 = scmp.ne.s32.totalorder %s40, %s41
    %p50 = scmp.eq.s32.totalorder %s14, 0
    %p51 = por %p49, %p50
    %p52 = scmp.ne.s32.totalorder %s40, %s41
    %p53 = scmp.eq.s32.totalorder %s15, 1
    %p54 = por %p52, %p53
    %p56 = scmp.ne.s32.totalorder %s41, %s55
    %p57 = scmp.eq.s32.totalorder %s15, 0
    %p58 = por %p56, %p57
    %s60 = sadd.s32 %s59, 1
    %p63 = scmp.eq.s32.totalorder %s9, 1
    %p64 = scmp.ne.s32.totalorder %s59, %s61
    %p65 = scmp.eq.s32.totalorder %s9, 0
    %p66 = por %p64, %p65
    %p67 = scmp.ne.s32.totalorder %s59, %s61
    %p68 = scmp.eq.s32.totalorder %s14, 1
    %p69 = por %p67, %p68
    %p70 = scmp.ne.s32.totalorder %s61, %s62
    %p71 = scmp.eq.s32.totalorder %s14, 0
    %p72 = por %p70, %p71
    %p73 = scmp.ne.s32.totalorder %s61, %s62
    %p74 = scmp.eq.s32.totalorder %s15, 1
    %p75 = por %p73, %p74
    %p77 = scmp.ne.s32.totalorder %s62, %s76
    %p78 = scmp.eq.s32.totalorder %s15, 0
    %p79 = por %p77, %p78
    %s80 = ssub.s32 %s9, %s16
    %p81 = scmp.eq.s32.totalorder %s80, 0
    %s83 = sadd.s32 %s82, 1
    %s84 = scalar_select %p81, %s82, %s83
    %p87 = pneg %p81
    %p88 = scmp.eq.s32.totalorder %s9, 1
    %p89 = por %p87, %p88
    %p90 = scmp.ne.s32.totalorder %s82, %s85
    %p91 = scmp.eq.s32.totalorder %s9, 0
    %p92 = por %p90, %p91
    %p93 = scmp.ne.s32.totalorder %s82, %s85
    %p94 = scmp.eq.s32.totalorder %s14, 1
    %p95 = por %p93, %p94
    %p96 = scmp.ne.s32.totalorder %s85, %s86
    %p97 = scmp.eq.s32.totalorder %s14, 0
    %p98 = por %p96, %p97
    %p99 = scmp.ne.s32.totalorder %s85, %s86
    %p100 = scmp.eq.s32.totalorder %s15, 1
    %p101 = por %p99, %p100
    %p103 = scmp.ne.s32.totalorder %s86, %s102
    %p104 = scmp.eq.s32.totalorder %s15, 0
    %p105 = por %p103, %p104
    %p106 = scmp.le.s32.totalorder 1, %s9
    %p107 = scmp.lt.s32.totalorder %s9, 3
    %p108 = pnand %p106, %p107
    %p109 = pneg %p108
    // Predicated region
    $region9: #{convnet_forward.3} parent=5 // pred_check
      _
    $region10: #{convnet_forward.3} parent=5 // pred_check_branch
      %111 = sbr.rel (%p108) target = $region12
    $region11: #{convnet_forward.3} parent=5 // pred_region
      %s112 = ssub.s32 %s9, 1
      // Predicated region
      $region13: #{convnet_forward.3} parent=11 // pred_check
        %p113 = pneg %p30
      $region14: #{convnet_forward.3} parent=11 // pred_check_branch
        %115 = sbr.rel (%p113) target = $region16
      $region15: #{convnet_forward.3} parent=11 // pred_region
        _
      $region16: #{convnet_forward.3} parent=11 // pred_fallthru
        _
      // Predicated region
      $region17: #{convnet_forward.3} parent=11 // pred_check
        %p116 = pneg %p51
      $region18: #{convnet_forward.3} parent=11 // pred_check_branch
        %118 = sbr.rel (%p116) target = $region20
      $region19: #{convnet_forward.3} parent=11 // pred_region
        _
      $region20: #{convnet_forward.3} parent=11 // pred_fallthru
        _
      // Predicated region
      $region21: #{convnet_forward.3} parent=11 // pred_check
        %p119 = pneg %p72
      $region22: #{convnet_forward.3} parent=11 // pred_check_branch
        %121 = sbr.rel (%p119) target = $region24
      $region23: #{convnet_forward.3} parent=11 // pred_region
        _
      $region24: #{convnet_forward.3} parent=11 // pred_fallthru
        _
    $region12: #{convnet_forward.3} parent=5 // pred_fallthru
      _
    %p122 = scmp.lt.s32.totalorder %s9, 2
    // Predicated region
    $region25: #{convnet_forward.3} parent=5 // pred_check
      %p123 = pneg %p122
    $region26: #{convnet_forward.3} parent=5 // pred_check_branch
      %125 = sbr.rel (%p123) target = $region28
    $region27: #{convnet_forward.3} parent=5 // pred_region
      _
    $region28: #{convnet_forward.3} parent=5 // pred_fallthru
      _
    %p126 = scmp.le.s32.totalorder 1, %s9
    %p127 = scmp.lt.s32.totalorder %s9, 3
    %p128 = pnand %p126, %p127
    %p129 = pneg %p128
    // Predicated region
    $region29: #{convnet_forward.3} parent=5 // pred_check
      _
    $region30: #{convnet_forward.3} parent=5 // pred_check_branch
      %131 = sbr.rel (%p128) target = $region32
    $region31: #{convnet_forward.3} parent=5 // pred_region
      %s132 = ssub.s32 %s9, 1
      %p133 = pneg %p30
      %p134 = pneg %p27
      %p135 = pneg %p51
      %p136 = pneg %p48
      %p137 = pneg %p72
      %p138 = pneg %p69
      %p139 = pneg %p98
      %p140 = pneg %p95
      %s141 = smul.u32 2, %s14
      %p142 = scmp.lt.s32.totalorder %s141, 3
      %s143 = scalar_select %p142, %s141, 3
      %s144 = smul.addr %s143, 8
      %s145 = scalar_lea.vmem %s3, %s144
      %s146 = smul.u32 2, %s14
      %p147 = scmp.lt.s32.totalorder %s146, 3
      %s148 = scalar_select %p147, %s146, 3
      %s149 = smul.addr %s148, 8
      %s150 = scalar_lea.vmem %s3, %s149
      %s151 = smul.u32 2, %s14
      %s152 = smul.u32 %s14, 256
      %s153 = sshra.s32 %s152, 7
      %s154 = sand.u32 %s152, 127
      %s155 = smul.addr %s153, 8
      %s156 = scalar_lea.vmem %s0, %s155
      %v157 = vld [vmem:[%s156] sm:$0xff]
      %v158 = vld [vmem:[%s156 + $0x8] sm:$0xff]
      %v159 = vld [vmem:[%s156 + $0x10] sm:$0xff]
      %160 = vst [vmem:[#allocation2] sm:$0xff] %v157
      %161 = vst [vmem:[#allocation2 + $0x8] sm:$0xff] %v158
      %165 = vrot.lane.b32.xlu0 %v157, 127
      %v166 = vpop.permute.xlu0 %165
      %167 = vrot.lane.b32.xlu0 %v158, 127
      %v168 = vpop.permute.xlu0 %167
      %169 = vrot.lane.b32.xlu0 %v159, 127
      %v170 = vpop.permute.xlu0 %169
      %vm171 = vcmask 1039360
      %v172 = vsel %vm171, %v166, %v168
      %v173 = vsel %vm171, %v168, %v170
      %176 = vst [vmem:[#allocation2 + $0x10] sm:$0xff] %v172
      %177 = vst [vmem:[#allocation2 + $0x18] sm:$0xff] %v173
      %178 = vrot.lane.b32.xlu0 %v157, 126
      %v179 = vpop.permute.xlu0 %178
      %180 = vrot.lane.b32.xlu0 %v158, 126
      %v181 = vpop.permute.xlu0 %180
      %182 = vrot.lane.b32.xlu0 %v159, 126
      %v183 = vpop.permute.xlu0 %182
      %vm184 = vcmask 1031168
      %v185 = vsel %vm184, %v179, %v181
      %v186 = vsel %vm184, %v181, %v183
      %189 = vst [vmem:[#allocation2 + $0x20] sm:$0xff] %v185
      %190 = vst [vmem:[#allocation2 + $0x28] sm:$0xff] %v186
      %191 = vrot.lane.b32.xlu0 %v157, 112
      %v192 = vpop.permute.xlu0 %191
      %193 = vrot.lane.b32.xlu0 %v158, 112
      %v194 = vpop.permute.xlu0 %193
      %195 = vrot.lane.b32.xlu0 %v159, 112
      %v196 = vpop.permute.xlu0 %195
      %vm197 = vcmask 916480
      %v198 = vsel %vm197, %v192, %v194
      %v199 = vsel %vm197, %v194, %v196
      %202 = vst [vmem:[#allocation2 + $0x30] sm:$0xff] %v198
      %203 = vst [vmem:[#allocation2 + $0x38] sm:$0xff] %v199
      %204 = vrot.lane.b32.xlu0 %v157, 111
      %v205 = vpop.permute.xlu0 %204
      %206 = vrot.lane.b32.xlu0 %v158, 111
      %v207 = vpop.permute.xlu0 %206
      %208 = vrot.lane.b32.xlu0 %v159, 111
      %v209 = vpop.permute.xlu0 %208
      %vm210 = vcmask 908288
      %v211 = vsel %vm210, %v205, %v207
      %v212 = vsel %vm210, %v207, %v209
      %215 = vst [vmem:[#allocation2 + $0x40] sm:$0xff] %v211
      %216 = vst [vmem:[#allocation2 + $0x48] sm:$0xff] %v212
      %217 = vrot.lane.b32.xlu0 %v157, 110
      %v218 = vpop.permute.xlu0 %217
      %219 = vrot.lane.b32.xlu0 %v158, 110
      %v220 = vpop.permute.xlu0 %219
      %221 = vrot.lane.b32.xlu0 %v159, 110
      %v222 = vpop.permute.xlu0 %221
      %vm223 = vcmask 900096
      %v224 = vsel %vm223, %v218, %v220
      %v225 = vsel %vm223, %v220, %v222
      %228 = vst [vmem:[#allocation2 + $0x50] sm:$0xff] %v224
      %229 = vst [vmem:[#allocation2 + $0x58] sm:$0xff] %v225
      %230 = vrot.lane.b32.xlu0 %v157, 96
      %v231 = vpop.permute.xlu0 %230
      %232 = vrot.lane.b32.xlu0 %v158, 96
      %v233 = vpop.permute.xlu0 %232
      %234 = vrot.lane.b32.xlu0 %v159, 96
      %v235 = vpop.permute.xlu0 %234
      %vm236 = vcmask 785408
      %v237 = vsel %vm236, %v231, %v233
      %v238 = vsel %vm236, %v233, %v235
      %241 = vst [vmem:[#allocation2 + $0x60] sm:$0xff] %v237
      %242 = vst [vmem:[#allocation2 + $0x68] sm:$0xff] %v238
      %243 = vrot.lane.b32.xlu0 %v157, 95
      %v244 = vpop.permute.xlu0 %243
      %245 = vrot.lane.b32.xlu0 %v158, 95
      %v246 = vpop.permute.xlu0 %245
      %247 = vrot.lane.b32.xlu0 %v159, 95
      %v248 = vpop.permute.xlu0 %247
      %vm249 = vcmask 777216
      %v250 = vsel %vm249, %v244, %v246
      %v251 = vsel %vm249, %v246, %v248
      %254 = vst [vmem:[#allocation2 + $0x70] sm:$0xff] %v250
      %255 = vst [vmem:[#allocation2 + $0x78] sm:$0xff] %v251
      %256 = vrot.lane.b32.xlu0 %v157, 94
      %v257 = vpop.permute.xlu0 %256
      %258 = vrot.lane.b32.xlu0 %v158, 94
      %v259 = vpop.permute.xlu0 %258
      %260 = vrot.lane.b32.xlu0 %v159, 94
      %v261 = vpop.permute.xlu0 %260
      %vm262 = vcmask 769024
      %v263 = vsel %vm262, %v257, %v259
      %v264 = vsel %vm262, %v259, %v261
      %267 = vst [vmem:[#allocation2 + $0x80] sm:$0xff] %v263
      %268 = vst [vmem:[#allocation2 + $0x88] sm:$0xff] %v264
      %v269 = vld [vmem:[%s156 + $0x28] sm:$0xff]
      %v270 = vld [vmem:[%s156 + $0x30] sm:$0xff]
      %v271 = vld [vmem:[%s156 + $0x38] sm:$0xff]
      %272 = vst [vmem:[#allocation2 + $0x90] sm:$0xff] %v269
      %273 = vst [vmem:[#allocation2 + $0x98] sm:$0xff] %v270
      %277 = vrot.lane.b32.xlu0 %v269, 127
      %v278 = vpop.permute.xlu0 %277
      %279 = vrot.lane.b32.xlu0 %v270, 127
      %v280 = vpop.permute.xlu0 %279
      %281 = vrot.lane.b32.xlu0 %v271, 127
      %v282 = vpop.permute.xlu0 %281
      %v283 = vsel %vm171, %v278, %v280
      %v284 = vsel %vm171, %v280, %v282
      %287 = vst [vmem:[#allocation2 + $0xa0] sm:$0xff] %v283
      %288 = vst [vmem:[#allocation2 + $0xa8] sm:$0xff] %v284
      %289 = vrot.lane.b32.xlu0 %v269, 126
      %v290 = vpop.permute.xlu0 %289
      %291 = vrot.lane.b32.xlu0 %v270, 126
      %v292 = vpop.permute.xlu0 %291
      %293 = vrot.lane.b32.xlu0 %v271, 126
      %v294 = vpop.permute.xlu0 %293
      %v295 = vsel %vm184, %v290, %v292
      %v296 = vsel %vm184, %v292, %v294
      %299 = vst [vmem:[#allocation2 + $0xb0] sm:$0xff] %v295
      %300 = vst [vmem:[#allocation2 + $0xb8] sm:$0xff] %v296
      %301 = vrot.lane.b32.xlu0 %v269, 112
      %v302 = vpop.permute.xlu0 %301
      %303 = vrot.lane.b32.xlu0 %v270, 112
      %v304 = vpop.permute.xlu0 %303
      %305 = vrot.lane.b32.xlu0 %v271, 112
      %v306 = vpop.permute.xlu0 %305
      %v307 = vsel %vm197, %v302, %v304
      %v308 = vsel %vm197, %v304, %v306
      %311 = vst [vmem:[#allocation2 + $0xc0] sm:$0xff] %v307
      %312 = vst [vmem:[#allocation2 + $0xc8] sm:$0xff] %v308
      %313 = vrot.lane.b32.xlu0 %v269, 111
      %v314 = vpop.permute.xlu0 %313
      %315 = vrot.lane.b32.xlu0 %v270, 111
      %v316 = vpop.permute.xlu0 %315
      %317 = vrot.lane.b32.xlu0 %v271, 111
      %v318 = vpop.permute.xlu0 %317
      %v319 = vsel %vm210, %v314, %v316
      %v320 = vsel %vm210, %v316, %v318
      %323 = vst [vmem:[#allocation2 + $0xd0] sm:$0xff] %v319
      %324 = vst [vmem:[#allocation2 + $0xd8] sm:$0xff] %v320
      %325 = vrot.lane.b32.xlu0 %v269, 110
      %v326 = vpop.permute.xlu0 %325
      %327 = vrot.lane.b32.xlu0 %v270, 110
      %v328 = vpop.permute.xlu0 %327
      %329 = vrot.lane.b32.xlu0 %v271, 110
      %v330 = vpop.permute.xlu0 %329
      %v331 = vsel %vm223, %v326, %v328
      %v332 = vsel %vm223, %v328, %v330
      %335 = vst [vmem:[#allocation2 + $0xe0] sm:$0xff] %v331
      %336 = vst [vmem:[#allocation2 + $0xe8] sm:$0xff] %v332
      %337 = vrot.lane.b32.xlu0 %v269, 96
      %v338 = vpop.permute.xlu0 %337
      %339 = vrot.lane.b32.xlu0 %v270, 96
      %v340 = vpop.permute.xlu0 %339
      %341 = vrot.lane.b32.xlu0 %v271, 96
      %v342 = vpop.permute.xlu0 %341
      %v343 = vsel %vm236, %v338, %v340
      %v344 = vsel %vm236, %v340, %v342
      %347 = vst [vmem:[#allocation2 + $0xf0] sm:$0xff] %v343
      %348 = vst [vmem:[#allocation2 + $0xf8] sm:$0xff] %v344
      %349 = vrot.lane.b32.xlu0 %v269, 95
      %v350 = vpop.permute.xlu0 %349
      %351 = vrot.lane.b32.xlu0 %v270, 95
      %v352 = vpop.permute.xlu0 %351
      %353 = vrot.lane.b32.xlu0 %v271, 95
      %v354 = vpop.permute.xlu0 %353
      %v355 = vsel %vm249, %v350, %v352
      %v356 = vsel %vm249, %v352, %v354
      %359 = vst [vmem:[#allocation2 + $0x100] sm:$0xff] %v355
      %360 = vst [vmem:[#allocation2 + $0x108] sm:$0xff] %v356
      %361 = vrot.lane.b32.xlu0 %v269, 94
      %v362 = vpop.permute.xlu0 %361
      %363 = vrot.lane.b32.xlu0 %v270, 94
      %v364 = vpop.permute.xlu0 %363
      %365 = vrot.lane.b32.xlu0 %v271, 94
      %v366 = vpop.permute.xlu0 %365
      %v367 = vsel %vm262, %v362, %v364
      %v368 = vsel %vm262, %v364, %v366
      %371 = vst [vmem:[#allocation2 + $0x110] sm:$0xff] %v367
      %372 = vst [vmem:[#allocation2 + $0x118] sm:$0xff] %v368
      %v373 = vld [vmem:[%s156 + $0x50] sm:$0xff]
      %v374 = vld [vmem:[%s156 + $0x58] sm:$0xff]
      %v375 = vld [vmem:[%s156 + $0x60] sm:$0xff]
      %376 = vst [vmem:[#allocation2 + $0x120] sm:$0xff] %v373
      %377 = vst [vmem:[#allocation2 + $0x128] sm:$0xff] %v374
      %381 = vrot.lane.b32.xlu0 %v373, 127
      %v382 = vpop.permute.xlu0 %381
      %383 = vrot.lane.b32.xlu0 %v374, 127
      %v384 = vpop.permute.xlu0 %383
      %385 = vrot.lane.b32.xlu0 %v375, 127
      %v386 = vpop.permute.xlu0 %385
      %v387 = vsel %vm171, %v382, %v384
      %v388 = vsel %vm171, %v384, %v386
      %391 = vst [vmem:[#allocation2 + $0x130] sm:$0xff] %v387
      %392 = vst [vmem:[#allocation2 + $0x138] sm:$0xff] %v388
      %393 = vrot.lane.b32.xlu0 %v373, 126
      %v394 = vpop.permute.xlu0 %393
      %395 = vrot.lane.b32.xlu0 %v374, 126
      %v396 = vpop.permute.xlu0 %395
      %397 = vrot.lane.b32.xlu0 %v375, 126
      %v398 = vpop.permute.xlu0 %397
      %v399 = vsel %vm184, %v394, %v396
      %v400 = vsel %vm184, %v396, %v398
      %403 = vst [vmem:[#allocation2 + $0x140] sm:$0xff] %v399
      %404 = vst [vmem:[#allocation2 + $0x148] sm:$0xff] %v400
      %405 = vrot.lane.b32.xlu0 %v373, 112
      %v406 = vpop.permute.xlu0 %405
      %407 = vrot.lane.b32.xlu0 %v374, 112
      %v408 = vpop.permute.xlu0 %407
      %409 = vrot.lane.b32.xlu0 %v375, 112
      %v410 = vpop.permute.xlu0 %409
      %v411 = vsel %vm197, %v406, %v408
      %v412 = vsel %vm197, %v408, %v410
      %415 = vst [vmem:[#allocation2 + $0x150] sm:$0xff] %v411
      %416 = vst [vmem:[#allocation2 + $0x158] sm:$0xff] %v412
      %417 = vrot.lane.b32.xlu0 %v373, 111
      %v418 = vpop.permute.xlu0 %417
      %419 = vrot.lane.b32.xlu0 %v374, 111
      %v420 = vpop.permute.xlu0 %419
      %421 = vrot.lane.b32.xlu0 %v375, 111
      %v422 = vpop.permute.xlu0 %421
      %v423 = vsel %vm210, %v418, %v420
      %v424 = vsel %vm210, %v420, %v422
      %427 = vst [vmem:[#allocation2 + $0x160] sm:$0xff] %v423
      %428 = vst [vmem:[#allocation2 + $0x168] sm:$0xff] %v424
      %429 = vrot.lane.b32.xlu0 %v373, 110
      %v430 = vpop.permute.xlu0 %429
      %431 = vrot.lane.b32.xlu0 %v374, 110
      %v432 = vpop.permute.xlu0 %431
      %433 = vrot.lane.b32.xlu0 %v375, 110
      %v434 = vpop.permute.xlu0 %433
      %v435 = vsel %vm223, %v430, %v432
      %v436 = vsel %vm223, %v432, %v434
      %439 = vst [vmem:[#allocation2 + $0x170] sm:$0xff] %v435
      %440 = vst [vmem:[#allocation2 + $0x178] sm:$0xff] %v436
      %441 = vrot.lane.b32.xlu0 %v373, 96
      %v442 = vpop.permute.xlu0 %441
      %443 = vrot.lane.b32.xlu0 %v374, 96
      %v444 = vpop.permute.xlu0 %443
      %445 = vrot.lane.b32.xlu0 %v375, 96
      %v446 = vpop.permute.xlu0 %445
      %v447 = vsel %vm236, %v442, %v444
      %v448 = vsel %vm236, %v444, %v446
      %451 = vst [vmem:[#allocation2 + $0x180] sm:$0xff] %v447
      %452 = vst [vmem:[#allocation2 + $0x188] sm:$0xff] %v448
      %453 = vrot.lane.b32.xlu0 %v373, 95
      %v454 = vpop.permute.xlu0 %453
      %455 = vrot.lane.b32.xlu0 %v374, 95
      %v456 = vpop.permute.xlu0 %455
      %457 = vrot.lane.b32.xlu0 %v375, 95
      %v458 = vpop.permute.xlu0 %457
      %v459 = vsel %vm249, %v454, %v456
      %v460 = vsel %vm249, %v456, %v458
      %463 = vst [vmem:[#allocation2 + $0x190] sm:$0xff] %v459
      %464 = vst [vmem:[#allocation2 + $0x198] sm:$0xff] %v460
      %465 = vrot.lane.b32.xlu0 %v373, 94
      %v466 = vpop.permute.xlu0 %465
      %467 = vrot.lane.b32.xlu0 %v374, 94
      %v468 = vpop.permute.xlu0 %467
      %469 = vrot.lane.b32.xlu0 %v375, 94
      %v470 = vpop.permute.xlu0 %469
      %v471 = vsel %vm262, %v466, %v468
      %v472 = vsel %vm262, %v468, %v470
      %475 = vst [vmem:[#allocation2 + $0x1a0] sm:$0xff] %v471
      %476 = vst [vmem:[#allocation2 + $0x1a8] sm:$0xff] %v472
      %v477 = vld [vmem:[%s156 + $0x78] sm:$0xff]
      %v478 = vld [vmem:[%s156 + $0x80] sm:$0xff]
      %v479 = vld [vmem:[%s156 + $0x88] sm:$0xff]
      %480 = vst [vmem:[#allocation2 + $0x1b0] sm:$0xff] %v477
      %481 = vst [vmem:[#allocation2 + $0x1b8] sm:$0xff] %v478
      %485 = vrot.lane.b32.xlu0 %v477, 127
      %v486 = vpop.permute.xlu0 %485
      %487 = vrot.lane.b32.xlu0 %v478, 127
      %v488 = vpop.permute.xlu0 %487
      %489 = vrot.lane.b32.xlu0 %v479, 127
      %v490 = vpop.permute.xlu0 %489
      %v491 = vsel %vm171, %v486, %v488
      %v492 = vsel %vm171, %v488, %v490
      %495 = vst [vmem:[#allocation2 + $0x1c0] sm:$0xff] %v491
      %496 = vst [vmem:[#allocation2 + $0x1c8] sm:$0xff] %v492
      %497 = vrot.lane.b32.xlu0 %v477, 126
      %v498 = vpop.permute.xlu0 %497
      %499 = vrot.lane.b32.xlu0 %v478, 126
      %v500 = vpop.permute.xlu0 %499
      %501 = vrot.lane.b32.xlu0 %v479, 126
      %v502 = vpop.permute.xlu0 %501
      %v503 = vsel %vm184, %v498, %v500
      %v504 = vsel %vm184, %v500, %v502
      %507 = vst [vmem:[#allocation2 + $0x1d0] sm:$0xff] %v503
      %508 = vst [vmem:[#allocation2 + $0x1d8] sm:$0xff] %v504
      %509 = vrot.lane.b32.xlu0 %v477, 112
      %v510 = vpop.permute.xlu0 %509
      %511 = vrot.lane.b32.xlu0 %v478, 112
      %v512 = vpop.permute.xlu0 %511
      %513 = vrot.lane.b32.xlu0 %v479, 112
      %v514 = vpop.permute.xlu0 %513
      %v515 = vsel %vm197, %v510, %v512
      %v516 = vsel %vm197, %v512, %v514
      %519 = vst [vmem:[#allocation2 + $0x1e0] sm:$0xff] %v515
      %520 = vst [vmem:[#allocation2 + $0x1e8] sm:$0xff] %v516
      %521 = vrot.lane.b32.xlu0 %v477, 111
      %v522 = vpop.permute.xlu0 %521
      %523 = vrot.lane.b32.xlu0 %v478, 111
      %v524 = vpop.permute.xlu0 %523
      %525 = vrot.lane.b32.xlu0 %v479, 111
      %v526 = vpop.permute.xlu0 %525
      %v527 = vsel %vm210, %v522, %v524
      %v528 = vsel %vm210, %v524, %v526
      %531 = vst [vmem:[#allocation2 + $0x1f0] sm:$0xff] %v527
      %532 = vst [vmem:[#allocation2 + $0x1f8] sm:$0xff] %v528
      %533 = vrot.lane.b32.xlu0 %v477, 110
      %v534 = vpop.permute.xlu0 %533
      %535 = vrot.lane.b32.xlu0 %v478, 110
      %v536 = vpop.permute.xlu0 %535
      %537 = vrot.lane.b32.xlu0 %v479, 110
      %v538 = vpop.permute.xlu0 %537
      %v539 = vsel %vm223, %v534, %v536
      %v540 = vsel %vm223, %v536, %v538
      %543 = vst [vmem:[#allocation2 + $0x200] sm:$0xff] %v539
      %544 = vst [vmem:[#allocation2 + $0x208] sm:$0xff] %v540
      %545 = vrot.lane.b32.xlu0 %v477, 96
      %v546 = vpop.permute.xlu0 %545
      %547 = vrot.lane.b32.xlu0 %v478, 96
      %v548 = vpop.permute.xlu0 %547
      %549 = vrot.lane.b32.xlu0 %v479, 96
      %v550 = vpop.permute.xlu0 %549
      %v551 = vsel %vm236, %v546, %v548
      %v552 = vsel %vm236, %v548, %v550
      %555 = vst [vmem:[#allocation2 + $0x210] sm:$0xff] %v551
      %556 = vst [vmem:[#allocation2 + $0x218] sm:$0xff] %v552
      %557 = vrot.lane.b32.xlu0 %v477, 95
      %v558 = vpop.permute.xlu0 %557
      %559 = vrot.lane.b32.xlu0 %v478, 95
      %v560 = vpop.permute.xlu0 %559
      %561 = vrot.lane.b32.xlu0 %v479, 95
      %v562 = vpop.permute.xlu0 %561
      %v563 = vsel %vm249, %v558, %v560
      %v564 = vsel %vm249, %v560, %v562
      %567 = vst [vmem:[#allocation2 + $0x220] sm:$0xff] %v563
      %568 = vst [vmem:[#allocation2 + $0x228] sm:$0xff] %v564
      %569 = vrot.lane.b32.xlu0 %v477, 94
      %v570 = vpop.permute.xlu0 %569
      %571 = vrot.lane.b32.xlu0 %v478, 94
      %v572 = vpop.permute.xlu0 %571
      %573 = vrot.lane.b32.xlu0 %v479, 94
      %v574 = vpop.permute.xlu0 %573
      %v575 = vsel %vm262, %v570, %v572
      %v576 = vsel %vm262, %v572, %v574
      %579 = vst [vmem:[#allocation2 + $0x230] sm:$0xff] %v575
      %580 = vst [vmem:[#allocation2 + $0x238] sm:$0xff] %v576
      %v581 = vld [vmem:[#allocation2] sm:$0xff]
      %v582 = vld [vmem:[#allocation2 + $0x8] sm:$0xff]
      %v583 = vld [vmem:[#allocation2 + $0x10] sm:$0xff]
      %v584 = vld [vmem:[#allocation2 + $0x18] sm:$0xff]
      %v585 = vld [vmem:[#allocation2 + $0x20] sm:$0xff]
      %v586 = vld [vmem:[#allocation2 + $0x28] sm:$0xff]
      %v587 = vld [vmem:[#allocation2 + $0x30] sm:$0xff]
      %v588 = vld [vmem:[#allocation2 + $0x38] sm:$0xff]
      %v589 = vld [vmem:[#allocation2 + $0x40] sm:$0xff]
      %v590 = vld [vmem:[#allocation2 + $0x48] sm:$0xff]
      %v591 = vld [vmem:[#allocation2 + $0x50] sm:$0xff]
      %v592 = vld [vmem:[#allocation2 + $0x58] sm:$0xff]
      %v593 = vld [vmem:[#allocation2 + $0x60] sm:$0xff]
      %v594 = vld [vmem:[#allocation2 + $0x68] sm:$0xff]
      %v595 = vld [vmem:[#allocation2 + $0x70] sm:$0xff]
      %v596 = vld [vmem:[#allocation2 + $0x78] sm:$0xff]
      %v597 = vld [vmem:[#allocation2 + $0x80] sm:$0xff]
      %v598 = vld [vmem:[#allocation2 + $0x88] sm:$0xff]
      %v599 = vld [vmem:[#allocation2 + $0x90] sm:$0xff]
      %v600 = vld [vmem:[#allocation2 + $0x98] sm:$0xff]
      %v601 = vld [vmem:[#allocation2 + $0xa0] sm:$0xff]
      %v602 = vld [vmem:[#allocation2 + $0xa8] sm:$0xff]
      %v603 = vld [vmem:[#allocation2 + $0xb0] sm:$0xff]
      %v604 = vld [vmem:[#allocation2 + $0xb8] sm:$0xff]
      %v605 = vld [vmem:[#allocation2 + $0xc0] sm:$0xff]
      %v606 = vld [vmem:[#allocation2 + $0xc8] sm:$0xff]
      %v607 = vld [vmem:[#allocation2 + $0xd0] sm:$0xff]
      %v608 = vld [vmem:[#allocation2 + $0xd8] sm:$0xff]
      %v609 = vld [vmem:[#allocation2 + $0xe0] sm:$0xff]
      %v610 = vld [vmem:[#allocation2 + $0xe8] sm:$0xff]
      %v611 = vld [vmem:[#allocation2 + $0xf0] sm:$0xff]
      %v612 = vld [vmem:[#allocation2 + $0xf8] sm:$0xff]
      %v613 = vld [vmem:[#allocation2 + $0x100] sm:$0xff]
      %v614 = vld [vmem:[#allocation2 + $0x108] sm:$0xff]
      %v615 = vld [vmem:[#allocation2 + $0x110] sm:$0xff]
      %v616 = vld [vmem:[#allocation2 + $0x118] sm:$0xff]
      %v617 = vld [vmem:[#allocation2 + $0x120] sm:$0xff]
      %v618 = vld [vmem:[#allocation2 + $0x128] sm:$0xff]
      %v619 = vld [vmem:[#allocation2 + $0x130] sm:$0xff]
      %v620 = vld [vmem:[#allocation2 + $0x138] sm:$0xff]
      %v621 = vld [vmem:[#allocation2 + $0x140] sm:$0xff]
      %v622 = vld [vmem:[#allocation2 + $0x148] sm:$0xff]
      %v623 = vld [vmem:[#allocation2 + $0x150] sm:$0xff]
      %v624 = vld [vmem:[#allocation2 + $0x158] sm:$0xff]
      %v625 = vld [vmem:[#allocation2 + $0x160] sm:$0xff]
      %v626 = vld [vmem:[#allocation2 + $0x168] sm:$0xff]
      %v627 = vld [vmem:[#allocation2 + $0x170] sm:$0xff]
      %v628 = vld [vmem:[#allocation2 + $0x178] sm:$0xff]
      %v629 = vld [vmem:[#allocation2 + $0x180] sm:$0xff]
      %v630 = vld [vmem:[#allocation2 + $0x188] sm:$0xff]
      %v631 = vld [vmem:[#allocation2 + $0x190] sm:$0xff]
      %v632 = vld [vmem:[#allocation2 + $0x198] sm:$0xff]
      %v633 = vld [vmem:[#allocation2 + $0x1a0] sm:$0xff]
      %v634 = vld [vmem:[#allocation2 + $0x1a8] sm:$0xff]
      %v635 = vld [vmem:[#allocation2 + $0x1b0] sm:$0xff]
      %v636 = vld [vmem:[#allocation2 + $0x1b8] sm:$0xff]
      %v637 = vld [vmem:[#allocation2 + $0x1c0] sm:$0xff]
      %v638 = vld [vmem:[#allocation2 + $0x1c8] sm:$0xff]
      %v639 = vld [vmem:[#allocation2 + $0x1d0] sm:$0xff]
      %v640 = vld [vmem:[#allocation2 + $0x1d8] sm:$0xff]
      %v641 = vld [vmem:[#allocation2 + $0x1e0] sm:$0xff]
      %v642 = vld [vmem:[#allocation2 + $0x1e8] sm:$0xff]
      %v643 = vld [vmem:[#allocation2 + $0x1f0] sm:$0xff]
      %v644 = vld [vmem:[#allocation2 + $0x1f8] sm:$0xff]
      %v645 = vld [vmem:[#allocation2 + $0x200] sm:$0xff]
      %v646 = vld [vmem:[#allocation2 + $0x208] sm:$0xff]
      %v647 = vld [vmem:[#allocation2 + $0x210] sm:$0xff]
      %v648 = vld [vmem:[#allocation2 + $0x218] sm:$0xff]
      %v649 = vld [vmem:[#allocation2 + $0x220] sm:$0xff]
      %v650 = vld [vmem:[#allocation2 + $0x228] sm:$0xff]
      %v651 = vld [vmem:[#allocation2 + $0x230] sm:$0xff]
      %v652 = vld [vmem:[#allocation2 + $0x238] sm:$0xff]
      %v653 = vld [vmem:[%s1] sm:$0x3f]
      %v654 = vld [vmem:[%s1 + $0x8] sm:$0x3f]
      %v655 = vld [vmem:[%s1 + $0x10] sm:$0x3f]
      %vm656 = vcmask 261120
      %v658 = vsel %vm656, %v655, 0
      %660 = vmatpush.msra.mxu0 %v611
      %661 = vmatpush.msra.mxu0 %v609
      %662 = vmatpush.msra.mxu0 %v607
      %663 = vmatpush.msra.mxu0 %v605
      %664 = vmatpush.msra.mxu0 %v603
      %665 = vmatpush.msra.mxu0 %v601
      %666 = vmatpush.msra.mxu0 %v599
      %667 = vmatpush.msra.mxu0 %v597
      %668 = vmatpush.msra.mxu0 %v595
      %669 = vmatpush.msra.mxu0 %v593
      %670 = vmatpush.msra.mxu0 %v591
      %671 = vmatpush.msra.mxu0 %v589
      %672 = vmatpush.msra.mxu0 %v587
      %673 = vmatpush.msra.mxu0 %v585
      %674 = vmatpush.msra.mxu0 %v583
      %675 = vmatpush.msra.mxu0 %v581
      %676 = vmatmul.f32.gmra.mxu0 %v653
      %v677 = vpop.f32.mrf.mxu0
      %v678 = vadd.f32 0.0, %v677
      %679 = vdwg.mxu0
      %680 = vmatpush.msra.mxu0 %v643
      %681 = vmatpush.msra.mxu0 %v641
      %682 = vmatpush.msra.mxu0 %v639
      %683 = vmatpush.msra.mxu0 %v637
      %684 = vmatpush.msra.mxu0 %v635
      %685 = vmatpush.msra.mxu0 %v633
      %686 = vmatpush.msra.mxu0 %v631
      %687 = vmatpush.msra.mxu0 %v629
      %688 = vmatpush.msra.mxu0 %v627
      %689 = vmatpush.msra.mxu0 %v625
      %690 = vmatpush.msra.mxu0 %v623
      %691 = vmatpush.msra.mxu0 %v621
      %692 = vmatpush.msra.mxu0 %v619
      %693 = vmatpush.msra.mxu0 %v617
      %694 = vmatpush.msra.mxu0 %v615
      %695 = vmatpush.msra.mxu0 %v613
      %696 = vmatmul.f32.gmra.mxu0 %v654
      %v697 = vpop.f32.mrf.mxu0
      %v698 = vadd.f32 %v678, %v697
      %699 = vdwg.mxu0
      %700 = vmatpush.msra.mxu0 0.0
      %701 = vmatpush.msra.mxu0 0.0
      %702 = vmatpush.msra.mxu0 0.0
      %703 = vmatpush.msra.mxu0 0.0
      %704 = vmatpush.msra.mxu0 0.0
      %705 = vmatpush.msra.mxu0 0.0
      %706 = vmatpush.msra.mxu0 0.0
      %707 = vmatpush.msra.mxu0 0.0
      %708 = vmatpush.msra.mxu0 0.0
      %709 = vmatpush.msra.mxu0 0.0
      %710 = vmatpush.msra.mxu0 0.0
      %711 = vmatpush.msra.mxu0 0.0
      %712 = vmatpush.msra.mxu0 %v651
      %713 = vmatpush.msra.mxu0 %v649
      %714 = vmatpush.msra.mxu0 %v647
      %715 = vmatpush.msra.mxu0 %v645
      %716 = vmatmul.f32.gmra.mxu0 %v658
      %v717 = vpop.f32.mrf.mxu0
      %v718 = vadd.f32 %v698, %v717
      %719 = vdwg.mxu0
      %720 = vmatpush.msra.mxu0 %v612
      %721 = vmatpush.msra.mxu0 %v610
      %722 = vmatpush.msra.mxu0 %v608
      %723 = vmatpush.msra.mxu0 %v606
      %724 = vmatpush.msra.mxu0 %v604
      %725 = vmatpush.msra.mxu0 %v602
      %726 = vmatpush.msra.mxu0 %v600
      %727 = vmatpush.msra.mxu0 %v598
      %728 = vmatpush.msra.mxu0 %v596
      %729 = vmatpush.msra.mxu0 %v594
      %730 = vmatpush.msra.mxu0 %v592
      %731 = vmatpush.msra.mxu0 %v590
      %732 = vmatpush.msra.mxu0 %v588
      %733 = vmatpush.msra.mxu0 %v586
      %734 = vmatpush.msra.mxu0 %v584
      %735 = vmatpush.msra.mxu0 %v582
      %736 = vmatmul.f32.gmra.mxu0 %v653
      %v737 = vpop.f32.mrf.mxu0
      %v738 = vadd.f32 0.0, %v737
      %739 = vdwg.mxu0
      %740 = vmatpush.msra.mxu0 %v644
      %741 = vmatpush.msra.mxu0 %v642
      %742 = vmatpush.msra.mxu0 %v640
      %743 = vmatpush.msra.mxu0 %v638
      %744 = vmatpush.msra.mxu0 %v636
      %745 = vmatpush.msra.mxu0 %v634
      %746 = vmatpush.msra.mxu0 %v632
      %747 = vmatpush.msra.mxu0 %v630
      %748 = vmatpush.msra.mxu0 %v628
      %749 = vmatpush.msra.mxu0 %v626
      %750 = vmatpush.msra.mxu0 %v624
      %751 = vmatpush.msra.mxu0 %v622
      %752 = vmatpush.msra.mxu0 %v620
      %753 = vmatpush.msra.mxu0 %v618
      %754 = vmatpush.msra.mxu0 %v616
      %755 = vmatpush.msra.mxu0 %v614
      %756 = vmatmul.f32.gmra.mxu0 %v654
      %v757 = vpop.f32.mrf.mxu0
      %v758 = vadd.f32 %v738, %v757
      %759 = vdwg.mxu0
      %760 = vmatpush.msra.mxu0 0.0
      %761 = vmatpush.msra.mxu0 0.0
      %762 = vmatpush.msra.mxu0 0.0
      %763 = vmatpush.msra.mxu0 0.0
      %764 = vmatpush.msra.mxu0 0.0
      %765 = vmatpush.msra.mxu0 0.0
      %766 = vmatpush.msra.mxu0 0.0
      %767 = vmatpush.msra.mxu0 0.0
      %768 = vmatpush.msra.mxu0 0.0
      %769 = vmatpush.msra.mxu0 0.0
      %770 = vmatpush.msra.mxu0 0.0
      %771 = vmatpush.msra.mxu0 0.0
      %772 = vmatpush.msra.mxu0 %v652
      %773 = vmatpush.msra.mxu0 %v650
      %774 = vmatpush.msra.mxu0 %v648
      %775 = vmatpush.msra.mxu0 %v646
      %776 = vmatmul.f32.gmra.mxu0 %v658
      %v777 = vpop.f32.mrf.mxu0
      %v778 = vadd.f32 %v758, %v777
      %779 = vdwg.mxu0
      %s780 = scalar_lea.vmem %s1, 24
      %v781 = vld [vmem:[%s780] sm:$0x3f]
      %v782 = vld [vmem:[%s780 + $0x8] sm:$0x3f]
      %v783 = vld [vmem:[%s780 + $0x10] sm:$0x3f]
      %v785 = vsel %vm656, %v783, 0
      %787 = vmatpush.msra.mxu0 %v611
      %788 = vmatpush.msra.mxu0 %v609
      %789 = vmatpush.msra.mxu0 %v607
      %790 = vmatpush.msra.mxu0 %v605
      %791 = vmatpush.msra.mxu0 %v603
      %792 = vmatpush.msra.mxu0 %v601
      %793 = vmatpush.msra.mxu0 %v599
      %794 = vmatpush.msra.mxu0 %v597
      %795 = vmatpush.msra.mxu0 %v595
      %796 = vmatpush.msra.mxu0 %v593
      %797 = vmatpush.msra.mxu0 %v591
      %798 = vmatpush.msra.mxu0 %v589
      %799 = vmatpush.msra.mxu0 %v587
      %800 = vmatpush.msra.mxu0 %v585
      %801 = vmatpush.msra.mxu0 %v583
      %802 = vmatpush.msra.mxu0 %v581
      %803 = vmatmul.f32.gmra.mxu0 %v781
      %v804 = vpop.f32.mrf.mxu0
      %v805 = vadd.f32 0.0, %v804
      %806 = vdwg.mxu0
      %807 = vmatpush.msra.mxu0 %v643
      %808 = vmatpush.msra.mxu0 %v641
      %809 = vmatpush.msra.mxu0 %v639
      %810 = vmatpush.msra.mxu0 %v637
      %811 = vmatpush.msra.mxu0 %v635
      %812 = vmatpush.msra.mxu0 %v633
      %813 = vmatpush.msra.mxu0 %v631
      %814 = vmatpush.msra.mxu0 %v629
      %815 = vmatpush.msra.mxu0 %v627
      %816 = vmatpush.msra.mxu0 %v625
      %817 = vmatpush.msra.mxu0 %v623
      %818 = vmatpush.msra.mxu0 %v621
      %819 = vmatpush.msra.mxu0 %v619
      %820 = vmatpush.msra.mxu0 %v617
      %821 = vmatpush.msra.mxu0 %v615
      %822 = vmatpush.msra.mxu0 %v613
      %823 = vmatmul.f32.gmra.mxu0 %v782
      %v824 = vpop.f32.mrf.mxu0
      %v825 = vadd.f32 %v805, %v824
      %826 = vdwg.mxu0
      %827 = vmatpush.msra.mxu0 0.0
      %828 = vmatpush.msra.mxu0 0.0
      %829 = vmatpush.msra.mxu0 0.0
      %830 = vmatpush.msra.mxu0 0.0
      %831 = vmatpush.msra.mxu0 0.0
      %832 = vmatpush.msra.mxu0 0.0
      %833 = vmatpush.msra.mxu0 0.0
      %834 = vmatpush.msra.mxu0 0.0
      %835 = vmatpush.msra.mxu0 0.0
      %836 = vmatpush.msra.mxu0 0.0
      %837 = vmatpush.msra.mxu0 0.0
      %838 = vmatpush.msra.mxu0 0.0
      %839 = vmatpush.msra.mxu0 %v651
      %840 = vmatpush.msra.mxu0 %v649
      %841 = vmatpush.msra.mxu0 %v647
      %842 = vmatpush.msra.mxu0 %v645
      %843 = vmatmul.f32.gmra.mxu0 %v785
      %v844 = vpop.f32.mrf.mxu0
      %v845 = vadd.f32 %v825, %v844
      %846 = vdwg.mxu0
      %847 = vmatpush.msra.mxu0 %v612
      %848 = vmatpush.msra.mxu0 %v610
      %849 = vmatpush.msra.mxu0 %v608
      %850 = vmatpush.msra.mxu0 %v606
      %851 = vmatpush.msra.mxu0 %v604
      %852 = vmatpush.msra.mxu0 %v602
      %853 = vmatpush.msra.mxu0 %v600
      %854 = vmatpush.msra.mxu0 %v598
      %855 = vmatpush.msra.mxu0 %v596
      %856 = vmatpush.msra.mxu0 %v594
      %857 = vmatpush.msra.mxu0 %v592
      %858 = vmatpush.msra.mxu0 %v590
      %859 = vmatpush.msra.mxu0 %v588
      %860 = vmatpush.msra.mxu0 %v586
      %861 = vmatpush.msra.mxu0 %v584
      %862 = vmatpush.msra.mxu0 %v582
      %863 = vmatmul.f32.gmra.mxu0 %v781
      %v864 = vpop.f32.mrf.mxu0
      %v865 = vadd.f32 0.0, %v864
      %866 = vdwg.mxu0
      %867 = vmatpush.msra.mxu0 %v644
      %868 = vmatpush.msra.mxu0 %v642
      %869 = vmatpush.msra.mxu0 %v640
      %870 = vmatpush.msra.mxu0 %v638
      %871 = vmatpush.msra.mxu0 %v636
      %872 = vmatpush.msra.mxu0 %v634
      %873 = vmatpush.msra.mxu0 %v632
      %874 = vmatpush.msra.mxu0 %v630
      %875 = vmatpush.msra.mxu0 %v628
      %876 = vmatpush.msra.mxu0 %v626
      %877 = vmatpush.msra.mxu0 %v624
      %878 = vmatpush.msra.mxu0 %v622
      %879 = vmatpush.msra.mxu0 %v620
      %880 = vmatpush.msra.mxu0 %v618
      %881 = vmatpush.msra.mxu0 %v616
      %882 = vmatpush.msra.mxu0 %v614
      %883 = vmatmul.f32.gmra.mxu0 %v782
      %v884 = vpop.f32.mrf.mxu0
      %v885 = vadd.f32 %v865, %v884
      %886 = vdwg.mxu0
      %887 = vmatpush.msra.mxu0 0.0
      %888 = vmatpush.msra.mxu0 0.0
      %889 = vmatpush.msra.mxu0 0.0
      %890 = vmatpush.msra.mxu0 0.0
      %891 = vmatpush.msra.mxu0 0.0
      %892 = vmatpush.msra.mxu0 0.0
      %893 = vmatpush.msra.mxu0 0.0
      %894 = vmatpush.msra.mxu0 0.0
      %895 = vmatpush.msra.mxu0 0.0
      %896 = vmatpush.msra.mxu0 0.0
      %897 = vmatpush.msra.mxu0 0.0
      %898 = vmatpush.msra.mxu0 0.0
      %899 = vmatpush.msra.mxu0 %v652
      %900 = vmatpush.msra.mxu0 %v650
      %901 = vmatpush.msra.mxu0 %v648
      %902 = vmatpush.msra.mxu0 %v646
      %903 = vmatmul.f32.gmra.mxu0 %v785
      %v904 = vpop.f32.mrf.mxu0
      %v905 = vadd.f32 %v885, %v904
      %906 = vdwg.mxu0
      %v907 = vmax.f32 %v718, %v845
      %v908 = vmax.f32 %v778, %v905
      %s909 = scalar_lea.vmem %s1, 48
      %v910 = vld [vmem:[%s909] sm:$0x3f]
      %v911 = vld [vmem:[%s909 + $0x8] sm:$0x3f]
      %v912 = vld [vmem:[%s909 + $0x10] sm:$0x3f]
      %v914 = vsel %vm656, %v912, 0
      %916 = vmatpush.msra.mxu0 %v611
      %917 = vmatpush.msra.mxu0 %v609
      %918 = vmatpush.msra.mxu0 %v607
      %919 = vmatpush.msra.mxu0 %v605
      %920 = vmatpush.msra.mxu0 %v603
      %921 = vmatpush.msra.mxu0 %v601
      %922 = vmatpush.msra.mxu0 %v599
      %923 = vmatpush.msra.mxu0 %v597
      %924 = vmatpush.msra.mxu0 %v595
      %925 = vmatpush.msra.mxu0 %v593
      %926 = vmatpush.msra.mxu0 %v591
      %927 = vmatpush.msra.mxu0 %v589
      %928 = vmatpush.msra.mxu0 %v587
      %929 = vmatpush.msra.mxu0 %v585
      %930 = vmatpush.msra.mxu0 %v583
      %931 = vmatpush.msra.mxu0 %v581
      %932 = vmatmul.f32.gmra.mxu0 %v910
      %v933 = vpop.f32.mrf.mxu0
      %v934 = vadd.f32 0.0, %v933
      %935 = vdwg.mxu0
      %936 = vmatpush.msra.mxu0 %v643
      %937 = vmatpush.msra.mxu0 %v641
      %938 = vmatpush.msra.mxu0 %v639
      %939 = vmatpush.msra.mxu0 %v637
      %940 = vmatpush.msra.mxu0 %v635
      %941 = vmatpush.msra.mxu0 %v633
      %942 = vmatpush.msra.mxu0 %v631
      %943 = vmatpush.msra.mxu0 %v629
      %944 = vmatpush.msra.mxu0 %v627
      %945 = vmatpush.msra.mxu0 %v625
      %946 = vmatpush.msra.mxu0 %v623
      %947 = vmatpush.msra.mxu0 %v621
      %948 = vmatpush.msra.mxu0 %v619
      %949 = vmatpush.msra.mxu0 %v617
      %950 = vmatpush.msra.mxu0 %v615
      %951 = vmatpush.msra.mxu0 %v613
      %952 = vmatmul.f32.gmra.mxu0 %v911
      %v953 = vpop.f32.mrf.mxu0
      %v954 = vadd.f32 %v934, %v953
      %955 = vdwg.mxu0
      %956 = vmatpush.msra.mxu0 0.0
      %957 = vmatpush.msra.mxu0 0.0
      %958 = vmatpush.msra.mxu0 0.0
      %959 = vmatpush.msra.mxu0 0.0
      %960 = vmatpush.msra.mxu0 0.0
      %961 = vmatpush.msra.mxu0 0.0
      %962 = vmatpush.msra.mxu0 0.0
      %963 = vmatpush.msra.mxu0 0.0
      %964 = vmatpush.msra.mxu0 0.0
      %965 = vmatpush.msra.mxu0 0.0
      %966 = vmatpush.msra.mxu0 0.0
      %967 = vmatpush.msra.mxu0 0.0
      %968 = vmatpush.msra.mxu0 %v651
      %969 = vmatpush.msra.mxu0 %v649
      %970 = vmatpush.msra.mxu0 %v647
      %971 = vmatpush.msra.mxu0 %v645
      %972 = vmatmul.f32.gmra.mxu0 %v914
      %v973 = vpop.f32.mrf.mxu0
      %v974 = vadd.f32 %v954, %v973
      %975 = vdwg.mxu0
      %976 = vmatpush.msra.mxu0 %v612
      %977 = vmatpush.msra.mxu0 %v610
      %978 = vmatpush.msra.mxu0 %v608
      %979 = vmatpush.msra.mxu0 %v606
      %980 = vmatpush.msra.mxu0 %v604
      %981 = vmatpush.msra.mxu0 %v602
      %982 = vmatpush.msra.mxu0 %v600
      %983 = vmatpush.msra.mxu0 %v598
      %984 = vmatpush.msra.mxu0 %v596
      %985 = vmatpush.msra.mxu0 %v594
      %986 = vmatpush.msra.mxu0 %v592
      %987 = vmatpush.msra.mxu0 %v590
      %988 = vmatpush.msra.mxu0 %v588
      %989 = vmatpush.msra.mxu0 %v586
      %990 = vmatpush.msra.mxu0 %v584
      %991 = vmatpush.msra.mxu0 %v582
      %992 = vmatmul.f32.gmra.mxu0 %v910
      %v993 = vpop.f32.mrf.mxu0
      %v994 = vadd.f32 0.0, %v993
      %995 = vdwg.mxu0
      %996 = vmatpush.msra.mxu0 %v644
      %997 = vmatpush.msra.mxu0 %v642
      %998 = vmatpush.msra.mxu0 %v640
      %999 = vmatpush.msra.mxu0 %v638
      %1000 = vmatpush.msra.mxu0 %v636
      %1001 = vmatpush.msra.mxu0 %v634
      %1002 = vmatpush.msra.mxu0 %v632
      %1003 = vmatpush.msra.mxu0 %v630
      %1004 = vmatpush.msra.mxu0 %v628
      %1005 = vmatpush.msra.mxu0 %v626
      %1006 = vmatpush.msra.mxu0 %v624
      %1007 = vmatpush.msra.mxu0 %v622
      %1008 = vmatpush.msra.mxu0 %v620
      %1009 = vmatpush.msra.mxu0 %v618
      %1010 = vmatpush.msra.mxu0 %v616
      %1011 = vmatpush.msra.mxu0 %v614
      %1012 = vmatmul.f32.gmra.mxu0 %v911
      %v1013 = vpop.f32.mrf.mxu0
      %v1014 = vadd.f32 %v994, %v1013
      %1015 = vdwg.mxu0
      %1016 = vmatpush.msra.mxu0 0.0
      %1017 = vmatpush.msra.mxu0 0.0
      %1018 = vmatpush.msra.mxu0 0.0
      %1019 = vmatpush.msra.mxu0 0.0
      %1020 = vmatpush.msra.mxu0 0.0
      %1021 = vmatpush.msra.mxu0 0.0
      %1022 = vmatpush.msra.mxu0 0.0
      %1023 = vmatpush.msra.mxu0 0.0
      %1024 = vmatpush.msra.mxu0 0.0
      %1025 = vmatpush.msra.mxu0 0.0
      %1026 = vmatpush.msra.mxu0 0.0
      %1027 = vmatpush.msra.mxu0 0.0
      %1028 = vmatpush.msra.mxu0 %v652
      %1029 = vmatpush.msra.mxu0 %v650
      %1030 = vmatpush.msra.mxu0 %v648
      %1031 = vmatpush.msra.mxu0 %v646
      %1032 = vmatmul.f32.gmra.mxu0 %v914
      %v1033 = vpop.f32.mrf.mxu0
      %v1034 = vadd.f32 %v1014, %v1033
      %1035 = vdwg.mxu0
      %v1036 = vmax.f32 %v907, %v974
      %v1037 = vmax.f32 %v908, %v1034
      %s1038 = scalar_lea.vmem %s1, 72
      %v1039 = vld [vmem:[%s1038] sm:$0x3f]
      %v1040 = vld [vmem:[%s1038 + $0x8] sm:$0x3f]
      %v1041 = vld [vmem:[%s1038 + $0x10] sm:$0x3f]
      %v1043 = vsel %vm656, %v1041, 0
      %1045 = vmatpush.msra.mxu0 %v611
      %1046 = vmatpush.msra.mxu0 %v609
      %1047 = vmatpush.msra.mxu0 %v607
      %1048 = vmatpush.msra.mxu0 %v605
      %1049 = vmatpush.msra.mxu0 %v603
      %1050 = vmatpush.msra.mxu0 %v601
      %1051 = vmatpush.msra.mxu0 %v599
      %1052 = vmatpush.msra.mxu0 %v597
      %1053 = vmatpush.msra.mxu0 %v595
      %1054 = vmatpush.msra.mxu0 %v593
      %1055 = vmatpush.msra.mxu0 %v591
      %1056 = vmatpush.msra.mxu0 %v589
      %1057 = vmatpush.msra.mxu0 %v587
      %1058 = vmatpush.msra.mxu0 %v585
      %1059 = vmatpush.msra.mxu0 %v583
      %1060 = vmatpush.msra.mxu0 %v581
      %1061 = vmatmul.f32.gmra.mxu0 %v1039
      %v1062 = vpop.f32.mrf.mxu0
      %v1063 = vadd.f32 0.0, %v1062
      %1064 = vdwg.mxu0
      %1065 = vmatpush.msra.mxu0 %v643
      %1066 = vmatpush.msra.mxu0 %v641
      %1067 = vmatpush.msra.mxu0 %v639
      %1068 = vmatpush.msra.mxu0 %v637
      %1069 = vmatpush.msra.mxu0 %v635
      %1070 = vmatpush.msra.mxu0 %v633
      %1071 = vmatpush.msra.mxu0 %v631
      %1072 = vmatpush.msra.mxu0 %v629
      %1073 = vmatpush.msra.mxu0 %v627
      %1074 = vmatpush.msra.mxu0 %v625
      %1075 = vmatpush.msra.mxu0 %v623
      %1076 = vmatpush.msra.mxu0 %v621
      %1077 = vmatpush.msra.mxu0 %v619
      %1078 = vmatpush.msra.mxu0 %v617
      %1079 = vmatpush.msra.mxu0 %v615
      %1080 = vmatpush.msra.mxu0 %v613
      %1081 = vmatmul.f32.gmra.mxu0 %v1040
      %v1082 = vpop.f32.mrf.mxu0
      %v1083 = vadd.f32 %v1063, %v1082
      %1084 = vdwg.mxu0
      %1085 = vmatpush.msra.mxu0 0.0
      %1086 = vmatpush.msra.mxu0 0.0
      %1087 = vmatpush.msra.mxu0 0.0
      %1088 = vmatpush.msra.mxu0 0.0
      %1089 = vmatpush.msra.mxu0 0.0
      %1090 = vmatpush.msra.mxu0 0.0
      %1091 = vmatpush.msra.mxu0 0.0
      %1092 = vmatpush.msra.mxu0 0.0
      %1093 = vmatpush.msra.mxu0 0.0
      %1094 = vmatpush.msra.mxu0 0.0
      %1095 = vmatpush.msra.mxu0 0.0
      %1096 = vmatpush.msra.mxu0 0.0
      %1097 = vmatpush.msra.mxu0 %v651
      %1098 = vmatpush.msra.mxu0 %v649
      %1099 = vmatpush.msra.mxu0 %v647
      %1100 = vmatpush.msra.mxu0 %v645
      %1101 = vmatmul.f32.gmra.mxu0 %v1043
      %v1102 = vpop.f32.mrf.mxu0
      %v1103 = vadd.f32 %v1083, %v1102
      %1104 = vdwg.mxu0
      %1105 = vmatpush.msra.mxu0 %v612
      %1106 = vmatpush.msra.mxu0 %v610
      %1107 = vmatpush.msra.mxu0 %v608
      %1108 = vmatpush.msra.mxu0 %v606
      %1109 = vmatpush.msra.mxu0 %v604
      %1110 = vmatpush.msra.mxu0 %v602
      %1111 = vmatpush.msra.mxu0 %v600
      %1112 = vmatpush.msra.mxu0 %v598
      %1113 = vmatpush.msra.mxu0 %v596
      %1114 = vmatpush.msra.mxu0 %v594
      %1115 = vmatpush.msra.mxu0 %v592
      %1116 = vmatpush.msra.mxu0 %v590
      %1117 = vmatpush.msra.mxu0 %v588
      %1118 = vmatpush.msra.mxu0 %v586
      %1119 = vmatpush.msra.mxu0 %v584
      %1120 = vmatpush.msra.mxu0 %v582
      %1121 = vmatmul.f32.gmra.mxu0 %v1039
      %v1122 = vpop.f32.mrf.mxu0
      %v1123 = vadd.f32 0.0, %v1122
      %1124 = vdwg.mxu0
      %1125 = vmatpush.msra.mxu0 %v644
      %1126 = vmatpush.msra.mxu0 %v642
      %1127 = vmatpush.msra.mxu0 %v640
      %1128 = vmatpush.msra.mxu0 %v638
      %1129 = vmatpush.msra.mxu0 %v636
      %1130 = vmatpush.msra.mxu0 %v634
      %1131 = vmatpush.msra.mxu0 %v632
      %1132 = vmatpush.msra.mxu0 %v630
      %1133 = vmatpush.msra.mxu0 %v628
      %1134 = vmatpush.msra.mxu0 %v626
      %1135 = vmatpush.msra.mxu0 %v624
      %1136 = vmatpush.msra.mxu0 %v622
      %1137 = vmatpush.msra.mxu0 %v620
      %1138 = vmatpush.msra.mxu0 %v618
      %1139 = vmatpush.msra.mxu0 %v616
      %1140 = vmatpush.msra.mxu0 %v614
      %1141 = vmatmul.f32.gmra.mxu0 %v1040
      %v1142 = vpop.f32.mrf.mxu0
      %v1143 = vadd.f32 %v1123, %v1142
      %1144 = vdwg.mxu0
      %1145 = vmatpush.msra.mxu0 0.0
      %1146 = vmatpush.msra.mxu0 0.0
      %1147 = vmatpush.msra.mxu0 0.0
      %1148 = vmatpush.msra.mxu0 0.0
      %1149 = vmatpush.msra.mxu0 0.0
      %1150 = vmatpush.msra.mxu0 0.0
      %1151 = vmatpush.msra.mxu0 0.0
      %1152 = vmatpush.msra.mxu0 0.0
      %1153 = vmatpush.msra.mxu0 0.0
      %1154 = vmatpush.msra.mxu0 0.0
      %1155 = vmatpush.msra.mxu0 0.0
      %1156 = vmatpush.msra.mxu0 0.0
      %1157 = vmatpush.msra.mxu0 %v652
      %1158 = vmatpush.msra.mxu0 %v650
      %1159 = vmatpush.msra.mxu0 %v648
      %1160 = vmatpush.msra.mxu0 %v646
      %1161 = vmatmul.f32.gmra.mxu0 %v1043
      %v1162 = vpop.f32.mrf.mxu0
      %v1163 = vadd.f32 %v1143, %v1162
      %1164 = vdwg.mxu0
      %v1165 = vmax.f32 %v1036, %v1103
      %v1166 = vmax.f32 %v1037, %v1163
      %v1167 = vld [vmem:[%s2] sm:$0x3f]
      %1169 = vset.pattern.permute.xlu0 0
      %1170 = vperm.xlu0 %1169, %v1167
      %v1171 = vpop.permute.xlu0 %1170
      %v1173 = vadd.f32 %v1165, %v1171
      %v1174 = vadd.f32 %v1166, %v1171
      %v1175 = vmax.f32 %v1173, 0.0
      %v1176 = vmax.f32 %v1174, 0.0
      %1177 = vst [vmem:[%s150] sm:$0x3f] %v1175
      %1178 = vst [vmem:[%s150 + $0x8] sm:$0x3f] %v1176
      %s1179 = smul.u32 2, %s14
      %p1180 = scmp.lt.s32.totalorder %s1179, 3
      %s1181 = scalar_select %p1180, %s1179, 3
      %s1182 = smul.addr %s1181, 8
      %s1183 = scalar_lea.vmem %s3, %s1182
      // Predicated region
      $region33: #{convnet_forward.3} parent=31 // pred_check
        %p1184 = pneg %p95
      $region34: #{convnet_forward.3} parent=31 // pred_check_branch
        %1186 = sbr.rel (%p1184) target = $region36
      $region35: #{convnet_forward.3} parent=31 // pred_region
        %s1187 = smul.u32 2, %s14
      $region36: #{convnet_forward.3} parent=31 // pred_fallthru
        _
    $region32: #{convnet_forward.3} parent=5 // pred_fallthru
      _
    %p1188 = scmp.le.s32.totalorder 2, %s9
    // Predicated region
    $region37: #{convnet_forward.3} parent=5 // pred_check
      %p1189 = pneg %p1188
    $region38: #{convnet_forward.3} parent=5 // pred_check_branch
      %1191 = sbr.rel (%p1189) target = $region40
    $region39: #{convnet_forward.3} parent=5 // pred_region
      %s1192 = ssub.s32 %s9, 2
      // Predicated region
      $region41: #{convnet_forward.3} parent=39 // pred_check
        %p1193 = pneg %p101
      $region42: #{convnet_forward.3} parent=39 // pred_check_branch
        %1195 = sbr.rel (%p1193) target = $region44
      $region43: #{convnet_forward.3} parent=39 // pred_region
        %s1196 = smul.u32 2, %s15
        %p1197 = scmp.lt.s32.totalorder %s1196, 3
        %s1198 = scalar_select %p1197, %s1196, 3
        %s1199 = smul.addr %s1198, 8
        %s1200 = scalar_lea.vmem %s3, %s1199
      $region44: #{convnet_forward.3} parent=39 // pred_fallthru
        _
    $region40: #{convnet_forward.3} parent=5 // pred_fallthru
      _
  $region6: #{convnet_forward.3} parent=0 // loop_footer
    %s13 = sadd.s32 1, %s9
  $region7: #{convnet_forward.3} parent=0 // loop_footer_branch
    %8 = sbr.rel target = $region3
  $region8: #{convnet_forward.3} parent=0 // loop_exit
    _

// kernel: convnet_forward.4
$region0: #{convnet_forward.4}
  #allocation0 [shape = 'u32[]', space=smem, size = 0x4, offset = 0x4, fixed_abs, tag = 'smem constant byte address 0x4 - core index']
  #allocation1 [shape = 'u32[72,128]{1,0:T(1,128)}', space=vmem, size = 0x9000, scoped, tag = 'internal scratch']
  #allocation2 [shape = 'f32[288,128]{1,0:T(8,128)}', space=vmem, size = 0x24000, scoped, tag = 'scratch operand']
  %s0 = inlined_call_operand.vmem [shape: f32[32,256], index: 0, kind: input, shape index: {}]
  %s1 = inlined_call_operand.vmem [shape: f32[4,16,288], index: 1, kind: input, shape index: {}]
  %s2 = inlined_call_operand.vmem [shape: f32[16,1], index: 2, kind: input, shape index: {}]
  %s3 = inlined_call_operand.vmem [shape: f32[16,128], index: 3, kind: output, shape index: {}]
  %s4 = sld [smem:[#allocation0]]
  $region22: #{convnet_forward.4} parent=0
    _
  %s6 = ssub.s32 1, %s4
  %s7 = scalar_select 0, %s6, %s4
  // Predicated region
  $region2: #{convnet_forward.4} parent=0 // pred_check
    _
  $region3: #{convnet_forward.4} parent=0 // pred_check_branch
    %9 = sbr.rel (0) target = $region5
  $region4: #{convnet_forward.4} parent=0 // pred_region
    _
  $region5: #{convnet_forward.4} parent=0 // pred_fallthru
    _
  // Predicated region
  $region6: #{convnet_forward.4} parent=0 // pred_check
    _
  $region7: #{convnet_forward.4} parent=0 // pred_check_branch
    %11 = sbr.rel (0) target = $region9
  $region8: #{convnet_forward.4} parent=0 // pred_region
    _
  $region9: #{convnet_forward.4} parent=0 // pred_fallthru
    _
  // Predicated region
  $region10: #{convnet_forward.4} parent=0 // pred_check
    _
  $region11: #{convnet_forward.4} parent=0 // pred_check_branch
    %13 = sbr.rel (0) target = $region13
  $region12: #{convnet_forward.4} parent=0 // pred_region
    _
  $region13: #{convnet_forward.4} parent=0 // pred_fallthru
    _
  %s14 = smul.u32 0, 128
  %s15 = sshra.s32 %s14, 7
  %s16 = sand.u32 %s14, 127
  %s17 = smul.addr %s15, 8
  %s18 = scalar_lea.vmem %s0, %s17
  %v19 = vld [vmem:[%s18] sm:$0xff]
  %v20 = vld [vmem:[%s18 + $0x8] sm:$0xff]
  %21 = vst [vmem:[#allocation2] sm:$0xff] %v19
  %24 = vrot.lane.b32.xlu0 %v19, 127
  %v25 = vpop.permute.xlu0 %24
  %26 = vrot.lane.b32.xlu0 %v20, 127
  %v27 = vpop.permute.xlu0 %26
  %vm28 = vcmask 1039360
  %v29 = vsel %vm28, %v25, %v27
  %31 = vst [vmem:[#allocation2 + $0x8] sm:$0xff] %v29
  %32 = vrot.lane.b32.xlu0 %v19, 126
  %v33 = vpop.permute.xlu0 %32
  %34 = vrot.lane.b32.xlu0 %v20, 126
  %v35 = vpop.permute.xlu0 %34
  %vm36 = vcmask 1031168
  %v37 = vsel %vm36, %v33, %v35
  %39 = vst [vmem:[#allocation2 + $0x10] sm:$0xff] %v37
  %40 = vrot.lane.b32.xlu0 %v19, 121
  %v41 = vpop.permute.xlu0 %40
  %42 = vrot.lane.b32.xlu0 %v20, 121
  %v43 = vpop.permute.xlu0 %42
  %vm44 = vcmask 990208
  %v45 = vsel %vm44, %v41, %v43
  %47 = vst [vmem:[#allocation2 + $0x18] sm:$0xff] %v45
  %48 = vrot.lane.b32.xlu0 %v19, 120
  %v49 = vpop.permute.xlu0 %48
  %50 = vrot.lane.b32.xlu0 %v20, 120
  %v51 = vpop.permute.xlu0 %50
  %vm52 = vcmask 982016
  %v53 = vsel %vm52, %v49, %v51
  %55 = vst [vmem:[#allocation2 + $0x20] sm:$0xff] %v53
  %56 = vrot.lane.b32.xlu0 %v19, 119
  %v57 = vpop.permute.xlu0 %56
  %58 = vrot.lane.b32.xlu0 %v20, 119
  %v59 = vpop.permute.xlu0 %58
  %vm60 = vcmask 973824
  %v61 = vsel %vm60, %v57, %v59
  %63 = vst [vmem:[#allocation2 + $0x28] sm:$0xff] %v61
  %64 = vrot.lane.b32.xlu0 %v19, 114
  %v65 = vpop.permute.xlu0 %64
  %66 = vrot.lane.b32.xlu0 %v20, 114
  %v67 = vpop.permute.xlu0 %66
  %vm68 = vcmask 932864
  %v69 = vsel %vm68, %v65, %v67
  %71 = vst [vmem:[#allocation2 + $0x30] sm:$0xff] %v69
  %72 = vrot.lane.b32.xlu0 %v19, 113
  %v73 = vpop.permute.xlu0 %72
  %74 = vrot.lane.b32.xlu0 %v20, 113
  %v75 = vpop.permute.xlu0 %74
  %vm76 = vcmask 924672
  %v77 = vsel %vm76, %v73, %v75
  %79 = vst [vmem:[#allocation2 + $0x38] sm:$0xff] %v77
  %80 = vrot.lane.b32.xlu0 %v19, 112
  %v81 = vpop.permute.xlu0 %80
  %82 = vrot.lane.b32.xlu0 %v20, 112
  %v83 = vpop.permute.xlu0 %82
  %vm84 = vcmask 916480
  %v85 = vsel %vm84, %v81, %v83
  %87 = vst [vmem:[#allocation2 + $0x40] sm:$0xff] %v85
  %v88 = vld [vmem:[%s18 + $0x10] sm:$0xff]
  %v89 = vld [vmem:[%s18 + $0x18] sm:$0xff]
  %90 = vst [vmem:[#allocation2 + $0x48] sm:$0xff] %v88
  %93 = vrot.lane.b32.xlu0 %v88, 127
  %v94 = vpop.permute.xlu0 %93
  %95 = vrot.lane.b32.xlu0 %v89, 127
  %v96 = vpop.permute.xlu0 %95
  %v97 = vsel %vm28, %v94, %v96
  %99 = vst [vmem:[#allocation2 + $0x50] sm:$0xff] %v97
  %100 = vrot.lane.b32.xlu0 %v88, 126
  %v101 = vpop.permute.xlu0 %100
  %102 = vrot.lane.b32.xlu0 %v89, 126
  %v103 = vpop.permute.xlu0 %102
  %v104 = vsel %vm36, %v101, %v103
  %106 = vst [vmem:[#allocation2 + $0x58] sm:$0xff] %v104
  %107 = vrot.lane.b32.xlu0 %v88, 121
  %v108 = vpop.permute.xlu0 %107
  %109 = vrot.lane.b32.xlu0 %v89, 121
  %v110 = vpop.permute.xlu0 %109
  %v111 = vsel %vm44, %v108, %v110
  %113 = vst [vmem:[#allocation2 + $0x60] sm:$0xff] %v111
  %114 = vrot.lane.b32.xlu0 %v88, 120
  %v115 = vpop.permute.xlu0 %114
  %116 = vrot.lane.b32.xlu0 %v89, 120
  %v117 = vpop.permute.xlu0 %116
  %v118 = vsel %vm52, %v115, %v117
  %120 = vst [vmem:[#allocation2 + $0x68] sm:$0xff] %v118
  %121 = vrot.lane.b32.xlu0 %v88, 119
  %v122 = vpop.permute.xlu0 %121
  %123 = vrot.lane.b32.xlu0 %v89, 119
  %v124 = vpop.permute.xlu0 %123
  %v125 = vsel %vm60, %v122, %v124
  %127 = vst [vmem:[#allocation2 + $0x70] sm:$0xff] %v125
  %128 = vrot.lane.b32.xlu0 %v88, 114
  %v129 = vpop.permute.xlu0 %128
  %130 = vrot.lane.b32.xlu0 %v89, 114
  %v131 = vpop.permute.xlu0 %130
  %v132 = vsel %vm68, %v129, %v131
  %134 = vst [vmem:[#allocation2 + $0x78] sm:$0xff] %v132
  %135 = vrot.lane.b32.xlu0 %v88, 113
  %v136 = vpop.permute.xlu0 %135
  %137 = vrot.lane.b32.xlu0 %v89, 113
  %v138 = vpop.permute.xlu0 %137
  %v139 = vsel %vm76, %v136, %v138
  %141 = vst [vmem:[#allocation2 + $0x80] sm:$0xff] %v139
  %142 = vrot.lane.b32.xlu0 %v88, 112
  %v143 = vpop.permute.xlu0 %142
  %144 = vrot.lane.b32.xlu0 %v89, 112
  %v145 = vpop.permute.xlu0 %144
  %v146 = vsel %vm84, %v143, %v145
  %148 = vst [vmem:[#allocation2 + $0x88] sm:$0xff] %v146
  %v149 = vld [vmem:[%s18 + $0x20] sm:$0xff]
  %v150 = vld [vmem:[%s18 + $0x28] sm:$0xff]
  %151 = vst [vmem:[#allocation2 + $0x90] sm:$0xff] %v149
  %154 = vrot.lane.b32.xlu0 %v149, 127
  %v155 = vpop.permute.xlu0 %154
  %156 = vrot.lane.b32.xlu0 %v150, 127
  %v157 = vpop.permute.xlu0 %156
  %v158 = vsel %vm28, %v155, %v157
  %160 = vst [vmem:[#allocation2 + $0x98] sm:$0xff] %v158
  %161 = vrot.lane.b32.xlu0 %v149, 126
  %v162 = vpop.permute.xlu0 %161
  %163 = vrot.lane.b32.xlu0 %v150, 126
  %v164 = vpop.permute.xlu0 %163
  %v165 = vsel %vm36, %v162, %v164
  %167 = vst [vmem:[#allocation2 + $0xa0] sm:$0xff] %v165
  %168 = vrot.lane.b32.xlu0 %v149, 121
  %v169 = vpop.permute.xlu0 %168
  %170 = vrot.lane.b32.xlu0 %v150, 121
  %v171 = vpop.permute.xlu0 %170
  %v172 = vsel %vm44, %v169, %v171
  %174 = vst [vmem:[#allocation2 + $0xa8] sm:$0xff] %v172
  %175 = vrot.lane.b32.xlu0 %v149, 120
  %v176 = vpop.permute.xlu0 %175
  %177 = vrot.lane.b32.xlu0 %v150, 120
  %v178 = vpop.permute.xlu0 %177
  %v179 = vsel %vm52, %v176, %v178
  %181 = vst [vmem:[#allocation2 + $0xb0] sm:$0xff] %v179
  %182 = vrot.lane.b32.xlu0 %v149, 119
  %v183 = vpop.permute.xlu0 %182
  %184 = vrot.lane.b32.xlu0 %v150, 119
  %v185 = vpop.permute.xlu0 %184
  %v186 = vsel %vm60, %v183, %v185
  %188 = vst [vmem:[#allocation2 + $0xb8] sm:$0xff] %v186
  %189 = vrot.lane.b32.xlu0 %v149, 114
  %v190 = vpop.permute.xlu0 %189
  %191 = vrot.lane.b32.xlu0 %v150, 114
  %v192 = vpop.permute.xlu0 %191
  %v193 = vsel %vm68, %v190, %v192
  %195 = vst [vmem:[#allocation2 + $0xc0] sm:$0xff] %v193
  %196 = vrot.lane.b32.xlu0 %v149, 113
  %v197 = vpop.permute.xlu0 %196
  %198 = vrot.lane.b32.xlu0 %v150, 113
  %v199 = vpop.permute.xlu0 %198
  %v200 = vsel %vm76, %v197, %v199
  %202 = vst [vmem:[#allocation2 + $0xc8] sm:$0xff] %v200
  %203 = vrot.lane.b32.xlu0 %v149, 112
  %v204 = vpop.permute.xlu0 %203
  %205 = vrot.lane.b32.xlu0 %v150, 112
  %v206 = vpop.permute.xlu0 %205
  %v207 = vsel %vm84, %v204, %v206
  %209 = vst [vmem:[#allocation2 + $0xd0] sm:$0xff] %v207
  %v210 = vld [vmem:[%s18 + $0x30] sm:$0xff]
  %v211 = vld [vmem:[%s18 + $0x38] sm:$0xff]
  %212 = vst [vmem:[#allocation2 + $0xd8] sm:$0xff] %v210
  %215 = vrot.lane.b32.xlu0 %v210, 127
  %v216 = vpop.permute.xlu0 %215
  %217 = vrot.lane.b32.xlu0 %v211, 127
  %v218 = vpop.permute.xlu0 %217
  %v219 = vsel %vm28, %v216, %v218
  %221 = vst [vmem:[#allocation2 + $0xe0] sm:$0xff] %v219
  %222 = vrot.lane.b32.xlu0 %v210, 126
  %v223 = vpop.permute.xlu0 %222
  %224 = vrot.lane.b32.xlu0 %v211, 126
  %v225 = vpop.permute.xlu0 %224
  %v226 = vsel %vm36, %v223, %v225
  %228 = vst [vmem:[#allocation2 + $0xe8] sm:$0xff] %v226
  %229 = vrot.lane.b32.xlu0 %v210, 121
  %v230 = vpop.permute.xlu0 %229
  %231 = vrot.lane.b32.xlu0 %v211, 121
  %v232 = vpop.permute.xlu0 %231
  %v233 = vsel %vm44, %v230, %v232
  %235 = vst [vmem:[#allocation2 + $0xf0] sm:$0xff] %v233
  %236 = vrot.lane.b32.xlu0 %v210, 120
  %v237 = vpop.permute.xlu0 %236
  %238 = vrot.lane.b32.xlu0 %v211, 120
  %v239 = vpop.permute.xlu0 %238
  %v240 = vsel %vm52, %v237, %v239
  %242 = vst [vmem:[#allocation2 + $0xf8] sm:$0xff] %v240
  %243 = vrot.lane.b32.xlu0 %v210, 119
  %v244 = vpop.permute.xlu0 %243
  %245 = vrot.lane.b32.xlu0 %v211, 119
  %v246 = vpop.permute.xlu0 %245
  %v247 = vsel %vm60, %v244, %v246
  %249 = vst [vmem:[#allocation2 + $0x100] sm:$0xff] %v247
  %250 = vrot.lane.b32.xlu0 %v210, 114
  %v251 = vpop.permute.xlu0 %250
  %252 = vrot.lane.b32.xlu0 %v211, 114
  %v253 = vpop.permute.xlu0 %252
  %v254 = vsel %vm68, %v251, %v253
  %256 = vst [vmem:[#allocation2 + $0x108] sm:$0xff] %v254
  %257 = vrot.lane.b32.xlu0 %v210, 113
  %v258 = vpop.permute.xlu0 %257
  %259 = vrot.lane.b32.xlu0 %v211, 113
  %v260 = vpop.permute.xlu0 %259
  %v261 = vsel %vm76, %v258, %v260
  %263 = vst [vmem:[#allocation2 + $0x110] sm:$0xff] %v261
  %264 = vrot.lane.b32.xlu0 %v210, 112
  %v265 = vpop.permute.xlu0 %264
  %266 = vrot.lane.b32.xlu0 %v211, 112
  %v267 = vpop.permute.xlu0 %266
  %v268 = vsel %vm84, %v265, %v267
  %270 = vst [vmem:[#allocation2 + $0x118] sm:$0xff] %v268
  %v271 = vld [vmem:[#allocation2] sm:$0xff]
  %v272 = vld [vmem:[#allocation2 + $0x8] sm:$0xff]
  %v273 = vld [vmem:[#allocation2 + $0x10] sm:$0xff]
  %v274 = vld [vmem:[#allocation2 + $0x18] sm:$0xff]
  %v275 = vld [vmem:[#allocation2 + $0x20] sm:$0xff]
  %v276 = vld [vmem:[#allocation2 + $0x28] sm:$0xff]
  %v277 = vld [vmem:[#allocation2 + $0x30] sm:$0xff]
  %v278 = vld [vmem:[#allocation2 + $0x38] sm:$0xff]
  %v279 = vld [vmem:[#allocation2 + $0x40] sm:$0xff]
  %v280 = vld [vmem:[#allocation2 + $0x48] sm:$0xff]
  %v281 = vld [vmem:[#allocation2 + $0x50] sm:$0xff]
  %v282 = vld [vmem:[#allocation2 + $0x58] sm:$0xff]
  %v283 = vld [vmem:[#allocation2 + $0x60] sm:$0xff]
  %v284 = vld [vmem:[#allocation2 + $0x68] sm:$0xff]
  %v285 = vld [vmem:[#allocation2 + $0x70] sm:$0xff]
  %v286 = vld [vmem:[#allocation2 + $0x78] sm:$0xff]
  %v287 = vld [vmem:[#allocation2 + $0x80] sm:$0xff]
  %v288 = vld [vmem:[#allocation2 + $0x88] sm:$0xff]
  %v289 = vld [vmem:[#allocation2 + $0x90] sm:$0xff]
  %v290 = vld [vmem:[#allocation2 + $0x98] sm:$0xff]
  %v291 = vld [vmem:[#allocation2 + $0xa0] sm:$0xff]
  %v292 = vld [vmem:[#allocation2 + $0xa8] sm:$0xff]
  %v293 = vld [vmem:[#allocation2 + $0xb0] sm:$0xff]
  %v294 = vld [vmem:[#allocation2 + $0xb8] sm:$0xff]
  %v295 = vld [vmem:[#allocation2 + $0xc0] sm:$0xff]
  %v296 = vld [vmem:[#allocation2 + $0xc8] sm:$0xff]
  %v297 = vld [vmem:[#allocation2 + $0xd0] sm:$0xff]
  %v298 = vld [vmem:[#allocation2 + $0xd8] sm:$0xff]
  %v299 = vld [vmem:[#allocation2 + $0xe0] sm:$0xff]
  %v300 = vld [vmem:[#allocation2 + $0xe8] sm:$0xff]
  %v301 = vld [vmem:[#allocation2 + $0xf0] sm:$0xff]
  %v302 = vld [vmem:[#allocation2 + $0xf8] sm:$0xff]
  %v303 = vld [vmem:[#allocation2 + $0x100] sm:$0xff]
  %v304 = vld [vmem:[#allocation2 + $0x108] sm:$0xff]
  %v305 = vld [vmem:[#allocation2 + $0x110] sm:$0xff]
  %v306 = vld [vmem:[#allocation2 + $0x118] sm:$0xff]
  %v307 = vld [vmem:[%s1] sm:$0xff]
  %v308 = vld [vmem:[%s1 + $0x8] sm:$0xff]
  %v309 = vld [vmem:[%s1 + $0x10] sm:$0xff]
  %v310 = vld [vmem:[%s1 + $0x18] sm:$0xff]
  %v311 = vld [vmem:[%s1 + $0x20] sm:$0xff]
  %v312 = vld [vmem:[%s1 + $0x28] sm:$0xff]
  %vm313 = vcmask 261120
  %v315 = vsel %vm313, %v309, 0
  %v318 = vsel %vm313, %v312, 0
  %320 = vmatpush.msra.mxu0 %v286
  %321 = vmatpush.msra.mxu0 %v285
  %322 = vmatpush.msra.mxu0 %v284
  %323 = vmatpush.msra.mxu0 %v283
  %324 = vmatpush.msra.mxu0 %v282
  %325 = vmatpush.msra.mxu0 %v281
  %326 = vmatpush.msra.mxu0 %v280
  %327 = vmatpush.msra.mxu0 %v279
  %328 = vmatpush.msra.mxu0 %v278
  %329 = vmatpush.msra.mxu0 %v277
  %330 = vmatpush.msra.mxu0 %v276
  %331 = vmatpush.msra.mxu0 %v275
  %332 = vmatpush.msra.mxu0 %v274
  %333 = vmatpush.msra.mxu0 %v273
  %334 = vmatpush.msra.mxu0 %v272
  %335 = vmatpush.msra.mxu0 %v271
  %336 = vmatmul.f32.gmra.mxu0 %v307
  %v337 = vpop.f32.mrf.mxu0
  %v338 = vadd.f32 0.0, %v337
  %339 = vmatmul.f32.gmra.mxu0 %v310
  %v340 = vpop.f32.mrf.mxu0
  %v341 = vadd.f32 0.0, %v340
  %342 = vdwg.mxu0
  %343 = vmatpush.msra.mxu0 %v302
  %344 = vmatpush.msra.mxu0 %v301
  %345 = vmatpush.msra.mxu0 %v300
  %346 = vmatpush.msra.mxu0 %v299
  %347 = vmatpush.msra.mxu0 %v298
  %348 = vmatpush.msra.mxu0 %v297
  %349 = vmatpush.msra.mxu0 %v296
  %350 = vmatpush.msra.mxu0 %v295
  %351 = vmatpush.msra.mxu0 %v294
  %352 = vmatpush.msra.mxu0 %v293
  %353 = vmatpush.msra.mxu0 %v292
  %354 = vmatpush.msra.mxu0 %v291
  %355 = vmatpush.msra.mxu0 %v290
  %356 = vmatpush.msra.mxu0 %v289
  %357 = vmatpush.msra.mxu0 %v288
  %358 = vmatpush.msra.mxu0 %v287
  %359 = vmatmul.f32.gmra.mxu0 %v308
  %v360 = vpop.f32.mrf.mxu0
  %v361 = vadd.f32 %v338, %v360
  %362 = vmatmul.f32.gmra.mxu0 %v311
  %v363 = vpop.f32.mrf.mxu0
  %v364 = vadd.f32 %v341, %v363
  %365 = vdwg.mxu0
  %366 = vmatpush.msra.mxu0 0.0
  %367 = vmatpush.msra.mxu0 0.0
  %368 = vmatpush.msra.mxu0 0.0
  %369 = vmatpush.msra.mxu0 0.0
  %370 = vmatpush.msra.mxu0 0.0
  %371 = vmatpush.msra.mxu0 0.0
  %372 = vmatpush.msra.mxu0 0.0
  %373 = vmatpush.msra.mxu0 0.0
  %374 = vmatpush.msra.mxu0 0.0
  %375 = vmatpush.msra.mxu0 0.0
  %376 = vmatpush.msra.mxu0 0.0
  %377 = vmatpush.msra.mxu0 0.0
  %378 = vmatpush.msra.mxu0 %v306
  %379 = vmatpush.msra.mxu0 %v305
  %380 = vmatpush.msra.mxu0 %v304
  %381 = vmatpush.msra.mxu0 %v303
  %382 = vmatmul.f32.gmra.mxu0 %v315
  %v383 = vpop.f32.mrf.mxu0
  %v384 = vadd.f32 %v361, %v383
  %385 = vmatmul.f32.gmra.mxu0 %v318
  %v386 = vpop.f32.mrf.mxu0
  %v387 = vadd.f32 %v364, %v386
  %388 = vdwg.mxu0
  %s389 = scalar_lea.vmem %s1, 48
  %v390 = vld [vmem:[%s389] sm:$0xff]
  %v391 = vld [vmem:[%s389 + $0x8] sm:$0xff]
  %v392 = vld [vmem:[%s389 + $0x10] sm:$0xff]
  %v393 = vld [vmem:[%s389 + $0x18] sm:$0xff]
  %v394 = vld [vmem:[%s389 + $0x20] sm:$0xff]
  %v395 = vld [vmem:[%s389 + $0x28] sm:$0xff]
  %v397 = vsel %vm313, %v392, 0
  %v400 = vsel %vm313, %v395, 0
  %402 = vmatpush.msra.mxu0 %v286
  %403 = vmatpush.msra.mxu0 %v285
  %404 = vmatpush.msra.mxu0 %v284
  %405 = vmatpush.msra.mxu0 %v283
  %406 = vmatpush.msra.mxu0 %v282
  %407 = vmatpush.msra.mxu0 %v281
  %408 = vmatpush.msra.mxu0 %v280
  %409 = vmatpush.msra.mxu0 %v279
  %410 = vmatpush.msra.mxu0 %v278
  %411 = vmatpush.msra.mxu0 %v277
  %412 = vmatpush.msra.mxu0 %v276
  %413 = vmatpush.msra.mxu0 %v275
  %414 = vmatpush.msra.mxu0 %v274
  %415 = vmatpush.msra.mxu0 %v273
  %416 = vmatpush.msra.mxu0 %v272
  %417 = vmatpush.msra.mxu0 %v271
  %418 = vmatmul.f32.gmra.mxu0 %v390
  %v419 = vpop.f32.mrf.mxu0
  %v420 = vadd.f32 0.0, %v419
  %421 = vmatmul.f32.gmra.mxu0 %v393
  %v422 = vpop.f32.mrf.mxu0
  %v423 = vadd.f32 0.0, %v422
  %424 = vdwg.mxu0
  %425 = vmatpush.msra.mxu0 %v302
  %426 = vmatpush.msra.mxu0 %v301
  %427 = vmatpush.msra.mxu0 %v300
  %428 = vmatpush.msra.mxu0 %v299
  %429 = vmatpush.msra.mxu0 %v298
  %430 = vmatpush.msra.mxu0 %v297
  %431 = vmatpush.msra.mxu0 %v296
  %432 = vmatpush.msra.mxu0 %v295
  %433 = vmatpush.msra.mxu0 %v294
  %434 = vmatpush.msra.mxu0 %v293
  %435 = vmatpush.msra.mxu0 %v292
  %436 = vmatpush.msra.mxu0 %v291
  %437 = vmatpush.msra.mxu0 %v290
  %438 = vmatpush.msra.mxu0 %v289
  %439 = vmatpush.msra.mxu0 %v288
  %440 = vmatpush.msra.mxu0 %v287
  %441 = vmatmul.f32.gmra.mxu0 %v391
  %v442 = vpop.f32.mrf.mxu0
  %v443 = vadd.f32 %v420, %v442
  %444 = vmatmul.f32.gmra.mxu0 %v394
  %v445 = vpop.f32.mrf.mxu0
  %v446 = vadd.f32 %v423, %v445
  %447 = vdwg.mxu0
  %448 = vmatpush.msra.mxu0 0.0
  %449 = vmatpush.msra.mxu0 0.0
  %450 = vmatpush.msra.mxu0 0.0
  %451 = vmatpush.msra.mxu0 0.0
  %452 = vmatpush.msra.mxu0 0.0
  %453 = vmatpush.msra.mxu0 0.0
  %454 = vmatpush.msra.mxu0 0.0
  %455 = vmatpush.msra.mxu0 0.0
  %456 = vmatpush.msra.mxu0 0.0
  %457 = vmatpush.msra.mxu0 0.0
  %458 = vmatpush.msra.mxu0 0.0
  %459 = vmatpush.msra.mxu0 0.0
  %460 = vmatpush.msra.mxu0 %v306
  %461 = vmatpush.msra.mxu0 %v305
  %462 = vmatpush.msra.mxu0 %v304
  %463 = vmatpush.msra.mxu0 %v303
  %464 = vmatmul.f32.gmra.mxu0 %v397
  %v465 = vpop.f32.mrf.mxu0
  %v466 = vadd.f32 %v443, %v465
  %467 = vmatmul.f32.gmra.mxu0 %v400
  %v468 = vpop.f32.mrf.mxu0
  %v469 = vadd.f32 %v446, %v468
  %470 = vdwg.mxu0
  %v471 = vmax.f32 %v384, %v466
  %v472 = vmax.f32 %v387, %v469
  %s473 = scalar_lea.vmem %s1, 96
  %v474 = vld [vmem:[%s473] sm:$0xff]
  %v475 = vld [vmem:[%s473 + $0x8] sm:$0xff]
  %v476 = vld [vmem:[%s473 + $0x10] sm:$0xff]
  %v477 = vld [vmem:[%s473 + $0x18] sm:$0xff]
  %v478 = vld [vmem:[%s473 + $0x20] sm:$0xff]
  %v479 = vld [vmem:[%s473 + $0x28] sm:$0xff]
  %v481 = vsel %vm313, %v476, 0
  %v484 = vsel %vm313, %v479, 0
  %486 = vmatpush.msra.mxu0 %v286
  %487 = vmatpush.msra.mxu0 %v285
  %488 = vmatpush.msra.mxu0 %v284
  %489 = vmatpush.msra.mxu0 %v283
  %490 = vmatpush.msra.mxu0 %v282
  %491 = vmatpush.msra.mxu0 %v281
  %492 = vmatpush.msra.mxu0 %v280
  %493 = vmatpush.msra.mxu0 %v279
  %494 = vmatpush.msra.mxu0 %v278
  %495 = vmatpush.msra.mxu0 %v277
  %496 = vmatpush.msra.mxu0 %v276
  %497 = vmatpush.msra.mxu0 %v275
  %498 = vmatpush.msra.mxu0 %v274
  %499 = vmatpush.msra.mxu0 %v273
  %500 = vmatpush.msra.mxu0 %v272
  %501 = vmatpush.msra.mxu0 %v271
  %502 = vmatmul.f32.gmra.mxu0 %v474
  %v503 = vpop.f32.mrf.mxu0
  %v504 = vadd.f32 0.0, %v503
  %505 = vmatmul.f32.gmra.mxu0 %v477
  %v506 = vpop.f32.mrf.mxu0
  %v507 = vadd.f32 0.0, %v506
  %508 = vdwg.mxu0
  %509 = vmatpush.msra.mxu0 %v302
  %510 = vmatpush.msra.mxu0 %v301
  %511 = vmatpush.msra.mxu0 %v300
  %512 = vmatpush.msra.mxu0 %v299
  %513 = vmatpush.msra.mxu0 %v298
  %514 = vmatpush.msra.mxu0 %v297
  %515 = vmatpush.msra.mxu0 %v296
  %516 = vmatpush.msra.mxu0 %v295
  %517 = vmatpush.msra.mxu0 %v294
  %518 = vmatpush.msra.mxu0 %v293
  %519 = vmatpush.msra.mxu0 %v292
  %520 = vmatpush.msra.mxu0 %v291
  %521 = vmatpush.msra.mxu0 %v290
  %522 = vmatpush.msra.mxu0 %v289
  %523 = vmatpush.msra.mxu0 %v288
  %524 = vmatpush.msra.mxu0 %v287
  %525 = vmatmul.f32.gmra.mxu0 %v475
  %v526 = vpop.f32.mrf.mxu0
  %v527 = vadd.f32 %v504, %v526
  %528 = vmatmul.f32.gmra.mxu0 %v478
  %v529 = vpop.f32.mrf.mxu0
  %v530 = vadd.f32 %v507, %v529
  %531 = vdwg.mxu0
  %532 = vmatpush.msra.mxu0 0.0
  %533 = vmatpush.msra.mxu0 0.0
  %534 = vmatpush.msra.mxu0 0.0
  %535 = vmatpush.msra.mxu0 0.0
  %536 = vmatpush.msra.mxu0 0.0
  %537 = vmatpush.msra.mxu0 0.0
  %538 = vmatpush.msra.mxu0 0.0
  %539 = vmatpush.msra.mxu0 0.0
  %540 = vmatpush.msra.mxu0 0.0
  %541 = vmatpush.msra.mxu0 0.0
  %542 = vmatpush.msra.mxu0 0.0
  %543 = vmatpush.msra.mxu0 0.0
  %544 = vmatpush.msra.mxu0 %v306
  %545 = vmatpush.msra.mxu0 %v305
  %546 = vmatpush.msra.mxu0 %v304
  %547 = vmatpush.msra.mxu0 %v303
  %548 = vmatmul.f32.gmra.mxu0 %v481
  %v549 = vpop.f32.mrf.mxu0
  %v550 = vadd.f32 %v527, %v549
  %551 = vmatmul.f32.gmra.mxu0 %v484
  %v552 = vpop.f32.mrf.mxu0
  %v553 = vadd.f32 %v530, %v552
  %554 = vdwg.mxu0
  %v555 = vmax.f32 %v471, %v550
  %v556 = vmax.f32 %v472, %v553
  %s557 = scalar_lea.vmem %s1, 144
  %v558 = vld [vmem:[%s557] sm:$0xff]
  %v559 = vld [vmem:[%s557 + $0x8] sm:$0xff]
  %v560 = vld [vmem:[%s557 + $0x10] sm:$0xff]
  %v561 = vld [vmem:[%s557 + $0x18] sm:$0xff]
  %v562 = vld [vmem:[%s557 + $0x20] sm:$0xff]
  %v563 = vld [vmem:[%s557 + $0x28] sm:$0xff]
  %v565 = vsel %vm313, %v560, 0
  %v568 = vsel %vm313, %v563, 0
  %570 = vmatpush.msra.mxu0 %v286
  %571 = vmatpush.msra.mxu0 %v285
  %572 = vmatpush.msra.mxu0 %v284
  %573 = vmatpush.msra.mxu0 %v283
  %574 = vmatpush.msra.mxu0 %v282
  %575 = vmatpush.msra.mxu0 %v281
  %576 = vmatpush.msra.mxu0 %v280
  %577 = vmatpush.msra.mxu0 %v279
  %578 = vmatpush.msra.mxu0 %v278
  %579 = vmatpush.msra.mxu0 %v277
  %580 = vmatpush.msra.mxu0 %v276
  %581 = vmatpush.msra.mxu0 %v275
  %582 = vmatpush.msra.mxu0 %v274
  %583 = vmatpush.msra.mxu0 %v273
  %584 = vmatpush.msra.mxu0 %v272
  %585 = vmatpush.msra.mxu0 %v271
  %586 = vmatmul.f32.gmra.mxu0 %v558
  %v587 = vpop.f32.mrf.mxu0
  %v588 = vadd.f32 0.0, %v587
  %589 = vmatmul.f32.gmra.mxu0 %v561
  %v590 = vpop.f32.mrf.mxu0
  %v591 = vadd.f32 0.0, %v590
  %592 = vdwg.mxu0
  %593 = vmatpush.msra.mxu0 %v302
  %594 = vmatpush.msra.mxu0 %v301
  %595 = vmatpush.msra.mxu0 %v300
  %596 = vmatpush.msra.mxu0 %v299
  %597 = vmatpush.msra.mxu0 %v298
  %598 = vmatpush.msra.mxu0 %v297
  %599 = vmatpush.msra.mxu0 %v296
  %600 = vmatpush.msra.mxu0 %v295
  %601 = vmatpush.msra.mxu0 %v294
  %602 = vmatpush.msra.mxu0 %v293
  %603 = vmatpush.msra.mxu0 %v292
  %604 = vmatpush.msra.mxu0 %v291
  %605 = vmatpush.msra.mxu0 %v290
  %606 = vmatpush.msra.mxu0 %v289
  %607 = vmatpush.msra.mxu0 %v288
  %608 = vmatpush.msra.mxu0 %v287
  %609 = vmatmul.f32.gmra.mxu0 %v559
  %v610 = vpop.f32.mrf.mxu0
  %v611 = vadd.f32 %v588, %v610
  %612 = vmatmul.f32.gmra.mxu0 %v562
  %v613 = vpop.f32.mrf.mxu0
  %v614 = vadd.f32 %v591, %v613
  %615 = vdwg.mxu0
  %616 = vmatpush.msra.mxu0 0.0
  %617 = vmatpush.msra.mxu0 0.0
  %618 = vmatpush.msra.mxu0 0.0
  %619 = vmatpush.msra.mxu0 0.0
  %620 = vmatpush.msra.mxu0 0.0
  %621 = vmatpush.msra.mxu0 0.0
  %622 = vmatpush.msra.mxu0 0.0
  %623 = vmatpush.msra.mxu0 0.0
  %624 = vmatpush.msra.mxu0 0.0
  %625 = vmatpush.msra.mxu0 0.0
  %626 = vmatpush.msra.mxu0 0.0
  %627 = vmatpush.msra.mxu0 0.0
  %628 = vmatpush.msra.mxu0 %v306
  %629 = vmatpush.msra.mxu0 %v305
  %630 = vmatpush.msra.mxu0 %v304
  %631 = vmatpush.msra.mxu0 %v303
  %632 = vmatmul.f32.gmra.mxu0 %v565
  %v633 = vpop.f32.mrf.mxu0
  %v634 = vadd.f32 %v611, %v633
  %635 = vmatmul.f32.gmra.mxu0 %v568
  %v636 = vpop.f32.mrf.mxu0
  %v637 = vadd.f32 %v614, %v636
  %638 = vdwg.mxu0
  %v639 = vmax.f32 %v555, %v634
  %v640 = vmax.f32 %v556, %v637
  %v641 = vld [vmem:[%s2] sm:$0xff]
  %v642 = vld [vmem:[%s2 + $0x8] sm:$0xff]
  %644 = vset.pattern.permute.xlu0 0
  %645 = vperm.xlu0 %644, %v641
  %v646 = vpop.permute.xlu0 %645
  %649 = vset.pattern.permute.xlu0 0
  %650 = vperm.xlu0 %649, %v642
  %v651 = vpop.permute.xlu0 %650
  %v653 = vadd.f32 %v639, %v646
  %v654 = vadd.f32 %v640, %v651
  %v655 = vmax.f32 %v653, 0.0
  %v656 = vmax.f32 %v654, 0.0
  %657 = vst [vmem:[%s3] sm:$0xff] %v655
  %658 = vst [vmem:[%s3 + $0x8] sm:$0xff] %v656
  // Predicated region
  $region14: #{convnet_forward.4} parent=0 // pred_check
    _
  $region15: #{convnet_forward.4} parent=0 // pred_check_branch
    %660 = sbr.rel (0) target = $region17
  $region16: #{convnet_forward.4} parent=0 // pred_region
    _
  $region17: #{convnet_forward.4} parent=0 // pred_fallthru
    _
  // Predicated region
  $region18: #{convnet_forward.4} parent=0 // pred_check
    _
  $region19: #{convnet_forward.4} parent=0 // pred_check_branch
    %662 = sbr.rel (0) target = $region21
  $region20: #{convnet_forward.4} parent=0 // pred_region
    _
  $region21: #{convnet_forward.4} parent=0 // pred_fallthru
    _

</llo_original>
